<compile_context>
chip_gen: v6e
topology: v6e:2x2x1
jax: 0.10.0
libtpu: 0.0.40
codegen_flags: <defaults>
</compile_context>

<pallas_src>
import functools

import jax
import jax.numpy as jnp
from jax.experimental import pallas as pl
from jax.experimental.pallas import tpu as pltpu

F32 = jnp.float32
BF16 = jnp.bfloat16


def _round_up(x, m):
    return ((x + m - 1) // m) * m


# --------------------------------------------------------------------------
# Fused encoder kernel: lin0+ReLU -> 3x(NNConv(mean)+ReLU+GRU) -> Set2Set(3,1)
# grid = (mp_step, edge_tile); all state carried in VMEM scratch.
# --------------------------------------------------------------------------
def _encoder_kernel(
        nfeat_ref, lin0_w_ref, lin0_b_ref,
        efeat_ref, src_ref, dst_ref,
        ew1_ref, eb1_ref, ew2_ref, eb2_ref,
        conv_b_ref,
        gru_wrz_ref, gru_brz_ref, gru_wni_ref, gru_wnh_ref, gru_bni_ref, gru_bnh_ref,
        lstm_w_ref, lstm_b_ref,
        qstar_ref, feat_ref,
        h_scr, agg_scr, deg_scr, w_scr, x_scr, mh_scr, xq_scr,
        *, n_pad, n_real, te, hid, mp_steps, s2s_iters):
    s = pl.program_id(0)              # message-passing step (sequential)
    t = pl.program_id(1)              # edge tile (sequential; accumulates into agg_scr)
    n_tiles = pl.num_programs(1)

    # ---- one-time init: lin0 + ReLU node embedding, zero in-degree accumulator ----
    @pl.when(jnp.logical_and(s == 0, t == 0))
    def _init():
        out0 = jnp.dot(nfeat_ref[...], lin0_w_ref[...],
                       preferred_element_type=F32) + lin0_b_ref[...]
        h_scr[...] = jnp.maximum(out0, 0.0)
        deg_scr[...] = jnp.zeros_like(deg_scr)

    # ---- per-step init: zero the (N, H) aggregation accumulator ----
    @pl.when(t == 0)
    def _zero_agg():
        agg_scr[...] = jnp.zeros_like(agg_scr)

    # ---- per edge tile: tile-local one-hots, fused edge MLP, messages, scatter ----
    src = src_ref[...]                                                 # (TE, 1) int32
    dst = dst_ref[...]                                                 # (1, TE) int32
    gather_oh = (jax.lax.broadcasted_iota(jnp.int32, (te, n_pad), 1) == src).astype(BF16)
    scatter_oh = (jax.lax.broadcasted_iota(jnp.int32, (n_pad, te), 0) == dst).astype(BF16)
    # padded edges carry dst == n_pad -> all-zero scatter column -> no contribution

    @pl.when(s == 0)
    def _accum_deg():
        deg_scr[...] += jnp.sum(scatter_oh.astype(F32), axis=1, keepdims=True)

    # fused NNConv edge_func: Linear(5,128) -> ReLU -> Linear(128, H*H); lane-dense
    h1 = jnp.dot(efeat_ref[...], ew1_ref[...], preferred_element_type=F32) + eb1_ref[...]
    h1 = jnp.maximum(h1, 0.0).astype(BF16)
    w_scr[...] = (jnp.dot(h1, ew2_ref[...], preferred_element_type=F32)
                  + eb2_ref[...]).astype(BF16)                         # (TE, H*H) bf16

    # gather source node features via one-hot matmul (MXU)
    h_bf = h_scr[...].astype(BF16)
    x_scr[...] = jnp.dot(gather_oh, h_bf, preferred_element_type=F32)  # (TE, H) f32

    # per-edge message msg[e,:] = x_src[e,:] @ W_e as H lane-dense VPU FMAs on the
    # (TE, H*H) layout (no (E,H,H) lane padding, no M=1 MXU pushes)
    msg = jnp.zeros((te, hid), F32)
    for i in range(hid):
        msg = msg + x_scr[:, i:i + 1] * w_scr[:, i * hid:(i + 1) * hid].astype(F32)

    # scatter-add messages to destination nodes (MXU) into the step accumulator
    agg_scr[...] += jnp.dot(scatter_oh, msg.astype(BF16), preferred_element_type=F32)

    # ---- end of step 0: turn accumulated in-degree into 1/deg (isolated nodes -> 0) ----
    @pl.when(jnp.logical_and(s == 0, t == n_tiles - 1))
    def _finalize_deg():
        d = deg_scr[...]
        deg_scr[...] = jnp.where(d > 0.0, 1.0 / jnp.maximum(d, 1.0), 0.0)

    # ---- end of mp step: mean, bias, ReLU, fused-K GRU update of node state ----
    @pl.when(t == n_tiles - 1)
    def _finish_step():
        m = jnp.maximum(agg_scr[...] * deg_scr[...] + conv_b_ref[...], 0.0)   # (N, H)
        h_prev = h_scr[...]
        m_bf = m.astype(BF16)
        hp_bf = h_prev.astype(BF16)
        mh_scr[:, 0:hid] = m_bf                       # fused K = [m | h] for r/z gates
        mh_scr[:, hid:2 * hid] = hp_bf
        mh = mh_scr[...]
        r = jax.nn.sigmoid(jnp.dot(mh, gru_wrz_ref[0], preferred_element_type=F32)
                           + gru_brz_ref[0])
        z = jax.nn.sigmoid(jnp.dot(mh, gru_wrz_ref[1], preferred_element_type=F32)
                           + gru_brz_ref[1])
        gi_n = jnp.dot(m_bf, gru_wni_ref[...], preferred_element_type=F32) + gru_bni_ref[...]
        gh_n = jnp.dot(hp_bf, gru_wnh_ref[...], preferred_element_type=F32) + gru_bnh_ref[...]
        n_g = jnp.tanh(gi_n + r * gh_n)
        h_scr[...] = (1.0 - z) * n_g + z * h_prev

    # ---- Set2Set(hid, n_iters=3, n_layers=1) at the very last grid point ----
    @pl.when(jnp.logical_and(s == mp_steps - 1, t == n_tiles - 1))
    def _set2set():
        feat = h_scr[...]                                              # (N, H) f32
        feat_ref[...] = feat
        node_id = jax.lax.broadcasted_iota(jnp.int32, (n_pad, 1), 0)
        valid = node_id < n_real

        def body(_, carry):
            q, ro, lh, lc = carry                                      # each (1, H) f32
            xq_scr[:, 0:hid] = q.astype(BF16)          # fused K = [q | readout | h]
            xq_scr[:, hid:2 * hid] = ro.astype(BF16)
            xq_scr[:, 2 * hid:3 * hid] = lh.astype(BF16)
            x = xq_scr[...]

            def gate(g):
                return jnp.dot(x, lstm_w_ref[g], preferred_element_type=F32) + lstm_b_ref[g]

            i_g = jax.nn.sigmoid(gate(0))
            f_g = jax.nn.sigmoid(gate(1))
            g_g = jnp.tanh(gate(2))
            o_g = jax.nn.sigmoid(gate(3))
            c_new = f_g * lc + i_g * g_g
            h_new = o_g * jnp.tanh(c_new)                              # (1, H) == new q

            e = jnp.sum(feat * h_new, axis=-1, keepdims=True)          # (N, 1)
            e = jnp.where(valid, e, -1e30)           # mask padded nodes from the softmax
            e = e - jnp.max(e, axis=0, keepdims=True)
            ex = jnp.exp(e)
            alpha = ex / jnp.sum(ex, axis=0, keepdims=True)            # exact denominator
            ro_new = jnp.sum(feat * alpha, axis=0, keepdims=True)      # (1, H)
            return (h_new, ro_new, h_new, c_new)

        zeros = jnp.zeros((1, hid), F32)
        q, ro, _, _ = jax.lax.fori_loop(0, s2s_iters, body,
                                        (zeros, zeros, zeros, zeros), unroll=True)
        qstar_ref[:, 0:hid] = q                       # single lane-dense (1, 2H) row
        qstar_ref[:, hid:2 * hid] = ro


# --------------------------------------------------------------------------
# Parameters (deterministic synthetic init).  Matmul weights are (in, out) bf16,
# biases f32.  GRU order [r, z, n]: r/z weights fused over K=[x|h] with b_ih+b_hh
# summed; n gate kept split (r multiplies the hidden part).  Set2Set LSTM order
# [i, f, g, o], weights fused over K=[q|readout|h], biases summed.
# --------------------------------------------------------------------------
def init_params(key, in_dim, hid):
    keys = jax.random.split(key, 15)

    def w(k, shape, scale=0.1, dtype=BF16):
        return (scale * jax.random.normal(k, shape)).astype(dtype)

    return dict(
        lin0_w=w(keys[0], (in_dim, hid)),
        lin0_b=w(keys[1], (1, hid), dtype=F32),
        edge_w1=w(keys[2], (5, 128)),
        edge_b1=w(keys[3], (1, 128), dtype=F32),
        edge_w2=w(keys[4], (128, hid * hid), scale=0.01),
        edge_b2=w(keys[5], (1, hid * hid), scale=0.01, dtype=F32),
        conv_bias=w(keys[6], (1, hid), dtype=F32),
        gru_wrz=w(keys[7], (2, 2 * hid, hid)),
        gru_brz=w(keys[8], (2, 1, hid), dtype=F32),
        gru_wn_i=w(keys[9], (hid, hid)),
        gru_wn_h=w(keys[10], (hid, hid)),
        gru_bn_i=w(keys[11], (1, hid), dtype=F32),
        gru_bn_h=w(keys[12], (1, hid), dtype=F32),
        lstm_w=w(keys[13], (4, 3 * hid, hid)),
        lstm_b=w(keys[14], (4, 1, hid), dtype=F32),
    )


# --------------------------------------------------------------------------
# Full forward pass (mirrors NNConvEncoder.forward); single-graph batch.
# --------------------------------------------------------------------------
def nnconv_encoder_forward(params, nfeat, efeat, src, dst, num_nodes, hid):
    mp_steps, s2s_iters = 3, 3
    n_edges = src.shape[0]
    in_dim = nfeat.shape[1]
    e_dim = efeat.shape[1]

    n_pad = _round_up(num_nodes, 8)
    te = 512 if n_edges >= 512 else _round_up(max(n_edges, 8), 8)
    e_pad = _round_up(n_edges, te)
    n_tiles = e_pad // te

    # pad nodes/edges; padded edges point at dst == n_pad (out of range -> masked out)
    nfeat_p = jnp.zeros((n_pad, in_dim), BF16).at[:num_nodes].set(nfeat.astype(BF16))
    efeat_p = jnp.zeros((e_pad, e_dim), BF16).at[:n_edges].set(efeat.astype(BF16))
    src_p = jnp.zeros((e_pad, 1), jnp.int32).at[:n_edges, 0].set(src.astype(jnp.int32))
    dst_p = jnp.full((1, e_pad), n_pad, jnp.int32).at[0, :n_edges].set(dst.astype(jnp.int32))

    kernel = functools.partial(
        _encoder_kernel, n_pad=n_pad, n_real=num_nodes, te=te, hid=hid,
        mp_steps=mp_steps, s2s_iters=s2s_iters)

    c2 = lambda s, t: (0, 0)
    c3 = lambda s, t: (0, 0, 0)
    in_specs = [
        pl.BlockSpec((n_pad, in_dim), c2),                         # nfeat
        pl.BlockSpec(params["lin0_w"].shape, c2),
        pl.BlockSpec(params["lin0_b"].shape, c2),
        pl.BlockSpec((te, e_dim), lambda s, t: (t, 0)),            # efeat tile
        pl.BlockSpec((te, 1), lambda s, t: (t, 0)),                # src tile
        pl.BlockSpec((1, te), lambda s, t: (0, t)),                # dst tile (lane-dense)
        pl.BlockSpec(params["edge_w1"].shape, c2),
        pl.BlockSpec(params["edge_b1"].shape, c2),
        pl.BlockSpec(params["edge_w2"].shape, c2),
        pl.BlockSpec(params["edge_b2"].shape, c2),
        pl.BlockSpec(params["conv_bias"].shape, c2),
        pl.BlockSpec(params["gru_wrz"].shape, c3),
        pl.BlockSpec(params["gru_brz"].shape, c3),
        pl.BlockSpec(params["gru_wn_i"].shape, c2),
        pl.BlockSpec(params["gru_wn_h"].shape, c2),
        pl.BlockSpec(params["gru_bn_i"].shape, c2),
        pl.BlockSpec(params["gru_bn_h"].shape, c2),
        pl.BlockSpec(params["lstm_w"].shape, c3),
        pl.BlockSpec(params["lstm_b"].shape, c3),
    ]
    out_specs = (pl.BlockSpec((1, 2 * hid), c2),
                 pl.BlockSpec((n_pad, hid), c2))
    scratch = [
        pltpu.VMEM((n_pad, hid), F32),        # h_scr: node state across the grid
        pltpu.VMEM((n_pad, hid), F32),        # agg_scr: per-step message accumulator
        pltpu.VMEM((n_pad, 1), F32),          # deg_scr: in-degree -> 1/deg
        pltpu.VMEM((te, hid * hid), BF16),    # w_scr: per-tile edge weight matrices
        pltpu.VMEM((te, hid), F32),           # x_scr: gathered source features
        pltpu.VMEM((n_pad, 2 * hid), BF16),   # mh_scr: fused [m|h] GRU input
        pltpu.VMEM((1, 3 * hid), BF16),       # xq_scr: fused [q|readout|h] LSTM input
    ]

    qstar, feat = pl.pallas_call(
        kernel,
        out_shape=(jax.ShapeDtypeStruct((1, 2 * hid), F32),
                   jax.ShapeDtypeStruct((n_pad, hid), F32)),
        grid=(mp_steps, n_tiles),
        in_specs=in_specs,
        out_specs=out_specs,
        scratch_shapes=scratch,
        compiler_params=pltpu.CompilerParams(
            dimension_semantics=("arbitrary", "arbitrary"),
            vmem_limit_bytes=64 * 1024 * 1024),
    )(nfeat_p, params["lin0_w"], params["lin0_b"],
      efeat_p, src_p, dst_p,
      params["edge_w1"], params["edge_b1"], params["edge_w2"], params["edge_b2"],
      params["conv_bias"],
      params["gru_wrz"], params["gru_brz"],
      params["gru_wn_i"], params["gru_wn_h"], params["gru_bn_i"], params["gru_bn_h"],
      params["lstm_w"], params["lstm_b"])

    return qstar, feat[:num_nodes]


if __name__ == "__main__":
    key = jax.random.PRNGKey(0)
    N, E, IN_DIM, HID = 8, 16, 4, 32          # edge feature dim fixed to 5 by the module
    k1, k2, k3, k4, kp = jax.random.split(key, 5)

    nfeat = jax.random.normal(k1, (N, IN_DIM), dtype=F32)
    efeat = jax.random.normal(k2, (E, 5), dtype=F32)
    src = jax.random.randint(k3, (E,), 0, N)
    dst = jax.random.randint(k4, (E,), 0, N)

    params = init_params(kp, IN_DIM, HID)

    fwd = jax.jit(functools.partial(nnconv_encoder_forward, num_nodes=N, hid=HID))
    pooled, feat = fwd(params, nfeat, efeat, src, dst)
    jax.block_until_ready((pooled, feat))

    assert pooled.shape == (1, 2 * HID)
    assert feat.shape == (N, HID)
    assert jnp.all(jnp.isfinite(pooled)) and jnp.all(jnp.isfinite(feat))
    print("KERNEL_OK")
</pallas_src>

<mosaic_0001>
module attributes {stable_mosaic.version = 11 : i64} {
  func.func @_encoder_kernel(%arg0: i32, %arg1: i32, %arg2: memref<8x4xbf16, #tpu.memory_space<vmem>>, %arg3: memref<4x32xbf16, #tpu.memory_space<vmem>>, %arg4: memref<1x32xf32, #tpu.memory_space<vmem>>, %arg5: memref<16x5xbf16, #tpu.memory_space<vmem>>, %arg6: memref<16x1xi32, #tpu.memory_space<vmem>>, %arg7: memref<1x16xi32, #tpu.memory_space<vmem>>, %arg8: memref<5x128xbf16, #tpu.memory_space<vmem>>, %arg9: memref<1x128xf32, #tpu.memory_space<vmem>>, %arg10: memref<128x1024xbf16, #tpu.memory_space<vmem>>, %arg11: memref<1x1024xf32, #tpu.memory_space<vmem>>, %arg12: memref<1x32xf32, #tpu.memory_space<vmem>>, %arg13: memref<2x64x32xbf16, #tpu.memory_space<vmem>>, %arg14: memref<2x1x32xf32, #tpu.memory_space<vmem>>, %arg15: memref<32x32xbf16, #tpu.memory_space<vmem>>, %arg16: memref<32x32xbf16, #tpu.memory_space<vmem>>, %arg17: memref<1x32xf32, #tpu.memory_space<vmem>>, %arg18: memref<1x32xf32, #tpu.memory_space<vmem>>, %arg19: memref<4x96x32xbf16, #tpu.memory_space<vmem>>, %arg20: memref<4x1x32xf32, #tpu.memory_space<vmem>>, %arg21: memref<1x64xf32, #tpu.memory_space<vmem>>, %arg22: memref<8x32xf32, #tpu.memory_space<vmem>>, %arg23: memref<8x32xf32, #tpu.memory_space<vmem>>, %arg24: memref<8x32xf32, #tpu.memory_space<vmem>>, %arg25: memref<8x1xf32, #tpu.memory_space<vmem>>, %arg26: memref<16x1024xbf16, #tpu.memory_space<vmem>>, %arg27: memref<16x32xf32, #tpu.memory_space<vmem>>, %arg28: memref<8x64xbf16, #tpu.memory_space<vmem>>, %arg29: memref<1x96xbf16, #tpu.memory_space<vmem>>) attributes {dimension_semantics = [#tpu.dimension_semantics<arbitrary>, #tpu.dimension_semantics<arbitrary>], iteration_bounds = array<i64: 3, 1>, scalar_prefetch = 0 : i64, scratch_operands = 7 : i64, tpu.core_type = #tpu.core_type<tc>, window_params = [{pipeline_mode = #tpu.pipeline_mode<synchronous>, transform_indices = @transform_0, window_bounds = array<i64: 8, 4>}, {pipeline_mode = #tpu.pipeline_mode<synchronous>, transform_indices = @transform_1, window_bounds = array<i64: 4, 32>}, {pipeline_mode = #tpu.pipeline_mode<synchronous>, transform_indices = @transform_2, window_bounds = array<i64: 1, 32>}, {transform_indices = @transform_3, window_bounds = array<i64: 16, 5>}, {transform_indices = @transform_4, window_bounds = array<i64: 16, 1>}, {transform_indices = @transform_5, window_bounds = array<i64: 1, 16>}, {pipeline_mode = #tpu.pipeline_mode<synchronous>, transform_indices = @transform_6, window_bounds = array<i64: 5, 128>}, {pipeline_mode = #tpu.pipeline_mode<synchronous>, transform_indices = @transform_7, window_bounds = array<i64: 1, 128>}, {pipeline_mode = #tpu.pipeline_mode<synchronous>, transform_indices = @transform_8, window_bounds = array<i64: 128, 1024>}, {pipeline_mode = #tpu.pipeline_mode<synchronous>, transform_indices = @transform_9, window_bounds = array<i64: 1, 1024>}, {pipeline_mode = #tpu.pipeline_mode<synchronous>, transform_indices = @transform_10, window_bounds = array<i64: 1, 32>}, {pipeline_mode = #tpu.pipeline_mode<synchronous>, transform_indices = @transform_11, window_bounds = array<i64: 2, 64, 32>}, {pipeline_mode = #tpu.pipeline_mode<synchronous>, transform_indices = @transform_12, window_bounds = array<i64: 2, 1, 32>}, {pipeline_mode = #tpu.pipeline_mode<synchronous>, transform_indices = @transform_13, window_bounds = array<i64: 32, 32>}, {pipeline_mode = #tpu.pipeline_mode<synchronous>, transform_indices = @transform_14, window_bounds = array<i64: 32, 32>}, {pipeline_mode = #tpu.pipeline_mode<synchronous>, transform_indices = @transform_15, window_bounds = array<i64: 1, 32>}, {pipeline_mode = #tpu.pipeline_mode<synchronous>, transform_indices = @transform_16, window_bounds = array<i64: 1, 32>}, {pipeline_mode = #tpu.pipeline_mode<synchronous>, transform_indices = @transform_17, window_bounds = array<i64: 4, 96, 32>}, {pipeline_mode = #tpu.pipeline_mode<synchronous>, transform_indices = @transform_18, window_bounds = array<i64: 4, 1, 32>}, {pipeline_mode = #tpu.pipeline_mode<synchronous>, transform_indices = @transform_19, window_bounds = array<i64: 1, 64>}, {pipeline_mode = #tpu.pipeline_mode<synchronous>, transform_indices = @transform_20, window_bounds = array<i64: 8, 32>}]} {
    %c0_i32 = arith.constant 0 : i32
    %0 = arith.cmpi eq, %arg0, %c0_i32 : i32
    %c0_i32_0 = arith.constant 0 : i32
    %1 = arith.cmpi eq, %arg1, %c0_i32_0 : i32
    %2 = arith.andi %0, %1 : i1
    %3 = arith.extui %2 : i1 to i32
    %c0_i32_1 = arith.constant 0 : i32
    %4 = arith.cmpi ne, %3, %c0_i32_1 : i32
    scf.if %4 {
      %c0_107 = arith.constant 0 : index
      %c0_108 = arith.constant 0 : index
      %256 = vector.load %arg2[%c0_107, %c0_108] : memref<8x4xbf16, #tpu.memory_space<vmem>>, vector<8x4xbf16>
      %c0_109 = arith.constant 0 : index
      %c0_110 = arith.constant 0 : index
      %257 = vector.load %arg3[%c0_109, %c0_110] : memref<4x32xbf16, #tpu.memory_space<vmem>>, vector<4x32xbf16>
      %cst_111 = arith.constant dense<0.000000e+00> : vector<8x32xf32>
      %258 = tpu.matmul %256, %257, %cst_111 {dimension_numbers = #tpu.dot_dimension_numbers<[1], [0], [0], [1], [0, 0, 1, 1], [], []>} : vector<8x4xbf16>, vector<4x32xbf16>, vector<8x32xf32> -> vector<8x32xf32>
      %c0_112 = arith.constant 0 : index
      %c0_113 = arith.constant 0 : index
      %259 = vector.load %arg4[%c0_112, %c0_113] : memref<1x32xf32, #tpu.memory_space<vmem>>, vector<1x32xf32>
      %260 = vector.broadcast %259 : vector<1x32xf32> to vector<8x32xf32>
      %261 = arith.addf %258, %260 : vector<8x32xf32>
      %cst_114 = arith.constant 0.000000e+00 : f32
      %262 = vector.broadcast %cst_114 : f32 to vector<8x32xf32>
      %263 = arith.maximumf %261, %262 : vector<8x32xf32>
      %c0_115 = arith.constant 0 : index
      %c0_116 = arith.constant 0 : index
      %264 = vector.load %arg23[%c0_115, %c0_116] : memref<8x32xf32, #tpu.memory_space<vmem>>, vector<8x32xf32>
      tpu.vector_store %arg23[%c0_115, %c0_116], %263 {strides = array<i32>} : memref<8x32xf32, #tpu.memory_space<vmem>>, vector<8x32xf32>,
      %cst_117 = arith.constant 0.000000e+00 : f32
      %265 = vector.broadcast %cst_117 : f32 to vector<8x1xf32>
      %c0_118 = arith.constant 0 : index
      %c0_119 = arith.constant 0 : index
      %266 = vector.load %arg25[%c0_118, %c0_119] : memref<8x1xf32, #tpu.memory_space<vmem>>, vector<8x1xf32>
      tpu.vector_store %arg25[%c0_118, %c0_119], %265 {strides = array<i32>} : memref<8x1xf32, #tpu.memory_space<vmem>>, vector<8x1xf32>,
    } else {
    }
    %c0_i32_2 = arith.constant 0 : i32
    %5 = arith.cmpi eq, %arg1, %c0_i32_2 : i32
    %6 = arith.extui %5 : i1 to i32
    %c0_i32_3 = arith.constant 0 : i32
    %7 = arith.cmpi ne, %6, %c0_i32_3 : i32
    scf.if %7 {
      %cst_107 = arith.constant 0.000000e+00 : f32
      %256 = vector.broadcast %cst_107 : f32 to vector<8x32xf32>
      %c0_108 = arith.constant 0 : index
      %c0_109 = arith.constant 0 : index
      %257 = vector.load %arg24[%c0_108, %c0_109] : memref<8x32xf32, #tpu.memory_space<vmem>>, vector<8x32xf32>
      tpu.vector_store %arg24[%c0_108, %c0_109], %256 {strides = array<i32>} : memref<8x32xf32, #tpu.memory_space<vmem>>, vector<8x32xf32>,
    } else {
    }
    %c0 = arith.constant 0 : index
    %c0_4 = arith.constant 0 : index
    %8 = vector.load %arg6[%c0, %c0_4] : memref<16x1xi32, #tpu.memory_space<vmem>>, vector<16x1xi32>
    %c0_5 = arith.constant 0 : index
    %c0_6 = arith.constant 0 : index
    %9 = vector.load %arg7[%c0_5, %c0_6] : memref<1x16xi32, #tpu.memory_space<vmem>>, vector<1x16xi32>
    %10 = tpu.iota {dimensions = array<i32: 1>} : vector<16x8xi32>
    %11 = vector.broadcast %8 : vector<16x1xi32> to vector<16x8xi32>
    %12 = arith.cmpi eq, %10, %11 : vector<16x8xi32>
    %13 = arith.extui %12 : vector<16x8xi1> to vector<16x8xi32>
    %14 = arith.sitofp %13 : vector<16x8xi32> to vector<16x8xf32>
    %15 = arith.truncf %14 : vector<16x8xf32> to vector<16x8xbf16>
    %16 = tpu.iota {dimensions = array<i32: 0>} : vector<8x16xi32>
    %17 = vector.broadcast %9 : vector<1x16xi32> to vector<8x16xi32>
    %18 = arith.cmpi eq, %16, %17 : vector<8x16xi32>
    %19 = arith.extui %18 : vector<8x16xi1> to vector<8x16xi32>
    %20 = arith.sitofp %19 : vector<8x16xi32> to vector<8x16xf32>
    %21 = arith.truncf %20 : vector<8x16xf32> to vector<8x16xbf16>
    %c0_i32_7 = arith.constant 0 : i32
    %22 = arith.cmpi eq, %arg0, %c0_i32_7 : i32
    %23 = arith.extui %22 : i1 to i32
    %c0_i32_8 = arith.constant 0 : i32
    %24 = arith.cmpi ne, %23, %c0_i32_8 : i32
    scf.if %24 {
      %c0_107 = arith.constant 0 : index
      %c0_108 = arith.constant 0 : index
      %256 = vector.load %arg25[%c0_107, %c0_108] : memref<8x1xf32, #tpu.memory_space<vmem>>, vector<8x1xf32>
      %257 = arith.extf %21 : vector<8x16xbf16> to vector<8x16xf32>
      %cst_109 = arith.constant dense<0.000000e+00> : vector<8xf32>
      %258 = vector.multi_reduction <add>, %257, %cst_109 [1] : vector<8x16xf32> to vector<8xf32>
      %259 = vector.shape_cast %258 : vector<8xf32> to vector<8x1xf32>
      %260 = arith.addf %256, %259 : vector<8x1xf32>
      %c0_110 = arith.constant 0 : index
      %c0_111 = arith.constant 0 : index
      %261 = vector.load %arg25[%c0_110, %c0_111] : memref<8x1xf32, #tpu.memory_space<vmem>>, vector<8x1xf32>
      tpu.vector_store %arg25[%c0_110, %c0_111], %260 {strides = array<i32>} : memref<8x1xf32, #tpu.memory_space<vmem>>, vector<8x1xf32>,
    } else {
    }
    %c0_9 = arith.constant 0 : index
    %c0_10 = arith.constant 0 : index
    %25 = vector.load %arg5[%c0_9, %c0_10] : memref<16x5xbf16, #tpu.memory_space<vmem>>, vector<16x5xbf16>
    %c0_11 = arith.constant 0 : index
    %c0_12 = arith.constant 0 : index
    %26 = vector.load %arg8[%c0_11, %c0_12] : memref<5x128xbf16, #tpu.memory_space<vmem>>, vector<5x128xbf16>
    %cst = arith.constant dense<0.000000e+00> : vector<16x128xf32>
    %27 = tpu.matmul %25, %26, %cst {dimension_numbers = #tpu.dot_dimension_numbers<[1], [0], [0], [1], [0, 0, 1, 1], [], []>} : vector<16x5xbf16>, vector<5x128xbf16>, vector<16x128xf32> -> vector<16x128xf32>
    %c0_13 = arith.constant 0 : index
    %c0_14 = arith.constant 0 : index
    %28 = vector.load %arg9[%c0_13, %c0_14] : memref<1x128xf32, #tpu.memory_space<vmem>>, vector<1x128xf32>
    %29 = vector.broadcast %28 : vector<1x128xf32> to vector<16x128xf32>
    %30 = arith.addf %27, %29 : vector<16x128xf32>
    %cst_15 = arith.constant 0.000000e+00 : f32
    %31 = vector.broadcast %cst_15 : f32 to vector<16x128xf32>
    %32 = arith.maximumf %30, %31 : vector<16x128xf32>
    %33 = arith.truncf %32 : vector<16x128xf32> to vector<16x128xbf16>
    %c0_16 = arith.constant 0 : index
    %c0_17 = arith.constant 0 : index
    %34 = vector.load %arg10[%c0_16, %c0_17] : memref<128x1024xbf16, #tpu.memory_space<vmem>>, vector<128x1024xbf16>
    %cst_18 = arith.constant dense<0.000000e+00> : vector<16x1024xf32>
    %35 = tpu.matmul %33, %34, %cst_18 {dimension_numbers = #tpu.dot_dimension_numbers<[1], [0], [0], [1], [0, 0, 1, 1], [], []>} : vector<16x128xbf16>, vector<128x1024xbf16>, vector<16x1024xf32> -> vector<16x1024xf32>
    %c0_19 = arith.constant 0 : index
    %c0_20 = arith.constant 0 : index
    %36 = vector.load %arg11[%c0_19, %c0_20] : memref<1x1024xf32, #tpu.memory_space<vmem>>, vector<1x1024xf32>
    %37 = vector.broadcast %36 : vector<1x1024xf32> to vector<16x1024xf32>
    %38 = arith.addf %35, %37 : vector<16x1024xf32>
    %39 = arith.truncf %38 : vector<16x1024xf32> to vector<16x1024xbf16>
    %c0_21 = arith.constant 0 : index
    %c0_22 = arith.constant 0 : index
    %40 = vector.load %arg26[%c0_21, %c0_22] : memref<16x1024xbf16, #tpu.memory_space<vmem>>, vector<16x1024xbf16>
    tpu.vector_store %arg26[%c0_21, %c0_22], %39 {strides = array<i32>} : memref<16x1024xbf16, #tpu.memory_space<vmem>>, vector<16x1024xbf16>,
    %c0_23 = arith.constant 0 : index
    %c0_24 = arith.constant 0 : index
    %41 = vector.load %arg23[%c0_23, %c0_24] : memref<8x32xf32, #tpu.memory_space<vmem>>, vector<8x32xf32>
    %42 = arith.truncf %41 : vector<8x32xf32> to vector<8x32xbf16>
    %cst_25 = arith.constant dense<0.000000e+00> : vector<16x32xf32>
    %43 = tpu.matmul %15, %42, %cst_25 {dimension_numbers = #tpu.dot_dimension_numbers<[1], [0], [0], [1], [0, 0, 1, 1], [], []>} : vector<16x8xbf16>, vector<8x32xbf16>, vector<16x32xf32> -> vector<16x32xf32>
    %c0_26 = arith.constant 0 : index
    %c0_27 = arith.constant 0 : index
    %44 = vector.load %arg27[%c0_26, %c0_27] : memref<16x32xf32, #tpu.memory_space<vmem>>, vector<16x32xf32>
    tpu.vector_store %arg27[%c0_26, %c0_27], %43 {strides = array<i32>} : memref<16x32xf32, #tpu.memory_space<vmem>>, vector<16x32xf32>,
    %cst_28 = arith.constant 0.000000e+00 : f32
    %45 = vector.broadcast %cst_28 : f32 to vector<16x32xf32>
    %c0_29 = arith.constant 0 : index
    %c0_30 = arith.constant 0 : index
    %46 = vector.load %arg27[%c0_29, %c0_30] : memref<16x32xf32, #tpu.memory_space<vmem>>, vector<16x1xf32>
    %c0_31 = arith.constant 0 : index
    %c0_32 = arith.constant 0 : index
    %47 = vector.load %arg26[%c0_31, %c0_32] : memref<16x1024xbf16, #tpu.memory_space<vmem>>, vector<16x32xbf16>
    %48 = arith.extf %47 : vector<16x32xbf16> to vector<16x32xf32>
    %49 = vector.broadcast %46 : vector<16x1xf32> to vector<16x32xf32>
    %50 = arith.mulf %49, %48 : vector<16x32xf32>
    %51 = arith.addf %45, %50 : vector<16x32xf32>
    %c0_33 = arith.constant 0 : index
    %c1 = arith.constant 1 : index
    %52 = vector.load %arg27[%c0_33, %c1] : memref<16x32xf32, #tpu.memory_space<vmem>>, vector<16x1xf32>
    %c0_34 = arith.constant 0 : index
    %c32 = arith.constant 32 : index
    %53 = vector.load %arg26[%c0_34, %c32] : memref<16x1024xbf16, #tpu.memory_space<vmem>>, vector<16x32xbf16>
    %54 = arith.extf %53 : vector<16x32xbf16> to vector<16x32xf32>
    %55 = vector.broadcast %52 : vector<16x1xf32> to vector<16x32xf32>
    %56 = arith.mulf %55, %54 : vector<16x32xf32>
    %57 = arith.addf %51, %56 : vector<16x32xf32>
    %c0_35 = arith.constant 0 : index
    %c2 = arith.constant 2 : index
    %58 = vector.load %arg27[%c0_35, %c2] : memref<16x32xf32, #tpu.memory_space<vmem>>, vector<16x1xf32>
    %c0_36 = arith.constant 0 : index
    %c64 = arith.constant 64 : index
    %59 = vector.load %arg26[%c0_36, %c64] : memref<16x1024xbf16, #tpu.memory_space<vmem>>, vector<16x32xbf16>
    %60 = arith.extf %59 : vector<16x32xbf16> to vector<16x32xf32>
    %61 = vector.broadcast %58 : vector<16x1xf32> to vector<16x32xf32>
    %62 = arith.mulf %61, %60 : vector<16x32xf32>
    %63 = arith.addf %57, %62 : vector<16x32xf32>
    %c0_37 = arith.constant 0 : index
    %c3 = arith.constant 3 : index
    %64 = vector.load %arg27[%c0_37, %c3] : memref<16x32xf32, #tpu.memory_space<vmem>>, vector<16x1xf32>
    %c0_38 = arith.constant 0 : index
    %c96 = arith.constant 96 : index
    %65 = vector.load %arg26[%c0_38, %c96] : memref<16x1024xbf16, #tpu.memory_space<vmem>>, vector<16x32xbf16>
    %66 = arith.extf %65 : vector<16x32xbf16> to vector<16x32xf32>
    %67 = vector.broadcast %64 : vector<16x1xf32> to vector<16x32xf32>
    %68 = arith.mulf %67, %66 : vector<16x32xf32>
    %69 = arith.addf %63, %68 : vector<16x32xf32>
    %c0_39 = arith.constant 0 : index
    %c4 = arith.constant 4 : index
    %70 = vector.load %arg27[%c0_39, %c4] : memref<16x32xf32, #tpu.memory_space<vmem>>, vector<16x1xf32>
    %c0_40 = arith.constant 0 : index
    %c128 = arith.constant 128 : index
    %71 = vector.load %arg26[%c0_40, %c128] : memref<16x1024xbf16, #tpu.memory_space<vmem>>, vector<16x32xbf16>
    %72 = arith.extf %71 : vector<16x32xbf16> to vector<16x32xf32>
    %73 = vector.broadcast %70 : vector<16x1xf32> to vector<16x32xf32>
    %74 = arith.mulf %73, %72 : vector<16x32xf32>
    %75 = arith.addf %69, %74 : vector<16x32xf32>
    %c0_41 = arith.constant 0 : index
    %c5 = arith.constant 5 : index
    %76 = vector.load %arg27[%c0_41, %c5] : memref<16x32xf32, #tpu.memory_space<vmem>>, vector<16x1xf32>
    %c0_42 = arith.constant 0 : index
    %c160 = arith.constant 160 : index
    %77 = vector.load %arg26[%c0_42, %c160] : memref<16x1024xbf16, #tpu.memory_space<vmem>>, vector<16x32xbf16>
    %78 = arith.extf %77 : vector<16x32xbf16> to vector<16x32xf32>
    %79 = vector.broadcast %76 : vector<16x1xf32> to vector<16x32xf32>
    %80 = arith.mulf %79, %78 : vector<16x32xf32>
    %81 = arith.addf %75, %80 : vector<16x32xf32>
    %c0_43 = arith.constant 0 : index
    %c6 = arith.constant 6 : index
    %82 = vector.load %arg27[%c0_43, %c6] : memref<16x32xf32, #tpu.memory_space<vmem>>, vector<16x1xf32>
    %c0_44 = arith.constant 0 : index
    %c192 = arith.constant 192 : index
    %83 = vector.load %arg26[%c0_44, %c192] : memref<16x1024xbf16, #tpu.memory_space<vmem>>, vector<16x32xbf16>
    %84 = arith.extf %83 : vector<16x32xbf16> to vector<16x32xf32>
    %85 = vector.broadcast %82 : vector<16x1xf32> to vector<16x32xf32>
    %86 = arith.mulf %85, %84 : vector<16x32xf32>
    %87 = arith.addf %81, %86 : vector<16x32xf32>
    %c0_45 = arith.constant 0 : index
    %c7 = arith.constant 7 : index
    %88 = vector.load %arg27[%c0_45, %c7] : memref<16x32xf32, #tpu.memory_space<vmem>>, vector<16x1xf32>
    %c0_46 = arith.constant 0 : index
    %c224 = arith.constant 224 : index
    %89 = vector.load %arg26[%c0_46, %c224] : memref<16x1024xbf16, #tpu.memory_space<vmem>>, vector<16x32xbf16>
    %90 = arith.extf %89 : vector<16x32xbf16> to vector<16x32xf32>
    %91 = vector.broadcast %88 : vector<16x1xf32> to vector<16x32xf32>
    %92 = arith.mulf %91, %90 : vector<16x32xf32>
    %93 = arith.addf %87, %92 : vector<16x32xf32>
    %c0_47 = arith.constant 0 : index
    %c8 = arith.constant 8 : index
    %94 = vector.load %arg27[%c0_47, %c8] : memref<16x32xf32, #tpu.memory_space<vmem>>, vector<16x1xf32>
    %c0_48 = arith.constant 0 : index
    %c256 = arith.constant 256 : index
    %95 = vector.load %arg26[%c0_48, %c256] : memref<16x1024xbf16, #tpu.memory_space<vmem>>, vector<16x32xbf16>
    %96 = arith.extf %95 : vector<16x32xbf16> to vector<16x32xf32>
    %97 = vector.broadcast %94 : vector<16x1xf32> to vector<16x32xf32>
    %98 = arith.mulf %97, %96 : vector<16x32xf32>
    %99 = arith.addf %93, %98 : vector<16x32xf32>
    %c0_49 = arith.constant 0 : index
    %c9 = arith.constant 9 : index
    %100 = vector.load %arg27[%c0_49, %c9] : memref<16x32xf32, #tpu.memory_space<vmem>>, vector<16x1xf32>
    %c0_50 = arith.constant 0 : index
    %c288 = arith.constant 288 : index
    %101 = vector.load %arg26[%c0_50, %c288] : memref<16x1024xbf16, #tpu.memory_space<vmem>>, vector<16x32xbf16>
    %102 = arith.extf %101 : vector<16x32xbf16> to vector<16x32xf32>
    %103 = vector.broadcast %100 : vector<16x1xf32> to vector<16x32xf32>
    %104 = arith.mulf %103, %102 : vector<16x32xf32>
    %105 = arith.addf %99, %104 : vector<16x32xf32>
    %c0_51 = arith.constant 0 : index
    %c10 = arith.constant 10 : index
    %106 = vector.load %arg27[%c0_51, %c10] : memref<16x32xf32, #tpu.memory_space<vmem>>, vector<16x1xf32>
    %c0_52 = arith.constant 0 : index
    %c320 = arith.constant 320 : index
    %107 = vector.load %arg26[%c0_52, %c320] : memref<16x1024xbf16, #tpu.memory_space<vmem>>, vector<16x32xbf16>
    %108 = arith.extf %107 : vector<16x32xbf16> to vector<16x32xf32>
    %109 = vector.broadcast %106 : vector<16x1xf32> to vector<16x32xf32>
    %110 = arith.mulf %109, %108 : vector<16x32xf32>
    %111 = arith.addf %105, %110 : vector<16x32xf32>
    %c0_53 = arith.constant 0 : index
    %c11 = arith.constant 11 : index
    %112 = vector.load %arg27[%c0_53, %c11] : memref<16x32xf32, #tpu.memory_space<vmem>>, vector<16x1xf32>
    %c0_54 = arith.constant 0 : index
    %c352 = arith.constant 352 : index
    %113 = vector.load %arg26[%c0_54, %c352] : memref<16x1024xbf16, #tpu.memory_space<vmem>>, vector<16x32xbf16>
    %114 = arith.extf %113 : vector<16x32xbf16> to vector<16x32xf32>
    %115 = vector.broadcast %112 : vector<16x1xf32> to vector<16x32xf32>
    %116 = arith.mulf %115, %114 : vector<16x32xf32>
    %117 = arith.addf %111, %116 : vector<16x32xf32>
    %c0_55 = arith.constant 0 : index
    %c12 = arith.constant 12 : index
    %118 = vector.load %arg27[%c0_55, %c12] : memref<16x32xf32, #tpu.memory_space<vmem>>, vector<16x1xf32>
    %c0_56 = arith.constant 0 : index
    %c384 = arith.constant 384 : index
    %119 = vector.load %arg26[%c0_56, %c384] : memref<16x1024xbf16, #tpu.memory_space<vmem>>, vector<16x32xbf16>
    %120 = arith.extf %119 : vector<16x32xbf16> to vector<16x32xf32>
    %121 = vector.broadcast %118 : vector<16x1xf32> to vector<16x32xf32>
    %122 = arith.mulf %121, %120 : vector<16x32xf32>
    %123 = arith.addf %117, %122 : vector<16x32xf32>
    %c0_57 = arith.constant 0 : index
    %c13 = arith.constant 13 : index
    %124 = vector.load %arg27[%c0_57, %c13] : memref<16x32xf32, #tpu.memory_space<vmem>>, vector<16x1xf32>
    %c0_58 = arith.constant 0 : index
    %c416 = arith.constant 416 : index
    %125 = vector.load %arg26[%c0_58, %c416] : memref<16x1024xbf16, #tpu.memory_space<vmem>>, vector<16x32xbf16>
    %126 = arith.extf %125 : vector<16x32xbf16> to vector<16x32xf32>
    %127 = vector.broadcast %124 : vector<16x1xf32> to vector<16x32xf32>
    %128 = arith.mulf %127, %126 : vector<16x32xf32>
    %129 = arith.addf %123, %128 : vector<16x32xf32>
    %c0_59 = arith.constant 0 : index
    %c14 = arith.constant 14 : index
    %130 = vector.load %arg27[%c0_59, %c14] : memref<16x32xf32, #tpu.memory_space<vmem>>, vector<16x1xf32>
    %c0_60 = arith.constant 0 : index
    %c448 = arith.constant 448 : index
    %131 = vector.load %arg26[%c0_60, %c448] : memref<16x1024xbf16, #tpu.memory_space<vmem>>, vector<16x32xbf16>
    %132 = arith.extf %131 : vector<16x32xbf16> to vector<16x32xf32>
    %133 = vector.broadcast %130 : vector<16x1xf32> to vector<16x32xf32>
    %134 = arith.mulf %133, %132 : vector<16x32xf32>
    %135 = arith.addf %129, %134 : vector<16x32xf32>
    %c0_61 = arith.constant 0 : index
    %c15 = arith.constant 15 : index
    %136 = vector.load %arg27[%c0_61, %c15] : memref<16x32xf32, #tpu.memory_space<vmem>>, vector<16x1xf32>
    %c0_62 = arith.constant 0 : index
    %c480 = arith.constant 480 : index
    %137 = vector.load %arg26[%c0_62, %c480] : memref<16x1024xbf16, #tpu.memory_space<vmem>>, vector<16x32xbf16>
    %138 = arith.extf %137 : vector<16x32xbf16> to vector<16x32xf32>
    %139 = vector.broadcast %136 : vector<16x1xf32> to vector<16x32xf32>
    %140 = arith.mulf %139, %138 : vector<16x32xf32>
    %141 = arith.addf %135, %140 : vector<16x32xf32>
    %c0_63 = arith.constant 0 : index
    %c16 = arith.constant 16 : index
    %142 = vector.load %arg27[%c0_63, %c16] : memref<16x32xf32, #tpu.memory_space<vmem>>, vector<16x1xf32>
    %c0_64 = arith.constant 0 : index
    %c512 = arith.constant 512 : index
    %143 = vector.load %arg26[%c0_64, %c512] : memref<16x1024xbf16, #tpu.memory_space<vmem>>, vector<16x32xbf16>
    %144 = arith.extf %143 : vector<16x32xbf16> to vector<16x32xf32>
    %145 = vector.broadcast %142 : vector<16x1xf32> to vector<16x32xf32>
    %146 = arith.mulf %145, %144 : vector<16x32xf32>
    %147 = arith.addf %141, %146 : vector<16x32xf32>
    %c0_65 = arith.constant 0 : index
    %c17 = arith.constant 17 : index
    %148 = vector.load %arg27[%c0_65, %c17] : memref<16x32xf32, #tpu.memory_space<vmem>>, vector<16x1xf32>
    %c0_66 = arith.constant 0 : index
    %c544 = arith.constant 544 : index
    %149 = vector.load %arg26[%c0_66, %c544] : memref<16x1024xbf16, #tpu.memory_space<vmem>>, vector<16x32xbf16>
    %150 = arith.extf %149 : vector<16x32xbf16> to vector<16x32xf32>
    %151 = vector.broadcast %148 : vector<16x1xf32> to vector<16x32xf32>
    %152 = arith.mulf %151, %150 : vector<16x32xf32>
    %153 = arith.addf %147, %152 : vector<16x32xf32>
    %c0_67 = arith.constant 0 : index
    %c18 = arith.constant 18 : index
    %154 = vector.load %arg27[%c0_67, %c18] : memref<16x32xf32, #tpu.memory_space<vmem>>, vector<16x1xf32>
    %c0_68 = arith.constant 0 : index
    %c576 = arith.constant 576 : index
    %155 = vector.load %arg26[%c0_68, %c576] : memref<16x1024xbf16, #tpu.memory_space<vmem>>, vector<16x32xbf16>
    %156 = arith.extf %155 : vector<16x32xbf16> to vector<16x32xf32>
    %157 = vector.broadcast %154 : vector<16x1xf32> to vector<16x32xf32>
    %158 = arith.mulf %157, %156 : vector<16x32xf32>
    %159 = arith.addf %153, %158 : vector<16x32xf32>
    %c0_69 = arith.constant 0 : index
    %c19 = arith.constant 19 : index
    %160 = vector.load %arg27[%c0_69, %c19] : memref<16x32xf32, #tpu.memory_space<vmem>>, vector<16x1xf32>
    %c0_70 = arith.constant 0 : index
    %c608 = arith.constant 608 : index
    %161 = vector.load %arg26[%c0_70, %c608] : memref<16x1024xbf16, #tpu.memory_space<vmem>>, vector<16x32xbf16>
    %162 = arith.extf %161 : vector<16x32xbf16> to vector<16x32xf32>
    %163 = vector.broadcast %160 : vector<16x1xf32> to vector<16x32xf32>
    %164 = arith.mulf %163, %162 : vector<16x32xf32>
    %165 = arith.addf %159, %164 : vector<16x32xf32>
    %c0_71 = arith.constant 0 : index
    %c20 = arith.constant 20 : index
    %166 = vector.load %arg27[%c0_71, %c20] : memref<16x32xf32, #tpu.memory_space<vmem>>, vector<16x1xf32>
    %c0_72 = arith.constant 0 : index
    %c640 = arith.constant 640 : index
    %167 = vector.load %arg26[%c0_72, %c640] : memref<16x1024xbf16, #tpu.memory_space<vmem>>, vector<16x32xbf16>
    %168 = arith.extf %167 : vector<16x32xbf16> to vector<16x32xf32>
    %169 = vector.broadcast %166 : vector<16x1xf32> to vector<16x32xf32>
    %170 = arith.mulf %169, %168 : vector<16x32xf32>
    %171 = arith.addf %165, %170 : vector<16x32xf32>
    %c0_73 = arith.constant 0 : index
    %c21 = arith.constant 21 : index
    %172 = vector.load %arg27[%c0_73, %c21] : memref<16x32xf32, #tpu.memory_space<vmem>>, vector<16x1xf32>
    %c0_74 = arith.constant 0 : index
    %c672 = arith.constant 672 : index
    %173 = vector.load %arg26[%c0_74, %c672] : memref<16x1024xbf16, #tpu.memory_space<vmem>>, vector<16x32xbf16>
    %174 = arith.extf %173 : vector<16x32xbf16> to vector<16x32xf32>
    %175 = vector.broadcast %172 : vector<16x1xf32> to vector<16x32xf32>
    %176 = arith.mulf %175, %174 : vector<16x32xf32>
    %177 = arith.addf %171, %176 : vector<16x32xf32>
    %c0_75 = arith.constant 0 : index
    %c22 = arith.constant 22 : index
    %178 = vector.load %arg27[%c0_75, %c22] : memref<16x32xf32, #tpu.memory_space<vmem>>, vector<16x1xf32>
    %c0_76 = arith.constant 0 : index
    %c704 = arith.constant 704 : index
    %179 = vector.load %arg26[%c0_76, %c704] : memref<16x1024xbf16, #tpu.memory_space<vmem>>, vector<16x32xbf16>
    %180 = arith.extf %179 : vector<16x32xbf16> to vector<16x32xf32>
    %181 = vector.broadcast %178 : vector<16x1xf32> to vector<16x32xf32>
    %182 = arith.mulf %181, %180 : vector<16x32xf32>
    %183 = arith.addf %177, %182 : vector<16x32xf32>
    %c0_77 = arith.constant 0 : index
    %c23 = arith.constant 23 : index
    %184 = vector.load %arg27[%c0_77, %c23] : memref<16x32xf32, #tpu.memory_space<vmem>>, vector<16x1xf32>
    %c0_78 = arith.constant 0 : index
    %c736 = arith.constant 736 : index
    %185 = vector.load %arg26[%c0_78, %c736] : memref<16x1024xbf16, #tpu.memory_space<vmem>>, vector<16x32xbf16>
    %186 = arith.extf %185 : vector<16x32xbf16> to vector<16x32xf32>
    %187 = vector.broadcast %184 : vector<16x1xf32> to vector<16x32xf32>
    %188 = arith.mulf %187, %186 : vector<16x32xf32>
    %189 = arith.addf %183, %188 : vector<16x32xf32>
    %c0_79 = arith.constant 0 : index
    %c24 = arith.constant 24 : index
    %190 = vector.load %arg27[%c0_79, %c24] : memref<16x32xf32, #tpu.memory_space<vmem>>, vector<16x1xf32>
    %c0_80 = arith.constant 0 : index
    %c768 = arith.constant 768 : index
    %191 = vector.load %arg26[%c0_80, %c768] : memref<16x1024xbf16, #tpu.memory_space<vmem>>, vector<16x32xbf16>
    %192 = arith.extf %191 : vector<16x32xbf16> to vector<16x32xf32>
    %193 = vector.broadcast %190 : vector<16x1xf32> to vector<16x32xf32>
    %194 = arith.mulf %193, %192 : vector<16x32xf32>
    %195 = arith.addf %189, %194 : vector<16x32xf32>
    %c0_81 = arith.constant 0 : index
    %c25 = arith.constant 25 : index
    %196 = vector.load %arg27[%c0_81, %c25] : memref<16x32xf32, #tpu.memory_space<vmem>>, vector<16x1xf32>
    %c0_82 = arith.constant 0 : index
    %c800 = arith.constant 800 : index
    %197 = vector.load %arg26[%c0_82, %c800] : memref<16x1024xbf16, #tpu.memory_space<vmem>>, vector<16x32xbf16>
    %198 = arith.extf %197 : vector<16x32xbf16> to vector<16x32xf32>
    %199 = vector.broadcast %196 : vector<16x1xf32> to vector<16x32xf32>
    %200 = arith.mulf %199, %198 : vector<16x32xf32>
    %201 = arith.addf %195, %200 : vector<16x32xf32>
    %c0_83 = arith.constant 0 : index
    %c26 = arith.constant 26 : index
    %202 = vector.load %arg27[%c0_83, %c26] : memref<16x32xf32, #tpu.memory_space<vmem>>, vector<16x1xf32>
    %c0_84 = arith.constant 0 : index
    %c832 = arith.constant 832 : index
    %203 = vector.load %arg26[%c0_84, %c832] : memref<16x1024xbf16, #tpu.memory_space<vmem>>, vector<16x32xbf16>
    %204 = arith.extf %203 : vector<16x32xbf16> to vector<16x32xf32>
    %205 = vector.broadcast %202 : vector<16x1xf32> to vector<16x32xf32>
    %206 = arith.mulf %205, %204 : vector<16x32xf32>
    %207 = arith.addf %201, %206 : vector<16x32xf32>
    %c0_85 = arith.constant 0 : index
    %c27 = arith.constant 27 : index
    %208 = vector.load %arg27[%c0_85, %c27] : memref<16x32xf32, #tpu.memory_space<vmem>>, vector<16x1xf32>
    %c0_86 = arith.constant 0 : index
    %c864 = arith.constant 864 : index
    %209 = vector.load %arg26[%c0_86, %c864] : memref<16x1024xbf16, #tpu.memory_space<vmem>>, vector<16x32xbf16>
    %210 = arith.extf %209 : vector<16x32xbf16> to vector<16x32xf32>
    %211 = vector.broadcast %208 : vector<16x1xf32> to vector<16x32xf32>
    %212 = arith.mulf %211, %210 : vector<16x32xf32>
    %213 = arith.addf %207, %212 : vector<16x32xf32>
    %c0_87 = arith.constant 0 : index
    %c28 = arith.constant 28 : index
    %214 = vector.load %arg27[%c0_87, %c28] : memref<16x32xf32, #tpu.memory_space<vmem>>, vector<16x1xf32>
    %c0_88 = arith.constant 0 : index
    %c896 = arith.constant 896 : index
    %215 = vector.load %arg26[%c0_88, %c896] : memref<16x1024xbf16, #tpu.memory_space<vmem>>, vector<16x32xbf16>
    %216 = arith.extf %215 : vector<16x32xbf16> to vector<16x32xf32>
    %217 = vector.broadcast %214 : vector<16x1xf32> to vector<16x32xf32>
    %218 = arith.mulf %217, %216 : vector<16x32xf32>
    %219 = arith.addf %213, %218 : vector<16x32xf32>
    %c0_89 = arith.constant 0 : index
    %c29 = arith.constant 29 : index
    %220 = vector.load %arg27[%c0_89, %c29] : memref<16x32xf32, #tpu.memory_space<vmem>>, vector<16x1xf32>
    %c0_90 = arith.constant 0 : index
    %c928 = arith.constant 928 : index
    %221 = vector.load %arg26[%c0_90, %c928] : memref<16x1024xbf16, #tpu.memory_space<vmem>>, vector<16x32xbf16>
    %222 = arith.extf %221 : vector<16x32xbf16> to vector<16x32xf32>
    %223 = vector.broadcast %220 : vector<16x1xf32> to vector<16x32xf32>
    %224 = arith.mulf %223, %222 : vector<16x32xf32>
    %225 = arith.addf %219, %224 : vector<16x32xf32>
    %c0_91 = arith.constant 0 : index
    %c30 = arith.constant 30 : index
    %226 = vector.load %arg27[%c0_91, %c30] : memref<16x32xf32, #tpu.memory_space<vmem>>, vector<16x1xf32>
    %c0_92 = arith.constant 0 : index
    %c960 = arith.constant 960 : index
    %227 = vector.load %arg26[%c0_92, %c960] : memref<16x1024xbf16, #tpu.memory_space<vmem>>, vector<16x32xbf16>
    %228 = arith.extf %227 : vector<16x32xbf16> to vector<16x32xf32>
    %229 = vector.broadcast %226 : vector<16x1xf32> to vector<16x32xf32>
    %230 = arith.mulf %229, %228 : vector<16x32xf32>
    %231 = arith.addf %225, %230 : vector<16x32xf32>
    %c0_93 = arith.constant 0 : index
    %c31 = arith.constant 31 : index
    %232 = vector.load %arg27[%c0_93, %c31] : memref<16x32xf32, #tpu.memory_space<vmem>>, vector<16x1xf32>
    %c0_94 = arith.constant 0 : index
    %c992 = arith.constant 992 : index
    %233 = vector.load %arg26[%c0_94, %c992] : memref<16x1024xbf16, #tpu.memory_space<vmem>>, vector<16x32xbf16>
    %234 = arith.extf %233 : vector<16x32xbf16> to vector<16x32xf32>
    %235 = vector.broadcast %232 : vector<16x1xf32> to vector<16x32xf32>
    %236 = arith.mulf %235, %234 : vector<16x32xf32>
    %237 = arith.addf %231, %236 : vector<16x32xf32>
    %c0_95 = arith.constant 0 : index
    %c0_96 = arith.constant 0 : index
    %238 = vector.load %arg24[%c0_95, %c0_96] : memref<8x32xf32, #tpu.memory_space<vmem>>, vector<8x32xf32>
    %239 = arith.truncf %237 : vector<16x32xf32> to vector<16x32xbf16>
    %cst_97 = arith.constant dense<0.000000e+00> : vector<8x32xf32>
    %240 = tpu.matmul %21, %239, %cst_97 {dimension_numbers = #tpu.dot_dimension_numbers<[1], [0], [0], [1], [0, 0, 1, 1], [], []>} : vector<8x16xbf16>, vector<16x32xbf16>, vector<8x32xf32> -> vector<8x32xf32>
    %241 = arith.addf %238, %240 : vector<8x32xf32>
    %c0_98 = arith.constant 0 : index
    %c0_99 = arith.constant 0 : index
    %242 = vector.load %arg24[%c0_98, %c0_99] : memref<8x32xf32, #tpu.memory_space<vmem>>, vector<8x32xf32>
    tpu.vector_store %arg24[%c0_98, %c0_99], %241 {strides = array<i32>} : memref<8x32xf32, #tpu.memory_space<vmem>>, vector<8x32xf32>,
    %c0_i32_100 = arith.constant 0 : i32
    %243 = arith.cmpi eq, %arg0, %c0_i32_100 : i32
    %c0_i32_101 = arith.constant 0 : i32
    %244 = arith.cmpi eq, %arg1, %c0_i32_101 : i32
    %245 = arith.andi %243, %244 : i1
    %246 = arith.extui %245 : i1 to i32
    %c0_i32_102 = arith.constant 0 : i32
    %247 = arith.cmpi ne, %246, %c0_i32_102 : i32
    scf.if %247 {
      %c0_107 = arith.constant 0 : index
      %c0_108 = arith.constant 0 : index
      %256 = vector.load %arg25[%c0_107, %c0_108] : memref<8x1xf32, #tpu.memory_space<vmem>>, vector<8x1xf32>
      %cst_109 = arith.constant 0.000000e+00 : f32
      %257 = vector.broadcast %cst_109 : f32 to vector<8x1xf32>
      %258 = arith.cmpf ogt, %256, %257 : vector<8x1xf32>
      %cst_110 = arith.constant 1.000000e+00 : f32
      %259 = vector.broadcast %cst_110 : f32 to vector<8x1xf32>
      %260 = arith.maximumf %256, %259 : vector<8x1xf32>
      %cst_111 = arith.constant 1.000000e+00 : f32
      %261 = vector.broadcast %cst_111 : f32 to vector<8x1xf32>
      %262 = arith.divf %261, %260 : vector<8x1xf32>
      %cst_112 = arith.constant 0.000000e+00 : f32
      %263 = vector.broadcast %cst_112 : f32 to vector<8x1xf32>
      %264 = arith.select %258, %262, %263 : vector<8x1xi1>, vector<8x1xf32>
      %c0_113 = arith.constant 0 : index
      %c0_114 = arith.constant 0 : index
      %265 = vector.load %arg25[%c0_113, %c0_114] : memref<8x1xf32, #tpu.memory_space<vmem>>, vector<8x1xf32>
      tpu.vector_store %arg25[%c0_113, %c0_114], %264 {strides = array<i32>} : memref<8x1xf32, #tpu.memory_space<vmem>>, vector<8x1xf32>,
    } else {
    }
    %c0_i32_103 = arith.constant 0 : i32
    %248 = arith.cmpi eq, %arg1, %c0_i32_103 : i32
    %249 = arith.extui %248 : i1 to i32
    %c0_i32_104 = arith.constant 0 : i32
    %250 = arith.cmpi ne, %249, %c0_i32_104 : i32
    scf.if %250 {
      %c0_107 = arith.constant 0 : index
      %c0_108 = arith.constant 0 : index
      %256 = vector.load %arg24[%c0_107, %c0_108] : memref<8x32xf32, #tpu.memory_space<vmem>>, vector<8x32xf32>
      %c0_109 = arith.constant 0 : index
      %c0_110 = arith.constant 0 : index
      %257 = vector.load %arg25[%c0_109, %c0_110] : memref<8x1xf32, #tpu.memory_space<vmem>>, vector<8x1xf32>
      %258 = vector.broadcast %257 : vector<8x1xf32> to vector<8x32xf32>
      %259 = arith.mulf %256, %258 : vector<8x32xf32>
      %c0_111 = arith.constant 0 : index
      %c0_112 = arith.constant 0 : index
      %260 = vector.load %arg12[%c0_111, %c0_112] : memref<1x32xf32, #tpu.memory_space<vmem>>, vector<1x32xf32>
      %261 = vector.broadcast %260 : vector<1x32xf32> to vector<8x32xf32>
      %262 = arith.addf %259, %261 : vector<8x32xf32>
      %cst_113 = arith.constant 0.000000e+00 : f32
      %263 = vector.broadcast %cst_113 : f32 to vector<8x32xf32>
      %264 = arith.maximumf %262, %263 : vector<8x32xf32>
      %c0_114 = arith.constant 0 : index
      %c0_115 = arith.constant 0 : index
      %265 = vector.load %arg23[%c0_114, %c0_115] : memref<8x32xf32, #tpu.memory_space<vmem>>, vector<8x32xf32>
      %266 = arith.truncf %264 : vector<8x32xf32> to vector<8x32xbf16>
      %267 = arith.truncf %265 : vector<8x32xf32> to vector<8x32xbf16>
      %c0_116 = arith.constant 0 : index
      %c0_117 = arith.constant 0 : index
      %268 = vector.load %arg28[%c0_116, %c0_117] : memref<8x64xbf16, #tpu.memory_space<vmem>>, vector<8x32xbf16>
      tpu.vector_store %arg28[%c0_116, %c0_117], %266 {strides = array<i32>} : memref<8x64xbf16, #tpu.memory_space<vmem>>, vector<8x32xbf16>,
      %c0_118 = arith.constant 0 : index
      %c32_119 = arith.constant 32 : index
      %269 = vector.load %arg28[%c0_118, %c32_119] : memref<8x64xbf16, #tpu.memory_space<vmem>>, vector<8x32xbf16>
      tpu.vector_store %arg28[%c0_118, %c32_119], %267 {strides = array<i32>} : memref<8x64xbf16, #tpu.memory_space<vmem>>, vector<8x32xbf16>,
      %c0_120 = arith.constant 0 : index
      %c0_121 = arith.constant 0 : index
      %270 = vector.load %arg28[%c0_120, %c0_121] : memref<8x64xbf16, #tpu.memory_space<vmem>>, vector<8x64xbf16>
      %c0_122 = arith.constant 0 : index
      %c0_123 = arith.constant 0 : index
      %c0_124 = arith.constant 0 : index
      %271 = vector.load %arg13[%c0_122, %c0_123, %c0_124] : memref<2x64x32xbf16, #tpu.memory_space<vmem>>, vector<1x64x32xbf16>
      %272 = vector.shape_cast %271 : vector<1x64x32xbf16> to vector<64x32xbf16>
      %cst_125 = arith.constant dense<0.000000e+00> : vector<8x32xf32>
      %273 = tpu.matmul %270, %272, %cst_125 {dimension_numbers = #tpu.dot_dimension_numbers<[1], [0], [0], [1], [0, 0, 1, 1], [], []>} : vector<8x64xbf16>, vector<64x32xbf16>, vector<8x32xf32> -> vector<8x32xf32>
      %c0_126 = arith.constant 0 : index
      %c0_127 = arith.constant 0 : index
      %c0_128 = arith.constant 0 : index
      %274 = vector.load %arg14[%c0_126, %c0_127, %c0_128] : memref<2x1x32xf32, #tpu.memory_space<vmem>>, vector<1x1x32xf32>
      %275 = vector.shape_cast %274 : vector<1x1x32xf32> to vector<1x32xf32>
      %276 = vector.broadcast %275 : vector<1x32xf32> to vector<8x32xf32>
      %277 = arith.addf %273, %276 : vector<8x32xf32>
      %278 = arith.negf %277 : vector<8x32xf32>
      %279 = math.exp %278 : vector<8x32xf32>
      %cst_129 = arith.constant 1.000000e+00 : f32
      %280 = vector.broadcast %cst_129 : f32 to vector<8x32xf32>
      %281 = arith.addf %280, %279 : vector<8x32xf32>
      %282 = arith.divf %280, %281 : vector<8x32xf32>
      %c1_130 = arith.constant 1 : index
      %c0_131 = arith.constant 0 : index
      %c0_132 = arith.constant 0 : index
      %283 = vector.load %arg13[%c1_130, %c0_131, %c0_132] : memref<2x64x32xbf16, #tpu.memory_space<vmem>>, vector<1x64x32xbf16>
      %284 = vector.shape_cast %283 : vector<1x64x32xbf16> to vector<64x32xbf16>
      %cst_133 = arith.constant dense<0.000000e+00> : vector<8x32xf32>
      %285 = tpu.matmul %270, %284, %cst_133 {dimension_numbers = #tpu.dot_dimension_numbers<[1], [0], [0], [1], [0, 0, 1, 1], [], []>} : vector<8x64xbf16>, vector<64x32xbf16>, vector<8x32xf32> -> vector<8x32xf32>
      %c1_134 = arith.constant 1 : index
      %c0_135 = arith.constant 0 : index
      %c0_136 = arith.constant 0 : index
      %286 = vector.load %arg14[%c1_134, %c0_135, %c0_136] : memref<2x1x32xf32, #tpu.memory_space<vmem>>, vector<1x1x32xf32>
      %287 = vector.shape_cast %286 : vector<1x1x32xf32> to vector<1x32xf32>
      %288 = vector.broadcast %287 : vector<1x32xf32> to vector<8x32xf32>
      %289 = arith.addf %285, %288 : vector<8x32xf32>
      %290 = arith.negf %289 : vector<8x32xf32>
      %291 = math.exp %290 : vector<8x32xf32>
      %cst_137 = arith.constant 1.000000e+00 : f32
      %292 = vector.broadcast %cst_137 : f32 to vector<8x32xf32>
      %293 = arith.addf %292, %291 : vector<8x32xf32>
      %294 = arith.divf %292, %293 : vector<8x32xf32>
      %c0_138 = arith.constant 0 : index
      %c0_139 = arith.constant 0 : index
      %295 = vector.load %arg15[%c0_138, %c0_139] : memref<32x32xbf16, #tpu.memory_space<vmem>>, vector<32x32xbf16>
      %cst_140 = arith.constant dense<0.000000e+00> : vector<8x32xf32>
      %296 = tpu.matmul %266, %295, %cst_140 {dimension_numbers = #tpu.dot_dimension_numbers<[1], [0], [0], [1], [0, 0, 1, 1], [], []>} : vector<8x32xbf16>, vector<32x32xbf16>, vector<8x32xf32> -> vector<8x32xf32>
      %c0_141 = arith.constant 0 : index
      %c0_142 = arith.constant 0 : index
      %297 = vector.load %arg17[%c0_141, %c0_142] : memref<1x32xf32, #tpu.memory_space<vmem>>, vector<1x32xf32>
      %298 = vector.broadcast %297 : vector<1x32xf32> to vector<8x32xf32>
      %299 = arith.addf %296, %298 : vector<8x32xf32>
      %c0_143 = arith.constant 0 : index
      %c0_144 = arith.constant 0 : index
      %300 = vector.load %arg16[%c0_143, %c0_144] : memref<32x32xbf16, #tpu.memory_space<vmem>>, vector<32x32xbf16>
      %cst_145 = arith.constant dense<0.000000e+00> : vector<8x32xf32>
      %301 = tpu.matmul %267, %300, %cst_145 {dimension_numbers = #tpu.dot_dimension_numbers<[1], [0], [0], [1], [0, 0, 1, 1], [], []>} : vector<8x32xbf16>, vector<32x32xbf16>, vector<8x32xf32> -> vector<8x32xf32>
      %c0_146 = arith.constant 0 : index
      %c0_147 = arith.constant 0 : index
      %302 = vector.load %arg18[%c0_146, %c0_147] : memref<1x32xf32, #tpu.memory_space<vmem>>, vector<1x32xf32>
      %303 = vector.broadcast %302 : vector<1x32xf32> to vector<8x32xf32>
      %304 = arith.addf %301, %303 : vector<8x32xf32>
      %305 = arith.mulf %282, %304 : vector<8x32xf32>
      %306 = arith.addf %299, %305 : vector<8x32xf32>
      %307 = math.tanh %306 : vector<8x32xf32>
      %cst_148 = arith.constant 1.000000e+00 : f32
      %308 = vector.broadcast %cst_148 : f32 to vector<8x32xf32>
      %309 = arith.subf %308, %294 : vector<8x32xf32>
      %310 = arith.mulf %309, %307 : vector<8x32xf32>
      %311 = arith.mulf %294, %265 : vector<8x32xf32>
      %312 = arith.addf %310, %311 : vector<8x32xf32>
      %c0_149 = arith.constant 0 : index
      %c0_150 = arith.constant 0 : index
      %313 = vector.load %arg23[%c0_149, %c0_150] : memref<8x32xf32, #tpu.memory_space<vmem>>, vector<8x32xf32>
      tpu.vector_store %arg23[%c0_149, %c0_150], %312 {strides = array<i32>} : memref<8x32xf32, #tpu.memory_space<vmem>>, vector<8x32xf32>,
    } else {
    }
    %c2_i32 = arith.constant 2 : i32
    %251 = arith.cmpi eq, %arg0, %c2_i32 : i32
    %c0_i32_105 = arith.constant 0 : i32
    %252 = arith.cmpi eq, %arg1, %c0_i32_105 : i32
    %253 = arith.andi %251, %252 : i1
    %254 = arith.extui %253 : i1 to i32
    %c0_i32_106 = arith.constant 0 : i32
    %255 = arith.cmpi ne, %254, %c0_i32_106 : i32
    scf.if %255 {
      %c0_107 = arith.constant 0 : index
      %c0_108 = arith.constant 0 : index
      %256 = vector.load %arg23[%c0_107, %c0_108] : memref<8x32xf32, #tpu.memory_space<vmem>>, vector<8x32xf32>
      %c0_109 = arith.constant 0 : index
      %c0_110 = arith.constant 0 : index
      %257 = vector.load %arg22[%c0_109, %c0_110] : memref<8x32xf32, #tpu.memory_space<vmem>>, vector<8x32xf32>
      tpu.vector_store %arg22[%c0_109, %c0_110], %256 {strides = array<i32>} : memref<8x32xf32, #tpu.memory_space<vmem>>, vector<8x32xf32>,
      %258 = tpu.iota {dimensions = array<i32: 0>} : vector<8x1xi32>
      %c8_i32 = arith.constant 8 : i32
      %259 = vector.broadcast %c8_i32 : i32 to vector<8x1xi32>
      %260 = arith.cmpi slt, %258, %259 : vector<8x1xi32>
      %cst_111 = arith.constant 0.000000e+00 : f32
      %261 = vector.broadcast %cst_111 : f32 to vector<1x32xf32>
      %c0_i32_112 = arith.constant 0 : i32
      %262 = arith.truncf %261 : vector<1x32xf32> to vector<1x32xbf16>
      %c0_113 = arith.constant 0 : index
      %c0_114 = arith.constant 0 : index
      %263 = vector.load %arg29[%c0_113, %c0_114] : memref<1x96xbf16, #tpu.memory_space<vmem>>, vector<1x32xbf16>
      tpu.vector_store %arg29[%c0_113, %c0_114], %262 {strides = array<i32>} : memref<1x96xbf16, #tpu.memory_space<vmem>>, vector<1x32xbf16>,
      %264 = arith.truncf %261 : vector<1x32xf32> to vector<1x32xbf16>
      %c0_115 = arith.constant 0 : index
      %c32_116 = arith.constant 32 : index
      %265 = vector.load %arg29[%c0_115, %c32_116] : memref<1x96xbf16, #tpu.memory_space<vmem>>, vector<1x32xbf16>
      tpu.vector_store %arg29[%c0_115, %c32_116], %264 {strides = array<i32>} : memref<1x96xbf16, #tpu.memory_space<vmem>>, vector<1x32xbf16>,
      %266 = arith.truncf %261 : vector<1x32xf32> to vector<1x32xbf16>
      %c0_117 = arith.constant 0 : index
      %c64_118 = arith.constant 64 : index
      %267 = vector.load %arg29[%c0_117, %c64_118] : memref<1x96xbf16, #tpu.memory_space<vmem>>, vector<1x32xbf16>
      tpu.vector_store %arg29[%c0_117, %c64_118], %266 {strides = array<i32>} : memref<1x96xbf16, #tpu.memory_space<vmem>>, vector<1x32xbf16>,
      %c0_119 = arith.constant 0 : index
      %c0_120 = arith.constant 0 : index
      %268 = vector.load %arg29[%c0_119, %c0_120] : memref<1x96xbf16, #tpu.memory_space<vmem>>, vector<1x96xbf16>
      %c0_121 = arith.constant 0 : index
      %c0_122 = arith.constant 0 : index
      %c0_123 = arith.constant 0 : index
      %269 = vector.load %arg19[%c0_121, %c0_122, %c0_123] : memref<4x96x32xbf16, #tpu.memory_space<vmem>>, vector<1x96x32xbf16>
      %270 = vector.shape_cast %269 : vector<1x96x32xbf16> to vector<96x32xbf16>
      %cst_124 = arith.constant dense<0.000000e+00> : vector<1x32xf32>
      %271 = tpu.matmul %268, %270, %cst_124 {dimension_numbers = #tpu.dot_dimension_numbers<[1], [0], [0], [1], [0, 0, 1, 1], [], []>} : vector<1x96xbf16>, vector<96x32xbf16>, vector<1x32xf32> -> vector<1x32xf32>
      %c0_125 = arith.constant 0 : index
      %c0_126 = arith.constant 0 : index
      %c0_127 = arith.constant 0 : index
      %272 = vector.load %arg20[%c0_125, %c0_126, %c0_127] : memref<4x1x32xf32, #tpu.memory_space<vmem>>, vector<1x1x32xf32>
      %273 = vector.shape_cast %272 : vector<1x1x32xf32> to vector<1x32xf32>
      %274 = arith.addf %271, %273 : vector<1x32xf32>
      %275 = arith.negf %274 : vector<1x32xf32>
      %276 = math.exp %275 : vector<1x32xf32>
      %cst_128 = arith.constant 1.000000e+00 : f32
      %277 = vector.broadcast %cst_128 : f32 to vector<1x32xf32>
      %278 = arith.addf %277, %276 : vector<1x32xf32>
      %279 = arith.divf %277, %278 : vector<1x32xf32>
      %c1_129 = arith.constant 1 : index
      %c0_130 = arith.constant 0 : index
      %c0_131 = arith.constant 0 : index
      %280 = vector.load %arg19[%c1_129, %c0_130, %c0_131] : memref<4x96x32xbf16, #tpu.memory_space<vmem>>, vector<1x96x32xbf16>
      %281 = vector.shape_cast %280 : vector<1x96x32xbf16> to vector<96x32xbf16>
      %cst_132 = arith.constant dense<0.000000e+00> : vector<1x32xf32>
      %282 = tpu.matmul %268, %281, %cst_132 {dimension_numbers = #tpu.dot_dimension_numbers<[1], [0], [0], [1], [0, 0, 1, 1], [], []>} : vector<1x96xbf16>, vector<96x32xbf16>, vector<1x32xf32> -> vector<1x32xf32>
      %c1_133 = arith.constant 1 : index
      %c0_134 = arith.constant 0 : index
      %c0_135 = arith.constant 0 : index
      %283 = vector.load %arg20[%c1_133, %c0_134, %c0_135] : memref<4x1x32xf32, #tpu.memory_space<vmem>>, vector<1x1x32xf32>
      %284 = vector.shape_cast %283 : vector<1x1x32xf32> to vector<1x32xf32>
      %285 = arith.addf %282, %284 : vector<1x32xf32>
      %286 = arith.negf %285 : vector<1x32xf32>
      %287 = math.exp %286 : vector<1x32xf32>
      %cst_136 = arith.constant 1.000000e+00 : f32
      %288 = vector.broadcast %cst_136 : f32 to vector<1x32xf32>
      %289 = arith.addf %288, %287 : vector<1x32xf32>
      %290 = arith.divf %288, %289 : vector<1x32xf32>
      %c2_137 = arith.constant 2 : index
      %c0_138 = arith.constant 0 : index
      %c0_139 = arith.constant 0 : index
      %291 = vector.load %arg19[%c2_137, %c0_138, %c0_139] : memref<4x96x32xbf16, #tpu.memory_space<vmem>>, vector<1x96x32xbf16>
      %292 = vector.shape_cast %291 : vector<1x96x32xbf16> to vector<96x32xbf16>
      %cst_140 = arith.constant dense<0.000000e+00> : vector<1x32xf32>
      %293 = tpu.matmul %268, %292, %cst_140 {dimension_numbers = #tpu.dot_dimension_numbers<[1], [0], [0], [1], [0, 0, 1, 1], [], []>} : vector<1x96xbf16>, vector<96x32xbf16>, vector<1x32xf32> -> vector<1x32xf32>
      %c2_141 = arith.constant 2 : index
      %c0_142 = arith.constant 0 : index
      %c0_143 = arith.constant 0 : index
      %294 = vector.load %arg20[%c2_141, %c0_142, %c0_143] : memref<4x1x32xf32, #tpu.memory_space<vmem>>, vector<1x1x32xf32>
      %295 = vector.shape_cast %294 : vector<1x1x32xf32> to vector<1x32xf32>
      %296 = arith.addf %293, %295 : vector<1x32xf32>
      %297 = math.tanh %296 : vector<1x32xf32>
      %c3_144 = arith.constant 3 : index
      %c0_145 = arith.constant 0 : index
      %c0_146 = arith.constant 0 : index
      %298 = vector.load %arg19[%c3_144, %c0_145, %c0_146] : memref<4x96x32xbf16, #tpu.memory_space<vmem>>, vector<1x96x32xbf16>
      %299 = vector.shape_cast %298 : vector<1x96x32xbf16> to vector<96x32xbf16>
      %cst_147 = arith.constant dense<0.000000e+00> : vector<1x32xf32>
      %300 = tpu.matmul %268, %299, %cst_147 {dimension_numbers = #tpu.dot_dimension_numbers<[1], [0], [0], [1], [0, 0, 1, 1], [], []>} : vector<1x96xbf16>, vector<96x32xbf16>, vector<1x32xf32> -> vector<1x32xf32>
      %c3_148 = arith.constant 3 : index
      %c0_149 = arith.constant 0 : index
      %c0_150 = arith.constant 0 : index
      %301 = vector.load %arg20[%c3_148, %c0_149, %c0_150] : memref<4x1x32xf32, #tpu.memory_space<vmem>>, vector<1x1x32xf32>
      %302 = vector.shape_cast %301 : vector<1x1x32xf32> to vector<1x32xf32>
      %303 = arith.addf %300, %302 : vector<1x32xf32>
      %304 = arith.negf %303 : vector<1x32xf32>
      %305 = math.exp %304 : vector<1x32xf32>
      %cst_151 = arith.constant 1.000000e+00 : f32
      %306 = vector.broadcast %cst_151 : f32 to vector<1x32xf32>
      %307 = arith.addf %306, %305 : vector<1x32xf32>
      %308 = arith.divf %306, %307 : vector<1x32xf32>
      %309 = arith.mulf %290, %261 : vector<1x32xf32>
      %310 = arith.mulf %279, %297 : vector<1x32xf32>
      %311 = arith.addf %309, %310 : vector<1x32xf32>
      %312 = math.tanh %311 : vector<1x32xf32>
      %313 = arith.mulf %308, %312 : vector<1x32xf32>
      %314 = vector.broadcast %313 : vector<1x32xf32> to vector<8x32xf32>
      %315 = arith.mulf %256, %314 : vector<8x32xf32>
      %cst_152 = arith.constant dense<0.000000e+00> : vector<8xf32>
      %316 = vector.multi_reduction <add>, %315, %cst_152 [1] : vector<8x32xf32> to vector<8xf32>
      %317 = vector.shape_cast %316 : vector<8xf32> to vector<8x1xf32>
      %cst_153 = arith.constant -1.000000e+30 : f32
      %318 = vector.broadcast %cst_153 : f32 to vector<8x1xf32>
      %319 = arith.select %260, %317, %318 : vector<8x1xi1>, vector<8x1xf32>
      %cst_154 = arith.constant dense<0xFF800000> : vector<1xf32>
      %320 = vector.multi_reduction <maximumf>, %319, %cst_154 [0] : vector<8x1xf32> to vector<1xf32>
      %321 = vector.shape_cast %320 : vector<1xf32> to vector<1x1xf32>
      %322 = vector.broadcast %321 : vector<1x1xf32> to vector<8x1xf32>
      %323 = arith.subf %319, %322 : vector<8x1xf32>
      %324 = math.exp %323 : vector<8x1xf32>
      %cst_155 = arith.constant dense<0.000000e+00> : vector<1xf32>
      %325 = vector.multi_reduction <add>, %324, %cst_155 [0] : vector<8x1xf32> to vector<1xf32>
      %326 = vector.shape_cast %325 : vector<1xf32> to vector<1x1xf32>
      %327 = vector.broadcast %326 : vector<1x1xf32> to vector<8x1xf32>
      %328 = arith.divf %324, %327 : vector<8x1xf32>
      %329 = vector.broadcast %328 : vector<8x1xf32> to vector<8x32xf32>
      %330 = arith.mulf %256, %329 : vector<8x32xf32>
      %cst_156 = arith.constant dense<0.000000e+00> : vector<32xf32>
      %331 = vector.multi_reduction <add>, %330, %cst_156 [0] : vector<8x32xf32> to vector<32xf32>
      %332 = vector.shape_cast %331 : vector<32xf32> to vector<1x32xf32>
      %c1_i32 = arith.constant 1 : i32
      %333 = arith.truncf %313 : vector<1x32xf32> to vector<1x32xbf16>
      %c0_157 = arith.constant 0 : index
      %c0_158 = arith.constant 0 : index
      %334 = vector.load %arg29[%c0_157, %c0_158] : memref<1x96xbf16, #tpu.memory_space<vmem>>, vector<1x32xbf16>
      tpu.vector_store %arg29[%c0_157, %c0_158], %333 {strides = array<i32>} : memref<1x96xbf16, #tpu.memory_space<vmem>>, vector<1x32xbf16>,
      %335 = arith.truncf %332 : vector<1x32xf32> to vector<1x32xbf16>
      %c0_159 = arith.constant 0 : index
      %c32_160 = arith.constant 32 : index
      %336 = vector.load %arg29[%c0_159, %c32_160] : memref<1x96xbf16, #tpu.memory_space<vmem>>, vector<1x32xbf16>
      tpu.vector_store %arg29[%c0_159, %c32_160], %335 {strides = array<i32>} : memref<1x96xbf16, #tpu.memory_space<vmem>>, vector<1x32xbf16>,
      %337 = arith.truncf %313 : vector<1x32xf32> to vector<1x32xbf16>
      %c0_161 = arith.constant 0 : index
      %c64_162 = arith.constant 64 : index
      %338 = vector.load %arg29[%c0_161, %c64_162] : memref<1x96xbf16, #tpu.memory_space<vmem>>, vector<1x32xbf16>
      tpu.vector_store %arg29[%c0_161, %c64_162], %337 {strides = array<i32>} : memref<1x96xbf16, #tpu.memory_space<vmem>>, vector<1x32xbf16>,
      %c0_163 = arith.constant 0 : index
      %c0_164 = arith.constant 0 : index
      %339 = vector.load %arg29[%c0_163, %c0_164] : memref<1x96xbf16, #tpu.memory_space<vmem>>, vector<1x96xbf16>
      %c0_165 = arith.constant 0 : index
      %c0_166 = arith.constant 0 : index
      %c0_167 = arith.constant 0 : index
      %340 = vector.load %arg19[%c0_165, %c0_166, %c0_167] : memref<4x96x32xbf16, #tpu.memory_space<vmem>>, vector<1x96x32xbf16>
      %341 = vector.shape_cast %340 : vector<1x96x32xbf16> to vector<96x32xbf16>
      %cst_168 = arith.constant dense<0.000000e+00> : vector<1x32xf32>
      %342 = tpu.matmul %339, %341, %cst_168 {dimension_numbers = #tpu.dot_dimension_numbers<[1], [0], [0], [1], [0, 0, 1, 1], [], []>} : vector<1x96xbf16>, vector<96x32xbf16>, vector<1x32xf32> -> vector<1x32xf32>
      %c0_169 = arith.constant 0 : index
      %c0_170 = arith.constant 0 : index
      %c0_171 = arith.constant 0 : index
      %343 = vector.load %arg20[%c0_169, %c0_170, %c0_171] : memref<4x1x32xf32, #tpu.memory_space<vmem>>, vector<1x1x32xf32>
      %344 = vector.shape_cast %343 : vector<1x1x32xf32> to vector<1x32xf32>
      %345 = arith.addf %342, %344 : vector<1x32xf32>
      %346 = arith.negf %345 : vector<1x32xf32>
      %347 = math.exp %346 : vector<1x32xf32>
      %cst_172 = arith.constant 1.000000e+00 : f32
      %348 = vector.broadcast %cst_172 : f32 to vector<1x32xf32>
      %349 = arith.addf %348, %347 : vector<1x32xf32>
      %350 = arith.divf %348, %349 : vector<1x32xf32>
      %c1_173 = arith.constant 1 : index
      %c0_174 = arith.constant 0 : index
      %c0_175 = arith.constant 0 : index
      %351 = vector.load %arg19[%c1_173, %c0_174, %c0_175] : memref<4x96x32xbf16, #tpu.memory_space<vmem>>, vector<1x96x32xbf16>
      %352 = vector.shape_cast %351 : vector<1x96x32xbf16> to vector<96x32xbf16>
      %cst_176 = arith.constant dense<0.000000e+00> : vector<1x32xf32>
      %353 = tpu.matmul %339, %352, %cst_176 {dimension_numbers = #tpu.dot_dimension_numbers<[1], [0], [0], [1], [0, 0, 1, 1], [], []>} : vector<1x96xbf16>, vector<96x32xbf16>, vector<1x32xf32> -> vector<1x32xf32>
      %c1_177 = arith.constant 1 : index
      %c0_178 = arith.constant 0 : index
      %c0_179 = arith.constant 0 : index
      %354 = vector.load %arg20[%c1_177, %c0_178, %c0_179] : memref<4x1x32xf32, #tpu.memory_space<vmem>>, vector<1x1x32xf32>
      %355 = vector.shape_cast %354 : vector<1x1x32xf32> to vector<1x32xf32>
      %356 = arith.addf %353, %355 : vector<1x32xf32>
      %357 = arith.negf %356 : vector<1x32xf32>
      %358 = math.exp %357 : vector<1x32xf32>
      %cst_180 = arith.constant 1.000000e+00 : f32
      %359 = vector.broadcast %cst_180 : f32 to vector<1x32xf32>
      %360 = arith.addf %359, %358 : vector<1x32xf32>
      %361 = arith.divf %359, %360 : vector<1x32xf32>
      %c2_181 = arith.constant 2 : index
      %c0_182 = arith.constant 0 : index
      %c0_183 = arith.constant 0 : index
      %362 = vector.load %arg19[%c2_181, %c0_182, %c0_183] : memref<4x96x32xbf16, #tpu.memory_space<vmem>>, vector<1x96x32xbf16>
      %363 = vector.shape_cast %362 : vector<1x96x32xbf16> to vector<96x32xbf16>
      %cst_184 = arith.constant dense<0.000000e+00> : vector<1x32xf32>
      %364 = tpu.matmul %339, %363, %cst_184 {dimension_numbers = #tpu.dot_dimension_numbers<[1], [0], [0], [1], [0, 0, 1, 1], [], []>} : vector<1x96xbf16>, vector<96x32xbf16>, vector<1x32xf32> -> vector<1x32xf32>
      %c2_185 = arith.constant 2 : index
      %c0_186 = arith.constant 0 : index
      %c0_187 = arith.constant 0 : index
      %365 = vector.load %arg20[%c2_185, %c0_186, %c0_187] : memref<4x1x32xf32, #tpu.memory_space<vmem>>, vector<1x1x32xf32>
      %366 = vector.shape_cast %365 : vector<1x1x32xf32> to vector<1x32xf32>
      %367 = arith.addf %364, %366 : vector<1x32xf32>
      %368 = math.tanh %367 : vector<1x32xf32>
      %c3_188 = arith.constant 3 : index
      %c0_189 = arith.constant 0 : index
      %c0_190 = arith.constant 0 : index
      %369 = vector.load %arg19[%c3_188, %c0_189, %c0_190] : memref<4x96x32xbf16, #tpu.memory_space<vmem>>, vector<1x96x32xbf16>
      %370 = vector.shape_cast %369 : vector<1x96x32xbf16> to vector<96x32xbf16>
      %cst_191 = arith.constant dense<0.000000e+00> : vector<1x32xf32>
      %371 = tpu.matmul %339, %370, %cst_191 {dimension_numbers = #tpu.dot_dimension_numbers<[1], [0], [0], [1], [0, 0, 1, 1], [], []>} : vector<1x96xbf16>, vector<96x32xbf16>, vector<1x32xf32> -> vector<1x32xf32>
      %c3_192 = arith.constant 3 : index
      %c0_193 = arith.constant 0 : index
      %c0_194 = arith.constant 0 : index
      %372 = vector.load %arg20[%c3_192, %c0_193, %c0_194] : memref<4x1x32xf32, #tpu.memory_space<vmem>>, vector<1x1x32xf32>
      %373 = vector.shape_cast %372 : vector<1x1x32xf32> to vector<1x32xf32>
      %374 = arith.addf %371, %373 : vector<1x32xf32>
      %375 = arith.negf %374 : vector<1x32xf32>
      %376 = math.exp %375 : vector<1x32xf32>
      %cst_195 = arith.constant 1.000000e+00 : f32
      %377 = vector.broadcast %cst_195 : f32 to vector<1x32xf32>
      %378 = arith.addf %377, %376 : vector<1x32xf32>
      %379 = arith.divf %377, %378 : vector<1x32xf32>
      %380 = arith.mulf %361, %311 : vector<1x32xf32>
      %381 = arith.mulf %350, %368 : vector<1x32xf32>
      %382 = arith.addf %380, %381 : vector<1x32xf32>
      %383 = math.tanh %382 : vector<1x32xf32>
      %384 = arith.mulf %379, %383 : vector<1x32xf32>
      %385 = vector.broadcast %384 : vector<1x32xf32> to vector<8x32xf32>
      %386 = arith.mulf %256, %385 : vector<8x32xf32>
      %cst_196 = arith.constant dense<0.000000e+00> : vector<8xf32>
      %387 = vector.multi_reduction <add>, %386, %cst_196 [1] : vector<8x32xf32> to vector<8xf32>
      %388 = vector.shape_cast %387 : vector<8xf32> to vector<8x1xf32>
      %cst_197 = arith.constant -1.000000e+30 : f32
      %389 = vector.broadcast %cst_197 : f32 to vector<8x1xf32>
      %390 = arith.select %260, %388, %389 : vector<8x1xi1>, vector<8x1xf32>
      %cst_198 = arith.constant dense<0xFF800000> : vector<1xf32>
      %391 = vector.multi_reduction <maximumf>, %390, %cst_198 [0] : vector<8x1xf32> to vector<1xf32>
      %392 = vector.shape_cast %391 : vector<1xf32> to vector<1x1xf32>
      %393 = vector.broadcast %392 : vector<1x1xf32> to vector<8x1xf32>
      %394 = arith.subf %390, %393 : vector<8x1xf32>
      %395 = math.exp %394 : vector<8x1xf32>
      %cst_199 = arith.constant dense<0.000000e+00> : vector<1xf32>
      %396 = vector.multi_reduction <add>, %395, %cst_199 [0] : vector<8x1xf32> to vector<1xf32>
      %397 = vector.shape_cast %396 : vector<1xf32> to vector<1x1xf32>
      %398 = vector.broadcast %397 : vector<1x1xf32> to vector<8x1xf32>
      %399 = arith.divf %395, %398 : vector<8x1xf32>
      %400 = vector.broadcast %399 : vector<8x1xf32> to vector<8x32xf32>
      %401 = arith.mulf %256, %400 : vector<8x32xf32>
      %cst_200 = arith.constant dense<0.000000e+00> : vector<32xf32>
      %402 = vector.multi_reduction <add>, %401, %cst_200 [0] : vector<8x32xf32> to vector<32xf32>
      %403 = vector.shape_cast %402 : vector<32xf32> to vector<1x32xf32>
      %c2_i32_201 = arith.constant 2 : i32
      %404 = arith.truncf %384 : vector<1x32xf32> to vector<1x32xbf16>
      %c0_202 = arith.constant 0 : index
      %c0_203 = arith.constant 0 : index
      %405 = vector.load %arg29[%c0_202, %c0_203] : memref<1x96xbf16, #tpu.memory_space<vmem>>, vector<1x32xbf16>
      tpu.vector_store %arg29[%c0_202, %c0_203], %404 {strides = array<i32>} : memref<1x96xbf16, #tpu.memory_space<vmem>>, vector<1x32xbf16>,
      %406 = arith.truncf %403 : vector<1x32xf32> to vector<1x32xbf16>
      %c0_204 = arith.constant 0 : index
      %c32_205 = arith.constant 32 : index
      %407 = vector.load %arg29[%c0_204, %c32_205] : memref<1x96xbf16, #tpu.memory_space<vmem>>, vector<1x32xbf16>
      tpu.vector_store %arg29[%c0_204, %c32_205], %406 {strides = array<i32>} : memref<1x96xbf16, #tpu.memory_space<vmem>>, vector<1x32xbf16>,
      %408 = arith.truncf %384 : vector<1x32xf32> to vector<1x32xbf16>
      %c0_206 = arith.constant 0 : index
      %c64_207 = arith.constant 64 : index
      %409 = vector.load %arg29[%c0_206, %c64_207] : memref<1x96xbf16, #tpu.memory_space<vmem>>, vector<1x32xbf16>
      tpu.vector_store %arg29[%c0_206, %c64_207], %408 {strides = array<i32>} : memref<1x96xbf16, #tpu.memory_space<vmem>>, vector<1x32xbf16>,
      %c0_208 = arith.constant 0 : index
      %c0_209 = arith.constant 0 : index
      %410 = vector.load %arg29[%c0_208, %c0_209] : memref<1x96xbf16, #tpu.memory_space<vmem>>, vector<1x96xbf16>
      %c0_210 = arith.constant 0 : index
      %c0_211 = arith.constant 0 : index
      %c0_212 = arith.constant 0 : index
      %411 = vector.load %arg19[%c0_210, %c0_211, %c0_212] : memref<4x96x32xbf16, #tpu.memory_space<vmem>>, vector<1x96x32xbf16>
      %412 = vector.shape_cast %411 : vector<1x96x32xbf16> to vector<96x32xbf16>
      %cst_213 = arith.constant dense<0.000000e+00> : vector<1x32xf32>
      %413 = tpu.matmul %410, %412, %cst_213 {dimension_numbers = #tpu.dot_dimension_numbers<[1], [0], [0], [1], [0, 0, 1, 1], [], []>} : vector<1x96xbf16>, vector<96x32xbf16>, vector<1x32xf32> -> vector<1x32xf32>
      %c0_214 = arith.constant 0 : index
      %c0_215 = arith.constant 0 : index
      %c0_216 = arith.constant 0 : index
      %414 = vector.load %arg20[%c0_214, %c0_215, %c0_216] : memref<4x1x32xf32, #tpu.memory_space<vmem>>, vector<1x1x32xf32>
      %415 = vector.shape_cast %414 : vector<1x1x32xf32> to vector<1x32xf32>
      %416 = arith.addf %413, %415 : vector<1x32xf32>
      %417 = arith.negf %416 : vector<1x32xf32>
      %418 = math.exp %417 : vector<1x32xf32>
      %cst_217 = arith.constant 1.000000e+00 : f32
      %419 = vector.broadcast %cst_217 : f32 to vector<1x32xf32>
      %420 = arith.addf %419, %418 : vector<1x32xf32>
      %421 = arith.divf %419, %420 : vector<1x32xf32>
      %c1_218 = arith.constant 1 : index
      %c0_219 = arith.constant 0 : index
      %c0_220 = arith.constant 0 : index
      %422 = vector.load %arg19[%c1_218, %c0_219, %c0_220] : memref<4x96x32xbf16, #tpu.memory_space<vmem>>, vector<1x96x32xbf16>
      %423 = vector.shape_cast %422 : vector<1x96x32xbf16> to vector<96x32xbf16>
      %cst_221 = arith.constant dense<0.000000e+00> : vector<1x32xf32>
      %424 = tpu.matmul %410, %423, %cst_221 {dimension_numbers = #tpu.dot_dimension_numbers<[1], [0], [0], [1], [0, 0, 1, 1], [], []>} : vector<1x96xbf16>, vector<96x32xbf16>, vector<1x32xf32> -> vector<1x32xf32>
      %c1_222 = arith.constant 1 : index
      %c0_223 = arith.constant 0 : index
      %c0_224 = arith.constant 0 : index
      %425 = vector.load %arg20[%c1_222, %c0_223, %c0_224] : memref<4x1x32xf32, #tpu.memory_space<vmem>>, vector<1x1x32xf32>
      %426 = vector.shape_cast %425 : vector<1x1x32xf32> to vector<1x32xf32>
      %427 = arith.addf %424, %426 : vector<1x32xf32>
      %428 = arith.negf %427 : vector<1x32xf32>
      %429 = math.exp %428 : vector<1x32xf32>
      %cst_225 = arith.constant 1.000000e+00 : f32
      %430 = vector.broadcast %cst_225 : f32 to vector<1x32xf32>
      %431 = arith.addf %430, %429 : vector<1x32xf32>
      %432 = arith.divf %430, %431 : vector<1x32xf32>
      %c2_226 = arith.constant 2 : index
      %c0_227 = arith.constant 0 : index
      %c0_228 = arith.constant 0 : index
      %433 = vector.load %arg19[%c2_226, %c0_227, %c0_228] : memref<4x96x32xbf16, #tpu.memory_space<vmem>>, vector<1x96x32xbf16>
      %434 = vector.shape_cast %433 : vector<1x96x32xbf16> to vector<96x32xbf16>
      %cst_229 = arith.constant dense<0.000000e+00> : vector<1x32xf32>
      %435 = tpu.matmul %410, %434, %cst_229 {dimension_numbers = #tpu.dot_dimension_numbers<[1], [0], [0], [1], [0, 0, 1, 1], [], []>} : vector<1x96xbf16>, vector<96x32xbf16>, vector<1x32xf32> -> vector<1x32xf32>
      %c2_230 = arith.constant 2 : index
      %c0_231 = arith.constant 0 : index
      %c0_232 = arith.constant 0 : index
      %436 = vector.load %arg20[%c2_230, %c0_231, %c0_232] : memref<4x1x32xf32, #tpu.memory_space<vmem>>, vector<1x1x32xf32>
      %437 = vector.shape_cast %436 : vector<1x1x32xf32> to vector<1x32xf32>
      %438 = arith.addf %435, %437 : vector<1x32xf32>
      %439 = math.tanh %438 : vector<1x32xf32>
      %c3_233 = arith.constant 3 : index
      %c0_234 = arith.constant 0 : index
      %c0_235 = arith.constant 0 : index
      %440 = vector.load %arg19[%c3_233, %c0_234, %c0_235] : memref<4x96x32xbf16, #tpu.memory_space<vmem>>, vector<1x96x32xbf16>
      %441 = vector.shape_cast %440 : vector<1x96x32xbf16> to vector<96x32xbf16>
      %cst_236 = arith.constant dense<0.000000e+00> : vector<1x32xf32>
      %442 = tpu.matmul %410, %441, %cst_236 {dimension_numbers = #tpu.dot_dimension_numbers<[1], [0], [0], [1], [0, 0, 1, 1], [], []>} : vector<1x96xbf16>, vector<96x32xbf16>, vector<1x32xf32> -> vector<1x32xf32>
      %c3_237 = arith.constant 3 : index
      %c0_238 = arith.constant 0 : index
      %c0_239 = arith.constant 0 : index
      %443 = vector.load %arg20[%c3_237, %c0_238, %c0_239] : memref<4x1x32xf32, #tpu.memory_space<vmem>>, vector<1x1x32xf32>
      %444 = vector.shape_cast %443 : vector<1x1x32xf32> to vector<1x32xf32>
      %445 = arith.addf %442, %444 : vector<1x32xf32>
      %446 = arith.negf %445 : vector<1x32xf32>
      %447 = math.exp %446 : vector<1x32xf32>
      %cst_240 = arith.constant 1.000000e+00 : f32
      %448 = vector.broadcast %cst_240 : f32 to vector<1x32xf32>
      %449 = arith.addf %448, %447 : vector<1x32xf32>
      %450 = arith.divf %448, %449 : vector<1x32xf32>
      %451 = arith.mulf %432, %382 : vector<1x32xf32>
      %452 = arith.mulf %421, %439 : vector<1x32xf32>
      %453 = arith.addf %451, %452 : vector<1x32xf32>
      %454 = math.tanh %453 : vector<1x32xf32>
      %455 = arith.mulf %450, %454 : vector<1x32xf32>
      %456 = vector.broadcast %455 : vector<1x32xf32> to vector<8x32xf32>
      %457 = arith.mulf %256, %456 : vector<8x32xf32>
      %cst_241 = arith.constant dense<0.000000e+00> : vector<8xf32>
      %458 = vector.multi_reduction <add>, %457, %cst_241 [1] : vector<8x32xf32> to vector<8xf32>
      %459 = vector.shape_cast %458 : vector<8xf32> to vector<8x1xf32>
      %cst_242 = arith.constant -1.000000e+30 : f32
      %460 = vector.broadcast %cst_242 : f32 to vector<8x1xf32>
      %461 = arith.select %260, %459, %460 : vector<8x1xi1>, vector<8x1xf32>
      %cst_243 = arith.constant dense<0xFF800000> : vector<1xf32>
      %462 = vector.multi_reduction <maximumf>, %461, %cst_243 [0] : vector<8x1xf32> to vector<1xf32>
      %463 = vector.shape_cast %462 : vector<1xf32> to vector<1x1xf32>
      %464 = vector.broadcast %463 : vector<1x1xf32> to vector<8x1xf32>
      %465 = arith.subf %461, %464 : vector<8x1xf32>
      %466 = math.exp %465 : vector<8x1xf32>
      %cst_244 = arith.constant dense<0.000000e+00> : vector<1xf32>
      %467 = vector.multi_reduction <add>, %466, %cst_244 [0] : vector<8x1xf32> to vector<1xf32>
      %468 = vector.shape_cast %467 : vector<1xf32> to vector<1x1xf32>
      %469 = vector.broadcast %468 : vector<1x1xf32> to vector<8x1xf32>
      %470 = arith.divf %466, %469 : vector<8x1xf32>
      %471 = vector.broadcast %470 : vector<8x1xf32> to vector<8x32xf32>
      %472 = arith.mulf %256, %471 : vector<8x32xf32>
      %cst_245 = arith.constant dense<0.000000e+00> : vector<32xf32>
      %473 = vector.multi_reduction <add>, %472, %cst_245 [0] : vector<8x32xf32> to vector<32xf32>
      %474 = vector.shape_cast %473 : vector<32xf32> to vector<1x32xf32>
      %c0_246 = arith.constant 0 : index
      %c0_247 = arith.constant 0 : index
      %475 = vector.load %arg21[%c0_246, %c0_247] : memref<1x64xf32, #tpu.memory_space<vmem>>, vector<1x32xf32>
      tpu.vector_store %arg21[%c0_246, %c0_247], %455 {strides = array<i32>} : memref<1x64xf32, #tpu.memory_space<vmem>>, vector<1x32xf32>,
      %c0_248 = arith.constant 0 : index
      %c32_249 = arith.constant 32 : index
      %476 = vector.load %arg21[%c0_248, %c32_249] : memref<1x64xf32, #tpu.memory_space<vmem>>, vector<1x32xf32>
      tpu.vector_store %arg21[%c0_248, %c32_249], %474 {strides = array<i32>} : memref<1x64xf32, #tpu.memory_space<vmem>>, vector<1x32xf32>,
    } else {
    }
    return
  }
  func.func @transform_0(%arg0: i32, %arg1: i32) -> (i32, i32) {
    %c0_i32 = arith.constant 0 : i32
    %c0_i32_0 = arith.constant 0 : i32
    %c0_i32_1 = arith.constant 0 : i32
    return %c0_i32, %c0_i32_0 : i32, i32
  }
  func.func @transform_1(%arg0: i32, %arg1: i32) -> (i32, i32) {
    %c0_i32 = arith.constant 0 : i32
    %c0_i32_0 = arith.constant 0 : i32
    %c0_i32_1 = arith.constant 0 : i32
    return %c0_i32, %c0_i32_0 : i32, i32
  }
  func.func @transform_2(%arg0: i32, %arg1: i32) -> (i32, i32) {
    %c0_i32 = arith.constant 0 : i32
    %c0_i32_0 = arith.constant 0 : i32
    %c0_i32_1 = arith.constant 0 : i32
    return %c0_i32, %c0_i32_0 : i32, i32
  }
  func.func @transform_3(%arg0: i32, %arg1: i32) -> (i32, i32) {
    %c0_i32 = arith.constant 0 : i32
    %c0_i32_0 = arith.constant 0 : i32
    return %arg1, %c0_i32 : i32, i32
  }
  func.func @transform_4(%arg0: i32, %arg1: i32) -> (i32, i32) {
    %c0_i32 = arith.constant 0 : i32
    %c0_i32_0 = arith.constant 0 : i32
    return %arg1, %c0_i32 : i32, i32
  }
  func.func @transform_5(%arg0: i32, %arg1: i32) -> (i32, i32) {
    %c0_i32 = arith.constant 0 : i32
    %c0_i32_0 = arith.constant 0 : i32
    return %c0_i32, %arg1 : i32, i32
  }
  func.func @transform_6(%arg0: i32, %arg1: i32) -> (i32, i32) {
    %c0_i32 = arith.constant 0 : i32
    %c0_i32_0 = arith.constant 0 : i32
    %c0_i32_1 = arith.constant 0 : i32
    return %c0_i32, %c0_i32_0 : i32, i32
  }
  func.func @transform_7(%arg0: i32, %arg1: i32) -> (i32, i32) {
    %c0_i32 = arith.constant 0 : i32
    %c0_i32_0 = arith.constant 0 : i32
    %c0_i32_1 = arith.constant 0 : i32
    return %c0_i32, %c0_i32_0 : i32, i32
  }
  func.func @transform_8(%arg0: i32, %arg1: i32) -> (i32, i32) {
    %c0_i32 = arith.constant 0 : i32
    %c0_i32_0 = arith.constant 0 : i32
    %c0_i32_1 = arith.constant 0 : i32
    return %c0_i32, %c0_i32_0 : i32, i32
  }
  func.func @transform_9(%arg0: i32, %arg1: i32) -> (i32, i32) {
    %c0_i32 = arith.constant 0 : i32
    %c0_i32_0 = arith.constant 0 : i32
    %c0_i32_1 = arith.constant 0 : i32
    return %c0_i32, %c0_i32_0 : i32, i32
  }
  func.func @transform_10(%arg0: i32, %arg1: i32) -> (i32, i32) {
    %c0_i32 = arith.constant 0 : i32
    %c0_i32_0 = arith.constant 0 : i32
    %c0_i32_1 = arith.constant 0 : i32
    return %c0_i32, %c0_i32_0 : i32, i32
  }
  func.func @transform_11(%arg0: i32, %arg1: i32) -> (i32, i32, i32) {
    %c0_i32 = arith.constant 0 : i32
    %c0_i32_0 = arith.constant 0 : i32
    %c0_i32_1 = arith.constant 0 : i32
    %c0_i32_2 = arith.constant 0 : i32
    return %c0_i32, %c0_i32_0, %c0_i32_1 : i32, i32, i32
  }
  func.func @transform_12(%arg0: i32, %arg1: i32) -> (i32, i32, i32) {
    %c0_i32 = arith.constant 0 : i32
    %c0_i32_0 = arith.constant 0 : i32
    %c0_i32_1 = arith.constant 0 : i32
    %c0_i32_2 = arith.constant 0 : i32
    return %c0_i32, %c0_i32_0, %c0_i32_1 : i32, i32, i32
  }
  func.func @transform_13(%arg0: i32, %arg1: i32) -> (i32, i32) {
    %c0_i32 = arith.constant 0 : i32
    %c0_i32_0 = arith.constant 0 : i32
    %c0_i32_1 = arith.constant 0 : i32
    return %c0_i32, %c0_i32_0 : i32, i32
  }
  func.func @transform_14(%arg0: i32, %arg1: i32) -> (i32, i32) {
    %c0_i32 = arith.constant 0 : i32
    %c0_i32_0 = arith.constant 0 : i32
    %c0_i32_1 = arith.constant 0 : i32
    return %c0_i32, %c0_i32_0 : i32, i32
  }
  func.func @transform_15(%arg0: i32, %arg1: i32) -> (i32, i32) {
    %c0_i32 = arith.constant 0 : i32
    %c0_i32_0 = arith.constant 0 : i32
    %c0_i32_1 = arith.constant 0 : i32
    return %c0_i32, %c0_i32_0 : i32, i32
  }
  func.func @transform_16(%arg0: i32, %arg1: i32) -> (i32, i32) {
    %c0_i32 = arith.constant 0 : i32
    %c0_i32_0 = arith.constant 0 : i32
    %c0_i32_1 = arith.constant 0 : i32
    return %c0_i32, %c0_i32_0 : i32, i32
  }
  func.func @transform_17(%arg0: i32, %arg1: i32) -> (i32, i32, i32) {
    %c0_i32 = arith.constant 0 : i32
    %c0_i32_0 = arith.constant 0 : i32
    %c0_i32_1 = arith.constant 0 : i32
    %c0_i32_2 = arith.constant 0 : i32
    return %c0_i32, %c0_i32_0, %c0_i32_1 : i32, i32, i32
  }
  func.func @transform_18(%arg0: i32, %arg1: i32) -> (i32, i32, i32) {
    %c0_i32 = arith.constant 0 : i32
    %c0_i32_0 = arith.constant 0 : i32
    %c0_i32_1 = arith.constant 0 : i32
    %c0_i32_2 = arith.constant 0 : i32
    return %c0_i32, %c0_i32_0, %c0_i32_1 : i32, i32, i32
  }
  func.func @transform_19(%arg0: i32, %arg1: i32) -> (i32, i32) {
    %c0_i32 = arith.constant 0 : i32
    %c0_i32_0 = arith.constant 0 : i32
    %c0_i32_1 = arith.constant 0 : i32
    return %c0_i32, %c0_i32_0 : i32, i32
  }
  func.func @transform_20(%arg0: i32, %arg1: i32) -> (i32, i32) {
    %c0_i32 = arith.constant 0 : i32
    %c0_i32_0 = arith.constant 0 : i32
    %c0_i32_1 = arith.constant 0 : i32
    return %c0_i32, %c0_i32_0 : i32, i32
  }
}

</mosaic_0001>

<llo_original>
// kernel: nnconv_encoder_forward.1
$region0: #{nnconv_encoder_forward.1}
  #allocation0 [shape = 'u32[]', space=smem, size = 0x4, offset = 0x4, fixed_abs, tag = 'smem constant byte address 0x4 - core index']
  #allocation1 [shape = 'u32[144,128]{1,0:T(1,128)}', space=vmem, size = 0x12000, scoped, tag = 'internal scratch']
  #allocation2 [shape = 'f32[8,32]{1,0:T(8,128)}', space=vmem, size = 0x1000, scoped, tag = 'scratch operand']
  #allocation3 [shape = 'f32[8,32]{1,0:T(8,128)}', space=vmem, size = 0x1000, scoped, tag = 'scratch operand']
  #allocation4 [shape = 'f32[8,1]{1,0:T(8,128)}', space=vmem, size = 0x1000, scoped, tag = 'scratch operand']
  #allocation5 [shape = 'bf16[16,1024]{1,0:T(8,128)(2,1)}', space=vmem, size = 0x8000, scoped, tag = 'scratch operand']
  #allocation6 [shape = 'f32[16,32]{1,0:T(8,128)}', space=vmem, size = 0x2000, scoped, tag = 'scratch operand']
  #allocation7 [shape = 'bf16[8,64]{1,0:T(8,128)(2,1)}', space=vmem, size = 0x800, scoped, tag = 'scratch operand']
  #allocation8 [shape = 'bf16[1,96]{1,0:T(2,128)(2,1)}', space=vmem, size = 0x200, scoped, tag = 'scratch operand']
  %s0 = inlined_call_operand.vmem [shape: bf16[8,4], index: 0, kind: input, shape index: {}]
  %s1 = inlined_call_operand.vmem [shape: bf16[4,32], index: 1, kind: input, shape index: {}]
  %s2 = inlined_call_operand.vmem [shape: f32[1,32], index: 2, kind: input, shape index: {}]
  %s3 = inlined_call_operand.vmem [shape: bf16[16,5], index: 3, kind: input, shape index: {}]
  %s4 = inlined_call_operand.vmem [shape: s32[16,1], index: 4, kind: input, shape index: {}]
  %s5 = inlined_call_operand.vmem [shape: s32[1,16], index: 5, kind: input, shape index: {}]
  %s6 = inlined_call_operand.vmem [shape: bf16[5,128], index: 6, kind: input, shape index: {}]
  %s7 = inlined_call_operand.vmem [shape: f32[1,128], index: 7, kind: input, shape index: {}]
  %s8 = inlined_call_operand.hbm [shape: bf16[128,1024], index: 8, kind: input, shape index: {}]
  %s9 = inlined_call_operand.vmem [shape: f32[1,1024], index: 9, kind: input, shape index: {}]
  %s10 = inlined_call_operand.vmem [shape: f32[1,32], index: 10, kind: input, shape index: {}]
  %s11 = inlined_call_operand.vmem [shape: bf16[2,64,32], index: 11, kind: input, shape index: {}]
  %s12 = inlined_call_operand.vmem [shape: f32[2,1,32], index: 12, kind: input, shape index: {}]
  %s13 = inlined_call_operand.vmem [shape: bf16[32,32], index: 13, kind: input, shape index: {}]
  %s14 = inlined_call_operand.vmem [shape: bf16[32,32], index: 14, kind: input, shape index: {}]
  %s15 = inlined_call_operand.vmem [shape: f32[1,32], index: 15, kind: input, shape index: {}]
  %s16 = inlined_call_operand.vmem [shape: f32[1,32], index: 16, kind: input, shape index: {}]
  %s17 = inlined_call_operand.vmem [shape: bf16[4,96,32], index: 17, kind: input, shape index: {}]
  %s18 = inlined_call_operand.vmem [shape: f32[4,1,32], index: 18, kind: input, shape index: {}]
  %s19 = inlined_call_operand.hbm [shape: f32[1,64], index: 19, kind: output, shape index: {0}]
  %s20 = inlined_call_operand.hbm [shape: f32[8,32], index: 20, kind: output, shape index: {1}]
  %21 = xla_tuple %s19, %s20
  %s22 = sld [smem:[#allocation0]]
  $region145: #{nnconv_encoder_forward.1} parent=0
    _
  %s24 = ssub.s32 1, %s22
  %s25 = scalar_select 0, %s24, %s22
  $region1: #{nnconv_encoder_forward.1} parent=0
    #allocation9 [shape = 'u8[262144]{0}', space=vmem, size = 0x40000, scoped, tag = 'input window, operand 8, single buffered']
    #allocation10 [shape = 's32[2]{0}', space=sflag, size = 0x8, scoped, tag = 'scoped memory for nnconv_encoder_forward.1']
    #allocation11 [shape = 's32[2]{0}', space=sflag, size = 0x8, scoped, tag = 'scoped memory for nnconv_encoder_forward.1']
    #allocation12 [shape = 'u8[512]{0}', space=vmem, size = 0x400, scoped, tag = 'output window, operand 0, single buffered']
    #allocation13 [shape = 'u8[4096]{0}', space=vmem, size = 0x1000, scoped, tag = 'output window, operand 1, single buffered']
    #allocation14 [shape = 's32[1]{0}', space=sflag, size = 0x4, scoped, tag = 'scoped memory for nnconv_encoder_forward.1']
    %26 = vsyncpa [#allocation10], 0
    %27 = vsyncpa [#allocation11], 0
    %28 = vsyncpa [#allocation14], 0
    loop: start=0, step=1, limit=5
    $region2: #{nnconv_encoder_forward.1} parent=1 // loop_pre_header
      _
    $region3: #{nnconv_encoder_forward.1} parent=1 // loop_header
      %s30 = sphi 0, %s34
      %p31 = scmp.ge.s32.totalorder %s30, 5
      %s37 = sphi 0, %s49
      %s38 = sphi 0, %s45
      %s39 = sphi 0, %s37
      %s40 = sphi 0, %s38
      %s41 = sphi 0, %s39
      %s42 = sphi 0, %s40
      %s50 = sphi 0, %s50
      %s52 = sphi 0, %s50
      %s53 = sphi 0, %s52
      %s67 = sphi 0, %s53
      %s71 = sphi 0, %s71
      %s73 = sphi 0, %s71
      %s74 = sphi 0, %s73
      %s88 = sphi 0, %s74
      %s92 = sphi 0, %s92
      %s94 = sphi 0, %s92
      %s95 = sphi 0, %s94
      %s109 = sphi 0, %s95
      %s115 = sphi 0, %s117
      %s118 = sphi 0, %s115
      %s119 = sphi 0, %s118
      %s135 = sphi 0, %s119
      %s141 = sphi 0, %s143
      %s144 = sphi 0, %s141
      %s145 = sphi 0, %s144
      %s161 = sphi 0, %s145
      %s167 = sphi 0, %s169
      %s170 = sphi 0, %s167
      %s171 = sphi 0, %s170
      %s187 = sphi 0, %s171
      %s191 = sphi 0, %s191
      %s193 = sphi 0, %s191
      %s194 = sphi 0, %s193
      %s208 = sphi 0, %s194
      %s212 = sphi 0, %s212
      %s214 = sphi 0, %s212
      %s215 = sphi 0, %s214
      %s229 = sphi 0, %s215
      %s233 = sphi 0, %s233
      %s235 = sphi 0, %s233
      %s236 = sphi 0, %s235
      %s250 = sphi 0, %s236
      %s254 = sphi 0, %s254
      %s256 = sphi 0, %s254
      %s257 = sphi 0, %s256
      %s271 = sphi 0, %s257
      %s275 = sphi 0, %s275
      %s277 = sphi 0, %s275
      %s278 = sphi 0, %s277
      %s292 = sphi 0, %s278
      %s296 = sphi 0, %s296
      %s298 = sphi 0, %s296
      %s299 = sphi 0, %s298
      %s313 = sphi 0, %s299
      %s317 = sphi 0, %s317
      %s319 = sphi 0, %s317
      %s320 = sphi 0, %s319
      %s334 = sphi 0, %s320
      %s338 = sphi 0, %s338
      %s340 = sphi 0, %s338
      %s341 = sphi 0, %s340
      %s355 = sphi 0, %s341
      %s359 = sphi 0, %s359
      %s361 = sphi 0, %s359
      %s362 = sphi 0, %s361
      %s376 = sphi 0, %s362
      %s380 = sphi 0, %s380
      %s382 = sphi 0, %s380
      %s383 = sphi 0, %s382
      %s397 = sphi 0, %s383
      %s401 = sphi 0, %s401
      %s403 = sphi 0, %s401
      %s404 = sphi 0, %s403
      %s418 = sphi 0, %s404
      %s422 = sphi 0, %s422
      %s424 = sphi 0, %s422
      %s425 = sphi 0, %s424
      %s439 = sphi 0, %s425
      %s443 = sphi 0, %s443
      %s445 = sphi 0, %s443
      %s446 = sphi 0, %s445
      %s460 = sphi 0, %s446
      %s464 = sphi 0, %s464
      %s466 = sphi 0, %s464
      %s467 = sphi 0, %s466
      %s481 = sphi 0, %s467
      %s485 = sphi 0, %s485
      %s487 = sphi 0, %s485
      %s488 = sphi 0, %s487
      %s502 = sphi 0, %s488
    $region4: #{nnconv_encoder_forward.1} parent=1 // loop_header_branch
      %33 = sbr.rel (%p31) target = $region8
    $region5: #{nnconv_encoder_forward.1} parent=1 // loop_body
      %s35 = ssub.s32 %s30, 1
      %s36 = ssub.s32 %s30, 2
      %s43 = sadd.s32 1, %s38
      %p44 = scmp.ge.s32.totalorder %s43, 1
      %s45 = scalar_select %p44, 0, %s43
      %s46 = sadd.s32 1, %s37
      %s47 = scalar_select %p44, %s46, %s37
      %p48 = scmp.ge.s32.totalorder %s47, 3
      %s49 = scalar_select %p48, 0, %s47
      %s51 = sadd.s32 %s50, 1
      %p54 = scmp.eq.s32.totalorder %s30, 2
      %p55 = scmp.ne.s32.totalorder %s50, %s52
      %p56 = scmp.eq.s32.totalorder %s30, 0
      %p57 = por %p55, %p56
      %p58 = scmp.ne.s32.totalorder %s50, %s52
      %p59 = scmp.eq.s32.totalorder %s35, 2
      %p60 = por %p58, %p59
      %p61 = scmp.ne.s32.totalorder %s52, %s53
      %p62 = scmp.eq.s32.totalorder %s35, 0
      %p63 = por %p61, %p62
      %p64 = scmp.ne.s32.totalorder %s52, %s53
      %p65 = scmp.eq.s32.totalorder %s36, 2
      %p66 = por %p64, %p65
      %p68 = scmp.ne.s32.totalorder %s53, %s67
      %p69 = scmp.eq.s32.totalorder %s36, 0
      %p70 = por %p68, %p69
      %s72 = sadd.s32 %s71, 1
      %p75 = scmp.eq.s32.totalorder %s30, 2
      %p76 = scmp.ne.s32.totalorder %s71, %s73
      %p77 = scmp.eq.s32.totalorder %s30, 0
      %p78 = por %p76, %p77
      %p79 = scmp.ne.s32.totalorder %s71, %s73
      %p80 = scmp.eq.s32.totalorder %s35, 2
      %p81 = por %p79, %p80
      %p82 = scmp.ne.s32.totalorder %s73, %s74
      %p83 = scmp.eq.s32.totalorder %s35, 0
      %p84 = por %p82, %p83
      %p85 = scmp.ne.s32.totalorder %s73, %s74
      %p86 = scmp.eq.s32.totalorder %s36, 2
      %p87 = por %p85, %p86
      %p89 = scmp.ne.s32.totalorder %s74, %s88
      %p90 = scmp.eq.s32.totalorder %s36, 0
      %p91 = por %p89, %p90
      %s93 = sadd.s32 %s92, 1
      %p96 = scmp.eq.s32.totalorder %s30, 2
      %p97 = scmp.ne.s32.totalorder %s92, %s94
      %p98 = scmp.eq.s32.totalorder %s30, 0
      %p99 = por %p97, %p98
      %p100 = scmp.ne.s32.totalorder %s92, %s94
      %p101 = scmp.eq.s32.totalorder %s35, 2
      %p102 = por %p100, %p101
      %p103 = scmp.ne.s32.totalorder %s94, %s95
      %p104 = scmp.eq.s32.totalorder %s35, 0
      %p105 = por %p103, %p104
      %p106 = scmp.ne.s32.totalorder %s94, %s95
      %p107 = scmp.eq.s32.totalorder %s36, 2
      %p108 = por %p106, %p107
      %p110 = scmp.ne.s32.totalorder %s95, %s109
      %p111 = scmp.eq.s32.totalorder %s36, 0
      %p112 = por %p110, %p111
      %s113 = ssub.s32 %s38, %s45
      %p114 = scmp.eq.s32.totalorder %s113, 0
      %s116 = sadd.s32 %s115, 1
      %s117 = scalar_select %p114, %s115, %s116
      %p120 = pneg %p114
      %p121 = scmp.eq.s32.totalorder %s30, 2
      %p122 = por %p120, %p121
      %p123 = scmp.ne.s32.totalorder %s115, %s118
      %p124 = scmp.eq.s32.totalorder %s30, 0
      %p125 = por %p123, %p124
      %p126 = scmp.ne.s32.totalorder %s115, %s118
      %p127 = scmp.eq.s32.totalorder %s35, 2
      %p128 = por %p126, %p127
      %p129 = scmp.ne.s32.totalorder %s118, %s119
      %p130 = scmp.eq.s32.totalorder %s35, 0
      %p131 = por %p129, %p130
      %p132 = scmp.ne.s32.totalorder %s118, %s119
      %p133 = scmp.eq.s32.totalorder %s36, 2
      %p134 = por %p132, %p133
      %p136 = scmp.ne.s32.totalorder %s119, %s135
      %p137 = scmp.eq.s32.totalorder %s36, 0
      %p138 = por %p136, %p137
      %s139 = ssub.s32 %s38, %s45
      %p140 = scmp.eq.s32.totalorder %s139, 0
      %s142 = sadd.s32 %s141, 1
      %s143 = scalar_select %p140, %s141, %s142
      %p146 = pneg %p140
      %p147 = scmp.eq.s32.totalorder %s30, 2
      %p148 = por %p146, %p147
      %p149 = scmp.ne.s32.totalorder %s141, %s144
      %p150 = scmp.eq.s32.totalorder %s30, 0
      %p151 = por %p149, %p150
      %p152 = scmp.ne.s32.totalorder %s141, %s144
      %p153 = scmp.eq.s32.totalorder %s35, 2
      %p154 = por %p152, %p153
      %p155 = scmp.ne.s32.totalorder %s144, %s145
      %p156 = scmp.eq.s32.totalorder %s35, 0
      %p157 = por %p155, %p156
      %p158 = scmp.ne.s32.totalorder %s144, %s145
      %p159 = scmp.eq.s32.totalorder %s36, 2
      %p160 = por %p158, %p159
      %p162 = scmp.ne.s32.totalorder %s145, %s161
      %p163 = scmp.eq.s32.totalorder %s36, 0
      %p164 = por %p162, %p163
      %s165 = ssub.s32 %s38, %s45
      %p166 = scmp.eq.s32.totalorder %s165, 0
      %s168 = sadd.s32 %s167, 1
      %s169 = scalar_select %p166, %s167, %s168
      %p172 = pneg %p166
      %p173 = scmp.eq.s32.totalorder %s30, 2
      %p174 = por %p172, %p173
      %p175 = scmp.ne.s32.totalorder %s167, %s170
      %p176 = scmp.eq.s32.totalorder %s30, 0
      %p177 = por %p175, %p176
      %p178 = scmp.ne.s32.totalorder %s167, %s170
      %p179 = scmp.eq.s32.totalorder %s35, 2
      %p180 = por %p178, %p179
      %p181 = scmp.ne.s32.totalorder %s170, %s171
      %p182 = scmp.eq.s32.totalorder %s35, 0
      %p183 = por %p181, %p182
      %p184 = scmp.ne.s32.totalorder %s170, %s171
      %p185 = scmp.eq.s32.totalorder %s36, 2
      %p186 = por %p184, %p185
      %p188 = scmp.ne.s32.totalorder %s171, %s187
      %p189 = scmp.eq.s32.totalorder %s36, 0
      %p190 = por %p188, %p189
      %s192 = sadd.s32 %s191, 1
      %p195 = scmp.eq.s32.totalorder %s30, 2
      %p196 = scmp.ne.s32.totalorder %s191, %s193
      %p197 = scmp.eq.s32.totalorder %s30, 0
      %p198 = por %p196, %p197
      %p199 = scmp.ne.s32.totalorder %s191, %s193
      %p200 = scmp.eq.s32.totalorder %s35, 2
      %p201 = por %p199, %p200
      %p202 = scmp.ne.s32.totalorder %s193, %s194
      %p203 = scmp.eq.s32.totalorder %s35, 0
      %p204 = por %p202, %p203
      %p205 = scmp.ne.s32.totalorder %s193, %s194
      %p206 = scmp.eq.s32.totalorder %s36, 2
      %p207 = por %p205, %p206
      %p209 = scmp.ne.s32.totalorder %s194, %s208
      %p210 = scmp.eq.s32.totalorder %s36, 0
      %p211 = por %p209, %p210
      %s213 = sadd.s32 %s212, 1
      %p216 = scmp.eq.s32.totalorder %s30, 2
      %p217 = scmp.ne.s32.totalorder %s212, %s214
      %p218 = scmp.eq.s32.totalorder %s30, 0
      %p219 = por %p217, %p218
      %p220 = scmp.ne.s32.totalorder %s212, %s214
      %p221 = scmp.eq.s32.totalorder %s35, 2
      %p222 = por %p220, %p221
      %p223 = scmp.ne.s32.totalorder %s214, %s215
      %p224 = scmp.eq.s32.totalorder %s35, 0
      %p225 = por %p223, %p224
      %p226 = scmp.ne.s32.totalorder %s214, %s215
      %p227 = scmp.eq.s32.totalorder %s36, 2
      %p228 = por %p226, %p227
      %p230 = scmp.ne.s32.totalorder %s215, %s229
      %p231 = scmp.eq.s32.totalorder %s36, 0
      %p232 = por %p230, %p231
      %s234 = sadd.s32 %s233, 1
      %p237 = scmp.eq.s32.totalorder %s30, 2
      %p238 = scmp.ne.s32.totalorder %s233, %s235
      %p239 = scmp.eq.s32.totalorder %s30, 0
      %p240 = por %p238, %p239
      %p241 = scmp.ne.s32.totalorder %s233, %s235
      %p242 = scmp.eq.s32.totalorder %s35, 2
      %p243 = por %p241, %p242
      %p244 = scmp.ne.s32.totalorder %s235, %s236
      %p245 = scmp.eq.s32.totalorder %s35, 0
      %p246 = por %p244, %p245
      %p247 = scmp.ne.s32.totalorder %s235, %s236
      %p248 = scmp.eq.s32.totalorder %s36, 2
      %p249 = por %p247, %p248
      %p251 = scmp.ne.s32.totalorder %s236, %s250
      %p252 = scmp.eq.s32.totalorder %s36, 0
      %p253 = por %p251, %p252
      %s255 = sadd.s32 %s254, 1
      %p258 = scmp.eq.s32.totalorder %s30, 2
      %p259 = scmp.ne.s32.totalorder %s254, %s256
      %p260 = scmp.eq.s32.totalorder %s30, 0
      %p261 = por %p259, %p260
      %p262 = scmp.ne.s32.totalorder %s254, %s256
      %p263 = scmp.eq.s32.totalorder %s35, 2
      %p264 = por %p262, %p263
      %p265 = scmp.ne.s32.totalorder %s256, %s257
      %p266 = scmp.eq.s32.totalorder %s35, 0
      %p267 = por %p265, %p266
      %p268 = scmp.ne.s32.totalorder %s256, %s257
      %p269 = scmp.eq.s32.totalorder %s36, 2
      %p270 = por %p268, %p269
      %p272 = scmp.ne.s32.totalorder %s257, %s271
      %p273 = scmp.eq.s32.totalorder %s36, 0
      %p274 = por %p272, %p273
      %s276 = sadd.s32 %s275, 1
      %p279 = scmp.eq.s32.totalorder %s30, 2
      %p280 = scmp.ne.s32.totalorder %s275, %s277
      %p281 = scmp.eq.s32.totalorder %s30, 0
      %p282 = por %p280, %p281
      %p283 = scmp.ne.s32.totalorder %s275, %s277
      %p284 = scmp.eq.s32.totalorder %s35, 2
      %p285 = por %p283, %p284
      %p286 = scmp.ne.s32.totalorder %s277, %s278
      %p287 = scmp.eq.s32.totalorder %s35, 0
      %p288 = por %p286, %p287
      %p289 = scmp.ne.s32.totalorder %s277, %s278
      %p290 = scmp.eq.s32.totalorder %s36, 2
      %p291 = por %p289, %p290
      %p293 = scmp.ne.s32.totalorder %s278, %s292
      %p294 = scmp.eq.s32.totalorder %s36, 0
      %p295 = por %p293, %p294
      %s297 = sadd.s32 %s296, 1
      %p300 = scmp.eq.s32.totalorder %s30, 2
      %p301 = scmp.ne.s32.totalorder %s296, %s298
      %p302 = scmp.eq.s32.totalorder %s30, 0
      %p303 = por %p301, %p302
      %p304 = scmp.ne.s32.totalorder %s296, %s298
      %p305 = scmp.eq.s32.totalorder %s35, 2
      %p306 = por %p304, %p305
      %p307 = scmp.ne.s32.totalorder %s298, %s299
      %p308 = scmp.eq.s32.totalorder %s35, 0
      %p309 = por %p307, %p308
      %p310 = scmp.ne.s32.totalorder %s298, %s299
      %p311 = scmp.eq.s32.totalorder %s36, 2
      %p312 = por %p310, %p311
      %p314 = scmp.ne.s32.totalorder %s299, %s313
      %p315 = scmp.eq.s32.totalorder %s36, 0
      %p316 = por %p314, %p315
      %s318 = sadd.s32 %s317, 1
      %p321 = scmp.eq.s32.totalorder %s30, 2
      %p322 = scmp.ne.s32.totalorder %s317, %s319
      %p323 = scmp.eq.s32.totalorder %s30, 0
      %p324 = por %p322, %p323
      %p325 = scmp.ne.s32.totalorder %s317, %s319
      %p326 = scmp.eq.s32.totalorder %s35, 2
      %p327 = por %p325, %p326
      %p328 = scmp.ne.s32.totalorder %s319, %s320
      %p329 = scmp.eq.s32.totalorder %s35, 0
      %p330 = por %p328, %p329
      %p331 = scmp.ne.s32.totalorder %s319, %s320
      %p332 = scmp.eq.s32.totalorder %s36, 2
      %p333 = por %p331, %p332
      %p335 = scmp.ne.s32.totalorder %s320, %s334
      %p336 = scmp.eq.s32.totalorder %s36, 0
      %p337 = por %p335, %p336
      %s339 = sadd.s32 %s338, 1
      %p342 = scmp.eq.s32.totalorder %s30, 2
      %p343 = scmp.ne.s32.totalorder %s338, %s340
      %p344 = scmp.eq.s32.totalorder %s30, 0
      %p345 = por %p343, %p344
      %p346 = scmp.ne.s32.totalorder %s338, %s340
      %p347 = scmp.eq.s32.totalorder %s35, 2
      %p348 = por %p346, %p347
      %p349 = scmp.ne.s32.totalorder %s340, %s341
      %p350 = scmp.eq.s32.totalorder %s35, 0
      %p351 = por %p349, %p350
      %p352 = scmp.ne.s32.totalorder %s340, %s341
      %p353 = scmp.eq.s32.totalorder %s36, 2
      %p354 = por %p352, %p353
      %p356 = scmp.ne.s32.totalorder %s341, %s355
      %p357 = scmp.eq.s32.totalorder %s36, 0
      %p358 = por %p356, %p357
      %s360 = sadd.s32 %s359, 1
      %p363 = scmp.eq.s32.totalorder %s30, 2
      %p364 = scmp.ne.s32.totalorder %s359, %s361
      %p365 = scmp.eq.s32.totalorder %s30, 0
      %p366 = por %p364, %p365
      %p367 = scmp.ne.s32.totalorder %s359, %s361
      %p368 = scmp.eq.s32.totalorder %s35, 2
      %p369 = por %p367, %p368
      %p370 = scmp.ne.s32.totalorder %s361, %s362
      %p371 = scmp.eq.s32.totalorder %s35, 0
      %p372 = por %p370, %p371
      %p373 = scmp.ne.s32.totalorder %s361, %s362
      %p374 = scmp.eq.s32.totalorder %s36, 2
      %p375 = por %p373, %p374
      %p377 = scmp.ne.s32.totalorder %s362, %s376
      %p378 = scmp.eq.s32.totalorder %s36, 0
      %p379 = por %p377, %p378
      %s381 = sadd.s32 %s380, 1
      %p384 = scmp.eq.s32.totalorder %s30, 2
      %p385 = scmp.ne.s32.totalorder %s380, %s382
      %p386 = scmp.eq.s32.totalorder %s30, 0
      %p387 = por %p385, %p386
      %p388 = scmp.ne.s32.totalorder %s380, %s382
      %p389 = scmp.eq.s32.totalorder %s35, 2
      %p390 = por %p388, %p389
      %p391 = scmp.ne.s32.totalorder %s382, %s383
      %p392 = scmp.eq.s32.totalorder %s35, 0
      %p393 = por %p391, %p392
      %p394 = scmp.ne.s32.totalorder %s382, %s383
      %p395 = scmp.eq.s32.totalorder %s36, 2
      %p396 = por %p394, %p395
      %p398 = scmp.ne.s32.totalorder %s383, %s397
      %p399 = scmp.eq.s32.totalorder %s36, 0
      %p400 = por %p398, %p399
      %s402 = sadd.s32 %s401, 1
      %p405 = scmp.eq.s32.totalorder %s30, 2
      %p406 = scmp.ne.s32.totalorder %s401, %s403
      %p407 = scmp.eq.s32.totalorder %s30, 0
      %p408 = por %p406, %p407
      %p409 = scmp.ne.s32.totalorder %s401, %s403
      %p410 = scmp.eq.s32.totalorder %s35, 2
      %p411 = por %p409, %p410
      %p412 = scmp.ne.s32.totalorder %s403, %s404
      %p413 = scmp.eq.s32.totalorder %s35, 0
      %p414 = por %p412, %p413
      %p415 = scmp.ne.s32.totalorder %s403, %s404
      %p416 = scmp.eq.s32.totalorder %s36, 2
      %p417 = por %p415, %p416
      %p419 = scmp.ne.s32.totalorder %s404, %s418
      %p420 = scmp.eq.s32.totalorder %s36, 0
      %p421 = por %p419, %p420
      %s423 = sadd.s32 %s422, 1
      %p426 = scmp.eq.s32.totalorder %s30, 2
      %p427 = scmp.ne.s32.totalorder %s422, %s424
      %p428 = scmp.eq.s32.totalorder %s30, 0
      %p429 = por %p427, %p428
      %p430 = scmp.ne.s32.totalorder %s422, %s424
      %p431 = scmp.eq.s32.totalorder %s35, 2
      %p432 = por %p430, %p431
      %p433 = scmp.ne.s32.totalorder %s424, %s425
      %p434 = scmp.eq.s32.totalorder %s35, 0
      %p435 = por %p433, %p434
      %p436 = scmp.ne.s32.totalorder %s424, %s425
      %p437 = scmp.eq.s32.totalorder %s36, 2
      %p438 = por %p436, %p437
      %p440 = scmp.ne.s32.totalorder %s425, %s439
      %p441 = scmp.eq.s32.totalorder %s36, 0
      %p442 = por %p440, %p441
      %s444 = sadd.s32 %s443, 1
      %p447 = scmp.eq.s32.totalorder %s30, 2
      %p448 = scmp.ne.s32.totalorder %s443, %s445
      %p449 = scmp.eq.s32.totalorder %s30, 0
      %p450 = por %p448, %p449
      %p451 = scmp.ne.s32.totalorder %s443, %s445
      %p452 = scmp.eq.s32.totalorder %s35, 2
      %p453 = por %p451, %p452
      %p454 = scmp.ne.s32.totalorder %s445, %s446
      %p455 = scmp.eq.s32.totalorder %s35, 0
      %p456 = por %p454, %p455
      %p457 = scmp.ne.s32.totalorder %s445, %s446
      %p458 = scmp.eq.s32.totalorder %s36, 2
      %p459 = por %p457, %p458
      %p461 = scmp.ne.s32.totalorder %s446, %s460
      %p462 = scmp.eq.s32.totalorder %s36, 0
      %p463 = por %p461, %p462
      %s465 = sadd.s32 %s464, 1
      %p468 = scmp.eq.s32.totalorder %s30, 2
      %p469 = scmp.ne.s32.totalorder %s464, %s466
      %p470 = scmp.eq.s32.totalorder %s30, 0
      %p471 = por %p469, %p470
      %p472 = scmp.ne.s32.totalorder %s464, %s466
      %p473 = scmp.eq.s32.totalorder %s35, 2
      %p474 = por %p472, %p473
      %p475 = scmp.ne.s32.totalorder %s466, %s467
      %p476 = scmp.eq.s32.totalorder %s35, 0
      %p477 = por %p475, %p476
      %p478 = scmp.ne.s32.totalorder %s466, %s467
      %p479 = scmp.eq.s32.totalorder %s36, 2
      %p480 = por %p478, %p479
      %p482 = scmp.ne.s32.totalorder %s467, %s481
      %p483 = scmp.eq.s32.totalorder %s36, 0
      %p484 = por %p482, %p483
      %s486 = sadd.s32 %s485, 1
      %p489 = scmp.eq.s32.totalorder %s30, 2
      %p490 = scmp.ne.s32.totalorder %s485, %s487
      %p491 = scmp.eq.s32.totalorder %s30, 0
      %p492 = por %p490, %p491
      %p493 = scmp.ne.s32.totalorder %s485, %s487
      %p494 = scmp.eq.s32.totalorder %s35, 2
      %p495 = por %p493, %p494
      %p496 = scmp.ne.s32.totalorder %s487, %s488
      %p497 = scmp.eq.s32.totalorder %s35, 0
      %p498 = por %p496, %p497
      %p499 = scmp.ne.s32.totalorder %s487, %s488
      %p500 = scmp.eq.s32.totalorder %s36, 2
      %p501 = por %p499, %p500
      %p503 = scmp.ne.s32.totalorder %s488, %s502
      %p504 = scmp.eq.s32.totalorder %s36, 0
      %p505 = por %p503, %p504
      %p506 = scmp.le.s32.totalorder 1, %s30
      %p507 = scmp.lt.s32.totalorder %s30, 4
      %p508 = pnand %p506, %p507
      %p509 = pneg %p508
      // Predicated region
      $region9: #{nnconv_encoder_forward.1} parent=5 // pred_check
        _
      $region10: #{nnconv_encoder_forward.1} parent=5 // pred_check_branch
        %511 = sbr.rel (%p508) target = $region12
      $region11: #{nnconv_encoder_forward.1} parent=5 // pred_region
        %s512 = ssub.s32 %s30, 1
        // Predicated region
        $region13: #{nnconv_encoder_forward.1} parent=11 // pred_check
          %p513 = pneg %p63
        $region14: #{nnconv_encoder_forward.1} parent=11 // pred_check_branch
          %515 = sbr.rel (%p513) target = $region16
        $region15: #{nnconv_encoder_forward.1} parent=11 // pred_region
          _
        $region16: #{nnconv_encoder_forward.1} parent=11 // pred_fallthru
          _
        // Predicated region
        $region17: #{nnconv_encoder_forward.1} parent=11 // pred_check
          %p516 = pneg %p84
        $region18: #{nnconv_encoder_forward.1} parent=11 // pred_check_branch
          %518 = sbr.rel (%p516) target = $region20
        $region19: #{nnconv_encoder_forward.1} parent=11 // pred_region
          _
        $region20: #{nnconv_encoder_forward.1} parent=11 // pred_fallthru
          _
        // Predicated region
        $region21: #{nnconv_encoder_forward.1} parent=11 // pred_check
          %p519 = pneg %p105
        $region22: #{nnconv_encoder_forward.1} parent=11 // pred_check_branch
          %521 = sbr.rel (%p519) target = $region24
        $region23: #{nnconv_encoder_forward.1} parent=11 // pred_region
          _
        $region24: #{nnconv_encoder_forward.1} parent=11 // pred_fallthru
          _
        // Predicated region
        $region25: #{nnconv_encoder_forward.1} parent=11 // pred_check
          %p522 = pneg %p131
        $region26: #{nnconv_encoder_forward.1} parent=11 // pred_check_branch
          %524 = sbr.rel (%p522) target = $region28
        $region27: #{nnconv_encoder_forward.1} parent=11 // pred_region
          %s525 = smul.u32 2, %s40
          %p526 = scmp.lt.s32.totalorder %s525, 1
          %s527 = scalar_select %p526, %s525, 1
          %s528 = smul.addr %s527, 4
          %s529 = scalar_lea.vmem %s3, %s528
          %s530 = smul.u32 2, %s40
        $region28: #{nnconv_encoder_forward.1} parent=11 // pred_fallthru
          _
        // Predicated region
        $region29: #{nnconv_encoder_forward.1} parent=11 // pred_check
          %p531 = pneg %p157
        $region30: #{nnconv_encoder_forward.1} parent=11 // pred_check_branch
          %533 = sbr.rel (%p531) target = $region32
        $region31: #{nnconv_encoder_forward.1} parent=11 // pred_region
          %s534 = smul.u32 2, %s40
          %p535 = scmp.lt.s32.totalorder %s534, 1
          %s536 = scalar_select %p535, %s534, 1
          %s537 = smul.addr %s536, 8
          %s538 = scalar_lea.vmem %s4, %s537
          %s539 = smul.u32 2, %s40
        $region32: #{nnconv_encoder_forward.1} parent=11 // pred_fallthru
          _
        // Predicated region
        $region33: #{nnconv_encoder_forward.1} parent=11 // pred_check
          %p540 = pneg %p183
        $region34: #{nnconv_encoder_forward.1} parent=11 // pred_check_branch
          %542 = sbr.rel (%p540) target = $region36
        $region35: #{nnconv_encoder_forward.1} parent=11 // pred_region
          %p543 = scmp.lt.s32.totalorder %s40, 0
          %s544 = scalar_select %p543, %s40, 0
          %s545 = scalar_lea.vmem %s5, %s544
        $region36: #{nnconv_encoder_forward.1} parent=11 // pred_fallthru
          _
        // Predicated region
        $region37: #{nnconv_encoder_forward.1} parent=11 // pred_check
          %p546 = pneg %p204
        $region38: #{nnconv_encoder_forward.1} parent=11 // pred_check_branch
          %548 = sbr.rel (%p546) target = $region40
        $region39: #{nnconv_encoder_forward.1} parent=11 // pred_region
          _
        $region40: #{nnconv_encoder_forward.1} parent=11 // pred_fallthru
          _
        // Predicated region
        $region41: #{nnconv_encoder_forward.1} parent=11 // pred_check
          %p549 = pneg %p225
        $region42: #{nnconv_encoder_forward.1} parent=11 // pred_check_branch
          %551 = sbr.rel (%p549) target = $region44
        $region43: #{nnconv_encoder_forward.1} parent=11 // pred_region
          _
        $region44: #{nnconv_encoder_forward.1} parent=11 // pred_fallthru
          _
        // Predicated region
        $region45: #{nnconv_encoder_forward.1} parent=11 // pred_check
          %p552 = pneg %p246
        $region46: #{nnconv_encoder_forward.1} parent=11 // pred_check_branch
          %554 = sbr.rel (%p552) target = $region48
        $region47: #{nnconv_encoder_forward.1} parent=11 // pred_region
          %s556 = ssub.s32 8192, 8192
          %557 = vsyncadd [#allocation10], %s556
          %s558 = sshll.u32 [#allocation9], 4
          %s559 = int_to_ptr.vmem [resolvable:$true] %s558
          %564 = dma.hbm_to_vmem [thread:$0]  %s8, 8192, %s559, [#allocation10], 512, 512, 32
        $region48: #{nnconv_encoder_forward.1} parent=11 // pred_fallthru
          _
        // Predicated region
        $region49: #{nnconv_encoder_forward.1} parent=11 // pred_check
          %p565 = pneg %p267
        $region50: #{nnconv_encoder_forward.1} parent=11 // pred_check_branch
          %567 = sbr.rel (%p565) target = $region52
        $region51: #{nnconv_encoder_forward.1} parent=11 // pred_region
          _
        $region52: #{nnconv_encoder_forward.1} parent=11 // pred_fallthru
          _
        // Predicated region
        $region53: #{nnconv_encoder_forward.1} parent=11 // pred_check
          %p568 = pneg %p288
        $region54: #{nnconv_encoder_forward.1} parent=11 // pred_check_branch
          %570 = sbr.rel (%p568) target = $region56
        $region55: #{nnconv_encoder_forward.1} parent=11 // pred_region
          _
        $region56: #{nnconv_encoder_forward.1} parent=11 // pred_fallthru
          _
        // Predicated region
        $region57: #{nnconv_encoder_forward.1} parent=11 // pred_check
          %p571 = pneg %p309
        $region58: #{nnconv_encoder_forward.1} parent=11 // pred_check_branch
          %573 = sbr.rel (%p571) target = $region60
        $region59: #{nnconv_encoder_forward.1} parent=11 // pred_region
          _
        $region60: #{nnconv_encoder_forward.1} parent=11 // pred_fallthru
          _
        // Predicated region
        $region61: #{nnconv_encoder_forward.1} parent=11 // pred_check
          %p574 = pneg %p330
        $region62: #{nnconv_encoder_forward.1} parent=11 // pred_check_branch
          %576 = sbr.rel (%p574) target = $region64
        $region63: #{nnconv_encoder_forward.1} parent=11 // pred_region
          _
        $region64: #{nnconv_encoder_forward.1} parent=11 // pred_fallthru
          _
        // Predicated region
        $region65: #{nnconv_encoder_forward.1} parent=11 // pred_check
          %p577 = pneg %p351
        $region66: #{nnconv_encoder_forward.1} parent=11 // pred_check_branch
          %579 = sbr.rel (%p577) target = $region68
        $region67: #{nnconv_encoder_forward.1} parent=11 // pred_region
          _
        $region68: #{nnconv_encoder_forward.1} parent=11 // pred_fallthru
          _
        // Predicated region
        $region69: #{nnconv_encoder_forward.1} parent=11 // pred_check
          %p580 = pneg %p372
        $region70: #{nnconv_encoder_forward.1} parent=11 // pred_check_branch
          %582 = sbr.rel (%p580) target = $region72
        $region71: #{nnconv_encoder_forward.1} parent=11 // pred_region
          _
        $region72: #{nnconv_encoder_forward.1} parent=11 // pred_fallthru
          _
        // Predicated region
        $region73: #{nnconv_encoder_forward.1} parent=11 // pred_check
          %p583 = pneg %p393
        $region74: #{nnconv_encoder_forward.1} parent=11 // pred_check_branch
          %585 = sbr.rel (%p583) target = $region76
        $region75: #{nnconv_encoder_forward.1} parent=11 // pred_region
          _
        $region76: #{nnconv_encoder_forward.1} parent=11 // pred_fallthru
          _
        // Predicated region
        $region77: #{nnconv_encoder_forward.1} parent=11 // pred_check
          %p586 = pneg %p414
        $region78: #{nnconv_encoder_forward.1} parent=11 // pred_check_branch
          %588 = sbr.rel (%p586) target = $region80
        $region79: #{nnconv_encoder_forward.1} parent=11 // pred_region
          _
        $region80: #{nnconv_encoder_forward.1} parent=11 // pred_fallthru
          _
        // Predicated region
        $region81: #{nnconv_encoder_forward.1} parent=11 // pred_check
          %p589 = pneg %p435
        $region82: #{nnconv_encoder_forward.1} parent=11 // pred_check_branch
          %591 = sbr.rel (%p589) target = $region84
        $region83: #{nnconv_encoder_forward.1} parent=11 // pred_region
          _
        $region84: #{nnconv_encoder_forward.1} parent=11 // pred_fallthru
          _
        // Predicated region
        $region85: #{nnconv_encoder_forward.1} parent=11 // pred_check
          %p592 = pneg %p456
        $region86: #{nnconv_encoder_forward.1} parent=11 // pred_check_branch
          %594 = sbr.rel (%p592) target = $region88
        $region87: #{nnconv_encoder_forward.1} parent=11 // pred_region
          _
        $region88: #{nnconv_encoder_forward.1} parent=11 // pred_fallthru
          _
      $region12: #{nnconv_encoder_forward.1} parent=5 // pred_fallthru
        _
      %p595 = scmp.lt.s32.totalorder %s30, 3
      // Predicated region
      $region89: #{nnconv_encoder_forward.1} parent=5 // pred_check
        %p596 = pneg %p595
      $region90: #{nnconv_encoder_forward.1} parent=5 // pred_check_branch
        %598 = sbr.rel (%p596) target = $region92
      $region91: #{nnconv_encoder_forward.1} parent=5 // pred_region
        _
      $region92: #{nnconv_encoder_forward.1} parent=5 // pred_fallthru
        _
      %p599 = scmp.le.s32.totalorder 1, %s30
      %p600 = scmp.lt.s32.totalorder %s30, 4
      %p601 = pnand %p599, %p600
      %p602 = pneg %p601
      // Predicated region
      $region93: #{nnconv_encoder_forward.1} parent=5 // pred_check
        _
      $region94: #{nnconv_encoder_forward.1} parent=5 // pred_check_branch
        %604 = sbr.rel (%p601) target = $region96
      $region95: #{nnconv_encoder_forward.1} parent=5 // pred_region
        %s605 = ssub.s32 %s30, 1
        // Predicated region
        $region97: #{nnconv_encoder_forward.1} parent=95 // pred_check
          %p606 = pneg %p246
        $region98: #{nnconv_encoder_forward.1} parent=95 // pred_check_branch
          %608 = sbr.rel (%p606) target = $region100
        $region99: #{nnconv_encoder_forward.1} parent=95 // pred_region
          %609 = dma.done [#allocation10], 8192
        $region100: #{nnconv_encoder_forward.1} parent=95 // pred_fallthru
          _
        %p610 = pneg %p63
        %p611 = pneg %p60
        %p612 = pneg %p84
        %p613 = pneg %p81
        %p614 = pneg %p105
        %p615 = pneg %p102
        %s616 = smul.u32 2, %s40
        %p617 = scmp.lt.s32.totalorder %s616, 1
        %s618 = scalar_select %p617, %s616, 1
        %s619 = smul.addr %s618, 4
        %s620 = scalar_lea.vmem %s3, %s619
        %p621 = pneg %p131
        %p622 = pneg %p128
        %s623 = smul.u32 2, %s40
        %p624 = scmp.lt.s32.totalorder %s623, 1
        %s625 = scalar_select %p624, %s623, 1
        %s626 = smul.addr %s625, 8
        %s627 = scalar_lea.vmem %s4, %s626
        %p628 = pneg %p157
        %p629 = pneg %p154
        %p630 = scmp.lt.s32.totalorder %s40, 0
        %s631 = scalar_select %p630, %s40, 0
        %s632 = scalar_lea.vmem %s5, %s631
        %p633 = pneg %p183
        %p634 = pneg %p180
        %p635 = pneg %p204
        %p636 = pneg %p201
        %p637 = pneg %p225
        %p638 = pneg %p222
        %p639 = pneg %p246
        %p640 = pneg %p243
        %p641 = pneg %p267
        %p642 = pneg %p264
        %p643 = pneg %p288
        %p644 = pneg %p285
        %p645 = pneg %p309
        %p646 = pneg %p306
        %p647 = pneg %p330
        %p648 = pneg %p327
        %p649 = pneg %p351
        %p650 = pneg %p348
        %p651 = pneg %p372
        %p652 = pneg %p369
        %p653 = pneg %p393
        %p654 = pneg %p390
        %p655 = pneg %p414
        %p656 = pneg %p411
        %p657 = pneg %p435
        %p658 = pneg %p432
        %p659 = pneg %p456
        %p660 = pneg %p453
        %p661 = pneg %p477
        %p662 = pneg %p474
        %p663 = pneg %p498
        %p664 = pneg %p495
        %s665 = smul.u32 2, %s40
        %p666 = scmp.lt.s32.totalorder %s665, 1
        %s667 = scalar_select %p666, %s665, 1
        %s668 = smul.addr %s667, 4
        %s669 = scalar_lea.vmem %s3, %s668
        %s670 = smul.u32 2, %s40
        %s671 = smul.u32 2, %s40
        %p672 = scmp.lt.s32.totalorder %s671, 1
        %s673 = scalar_select %p672, %s671, 1
        %s674 = smul.addr %s673, 8
        %s675 = scalar_lea.vmem %s4, %s674
        %s676 = smul.u32 2, %s40
        %p677 = scmp.lt.s32.totalorder %s40, 0
        %s678 = scalar_select %p677, %s40, 0
        %s679 = scalar_lea.vmem %s5, %s678
        %p681 = scmp.eq.s32.totalorder %s39, 0
        %p682 = scmp.eq.s32.totalorder %s40, 0
        %p683 = pnand %p681, %p682
        %p684 = pneg %p683
        // Predicated region
        $region101: #{nnconv_encoder_forward.1} parent=95 // pred_check
          _
        $region102: #{nnconv_encoder_forward.1} parent=95 // pred_check_branch
          %686 = sbr.rel (%p683) target = $region104
        $region103: #{nnconv_encoder_forward.1} parent=95 // pred_region
          %v687 = vld [vmem:[%s0] sm:$0xf]
          %v688 = vld [vmem:[%s1] sm:$0x3]
          %v689 = vld [vmem:[%s2] sm:$0x1]
          %v691 = vlaneseq
          %v692 = vshrl.u32 %v691, 7
          %v693 = vsub.s32 0, %v692
          %v694 = vrot.slane %v689, %v693
          %vm696 = vcmask 31744
          %v698 = vsel %vm696, %v687, 0
          %vm700 = vcmask 1041408
          %v702 = vsel %vm700, %v688, 0
          %704 = vmatprep.subr.bf16.mxu0 0
          %705 = vmatpush1.bf16.msra.mxu0 0
          %706 = vmatprep.subr.bf16.mxu0 0
          %707 = vmatpush1.bf16.msra.mxu0 0
          %708 = vmatprep.subr.bf16.mxu0 0
          %709 = vmatpush1.bf16.msra.mxu0 0
          %710 = vmatprep.subr.bf16.mxu0 0
          %711 = vmatpush1.bf16.msra.mxu0 0
          %712 = vmatprep.subr.bf16.mxu0 0
          %713 = vmatpush1.bf16.msra.mxu0 0
          %714 = vmatprep.subr.bf16.mxu0 0
          %715 = vmatpush1.bf16.msra.mxu0 0
          %716 = vmatprep.subr.bf16.mxu0 0
          %717 = vmatpush1.bf16.msra.mxu0 0
          %718 = vmatprep.subr.bf16.mxu0 0
          %719 = vmatpush1.bf16.msra.mxu0 %v702
          %720 = vmatprep.subr.bf16.mxu0 0
          %721 = vmatpush2.bf16.msra.mxu0 0
          %722 = vmatprep.subr.bf16.mxu0 0
          %723 = vmatpush2.bf16.msra.mxu0 0
          %724 = vmatprep.subr.bf16.mxu0 0
          %725 = vmatpush2.bf16.msra.mxu0 0
          %726 = vmatprep.subr.bf16.mxu0 0
          %727 = vmatpush2.bf16.msra.mxu0 0
          %728 = vmatprep.subr.bf16.mxu0 0
          %729 = vmatpush2.bf16.msra.mxu0 0
          %730 = vmatprep.subr.bf16.mxu0 0
          %731 = vmatpush2.bf16.msra.mxu0 0
          %732 = vmatprep.subr.bf16.mxu0 0
          %733 = vmatpush2.bf16.msra.mxu0 0
          %734 = vmatprep.subr.bf16.mxu0 0
          %735 = vmatpush2.bf16.msra.mxu0 0
          %736 = vmatprep.mubr.bf16.mxu0 0
          %737 = vmatmul.mubr.bf16.gmra.mxu0 %v698
          %v738 = vpop.f32.mrf.mxu0
          %v739 = vadd.f32 %v694, %v738
          %v740 = vpop.f32.mrf.mxu0
          %v741 = vpop.f32.mrf.mxu0
          %v742 = vpop.f32.mrf.mxu0
          %743 = vdwg.mxu0
          %v744 = vmax.f32 %v739, 0.0
          %vm745 = vcmask 261120
          %746 = vst.msk [vmem:[#allocation2] sm:$0xff] %vm745, %v744
          %vm747 = vcmask 7168
          %748 = vst.msk [vmem:[#allocation4] sm:$0xff] %vm747, 0.0
        $region104: #{nnconv_encoder_forward.1} parent=95 // pred_fallthru
          _
        // Predicated region
        $region105: #{nnconv_encoder_forward.1} parent=95 // pred_check
          %p749 = pneg %p682
        $region106: #{nnconv_encoder_forward.1} parent=95 // pred_check_branch
          %751 = sbr.rel (%p749) target = $region108
        $region107: #{nnconv_encoder_forward.1} parent=95 // pred_region
          %vm752 = vcmask 261120
          %753 = vst.msk [vmem:[#allocation3] sm:$0xff] %vm752, 0.0
        $region108: #{nnconv_encoder_forward.1} parent=95 // pred_fallthru
          _
        %v754 = vld [vmem:[%s675] sm:$0xff]
        %v755 = vld [vmem:[%s675 + $0x8] sm:$0xff]
        %v756 = vld [vmem:[%s679] sm:$0x1]
        %v757 = vlaneseq
        %v758 = vand.u32 %v757, 127
        %759 = vset.pattern.permute.xlu0 0
        %760 = vperm.xlu0 %759, %v754
        %v761 = vpop.permute.xlu0 %760
        %762 = vset.pattern.permute.xlu0 0
        %763 = vperm.xlu0 %762, %v755
        %v764 = vpop.permute.xlu0 %763
        %vm765 = vcmp.eq.s32.totalorder %v758, %v761
        %vm766 = vcmp.eq.s32.totalorder %v758, %v764
        %v767 = vsel %vm765, 1, 0
        %v768 = vsel %vm766, 1, 0
        %v769 = vcvt.s32.f32 %v767
        %v770 = vcvt.s32.f32 %v768
        %v771 = vpack.c.bf16 %v770, %v769
        %v772 = vlaneseq
        %v773 = vshrl.u32 %v772, 7
        %v774 = vlaneseq
        %v775 = vshrl.u32 %v774, 7
        %v776 = vsub.s32 0, %v775
        %v777 = vrot.slane %v756, %v776
        %vm778 = vcmp.eq.s32.totalorder %v773, %v777
        %v779 = vsel %vm778, 1, 0
        %v780 = vcvt.s32.f32 %v779
        %v781 = vpack.c.bf16 %v780, %v780
        // Predicated region
        $region109: #{nnconv_encoder_forward.1} parent=95 // pred_check
          %p782 = pneg %p681
        $region110: #{nnconv_encoder_forward.1} parent=95 // pred_check_branch
          %784 = sbr.rel (%p782) target = $region112
        $region111: #{nnconv_encoder_forward.1} parent=95 // pred_region
          %v785 = vld [vmem:[#allocation4] sm:$0xff]
          %v786 = vunpack.c.l.bf16 %v781
          %vm787 = vcmask 130048
          %v788 = vsel %vm787, %v786, 0.0
          %789 = vadd.xlane.f32.xlu0 %v788
          %v790 = vpop.xlane.xlu0 %789
          %v791 = vadd.f32 %v785, %v790
          %vm792 = vcmask 7168
          %793 = vst.msk [vmem:[#allocation4] sm:$0xff] %vm792, %v791
        $region112: #{nnconv_encoder_forward.1} parent=95 // pred_fallthru
          _
        %v794 = vld [vmem:[%s669] sm:$0xf]
        %v795 = vld [vmem:[%s669 + $0x4] sm:$0xf]
        %v796 = vld [vmem:[%s6] sm:$0x7]
        %v797 = vld [vmem:[%s7] sm:$0x1]
        %v799 = vlaneseq
        %v800 = vshrl.u32 %v799, 7
        %v801 = vsub.s32 0, %v800
        %v802 = vrot.slane %v797, %v801
        %v806 = vunpack.c.l.b16 %v794
        %v807 = vunpack.c.l.b16 %v795
        %v808 = vpack.c.b16 %v807, %v806
        %vm809 = vcmask 39936
        %v811 = vsel %vm809, %v808, 0
        %vm813 = vcmask 1041408
        %vm814 = vcmask 1042432
        %v815 = vsel %vm813, 4294967295, 65535
        %v816 = vsel %vm814, %v815, 0
        %v818 = vand.u32 %v796, %v816
        %820 = vmatprep.subr.bf16.mxu0 0
        %821 = vmatpush1.bf16.msra.mxu0 0
        %822 = vmatprep.subr.bf16.mxu0 0
        %823 = vmatpush1.bf16.msra.mxu0 0
        %824 = vmatprep.subr.bf16.mxu0 0
        %825 = vmatpush1.bf16.msra.mxu0 0
        %826 = vmatprep.subr.bf16.mxu0 0
        %827 = vmatpush1.bf16.msra.mxu0 0
        %828 = vmatprep.subr.bf16.mxu0 0
        %829 = vmatpush1.bf16.msra.mxu0 0
        %830 = vmatprep.subr.bf16.mxu0 0
        %831 = vmatpush1.bf16.msra.mxu0 0
        %832 = vmatprep.subr.bf16.mxu0 0
        %833 = vmatpush1.bf16.msra.mxu0 0
        %834 = vmatprep.subr.bf16.mxu0 0
        %835 = vmatpush1.bf16.msra.mxu0 %v818
        %836 = vmatprep.subr.bf16.mxu0 0
        %837 = vmatpush2.bf16.msra.mxu0 0
        %838 = vmatprep.subr.bf16.mxu0 0
        %839 = vmatpush2.bf16.msra.mxu0 0
        %840 = vmatprep.subr.bf16.mxu0 0
        %841 = vmatpush2.bf16.msra.mxu0 0
        %842 = vmatprep.subr.bf16.mxu0 0
        %843 = vmatpush2.bf16.msra.mxu0 0
        %844 = vmatprep.subr.bf16.mxu0 0
        %845 = vmatpush2.bf16.msra.mxu0 0
        %846 = vmatprep.subr.bf16.mxu0 0
        %847 = vmatpush2.bf16.msra.mxu0 0
        %848 = vmatprep.subr.bf16.mxu0 0
        %849 = vmatpush2.bf16.msra.mxu0 0
        %850 = vmatprep.subr.bf16.mxu0 0
        %851 = vmatpush2.bf16.msra.mxu0 0
        %852 = vmatprep.mubr.bf16.mxu0 0
        %853 = vmatmul.mubr.bf16.gmra.mxu0 %v811
        %v854 = vpop.f32.mrf.mxu0
        %v855 = vadd.f32 %v802, %v854
        %v856 = vpop.f32.mrf.mxu0
        %v857 = vpop.f32.mrf.mxu0
        %v858 = vadd.f32 %v802, %v857
        %v859 = vpop.f32.mrf.mxu0
        %860 = vdwg.mxu0
        %v861 = vmax.f32 %v855, 0.0
        %v862 = vmax.f32 %v858, 0.0
        %v863 = vpack.c.bf16 %v862, %v861
        %v864 = vld [vmem:[#allocation9] sm:$0xff]
        %v865 = vld [vmem:[#allocation9 + $0x8] sm:$0xff]
        %v866 = vld [vmem:[#allocation9 + $0x10] sm:$0xff]
        %v867 = vld [vmem:[#allocation9 + $0x18] sm:$0xff]
        %v868 = vld [vmem:[#allocation9 + $0x20] sm:$0xff]
        %v869 = vld [vmem:[#allocation9 + $0x28] sm:$0xff]
        %v870 = vld [vmem:[#allocation9 + $0x30] sm:$0xff]
        %v871 = vld [vmem:[#allocation9 + $0x38] sm:$0xff]
        %v872 = vld [vmem:[#allocation9 + $0x40] sm:$0xff]
        %v873 = vld [vmem:[#allocation9 + $0x48] sm:$0xff]
        %v874 = vld [vmem:[#allocation9 + $0x50] sm:$0xff]
        %v875 = vld [vmem:[#allocation9 + $0x58] sm:$0xff]
        %v876 = vld [vmem:[#allocation9 + $0x60] sm:$0xff]
        %v877 = vld [vmem:[#allocation9 + $0x68] sm:$0xff]
        %v878 = vld [vmem:[#allocation9 + $0x70] sm:$0xff]
        %v879 = vld [vmem:[#allocation9 + $0x78] sm:$0xff]
        %v880 = vld [vmem:[#allocation9 + $0x80] sm:$0xff]
        %v881 = vld [vmem:[#allocation9 + $0x88] sm:$0xff]
        %v882 = vld [vmem:[#allocation9 + $0x90] sm:$0xff]
        %v883 = vld [vmem:[#allocation9 + $0x98] sm:$0xff]
        %v884 = vld [vmem:[#allocation9 + $0xa0] sm:$0xff]
        %v885 = vld [vmem:[#allocation9 + $0xa8] sm:$0xff]
        %v886 = vld [vmem:[#allocation9 + $0xb0] sm:$0xff]
        %v887 = vld [vmem:[#allocation9 + $0xb8] sm:$0xff]
        %v888 = vld [vmem:[#allocation9 + $0xc0] sm:$0xff]
        %v889 = vld [vmem:[#allocation9 + $0xc8] sm:$0xff]
        %v890 = vld [vmem:[#allocation9 + $0xd0] sm:$0xff]
        %v891 = vld [vmem:[#allocation9 + $0xd8] sm:$0xff]
        %v892 = vld [vmem:[#allocation9 + $0xe0] sm:$0xff]
        %v893 = vld [vmem:[#allocation9 + $0xe8] sm:$0xff]
        %v894 = vld [vmem:[#allocation9 + $0xf0] sm:$0xff]
        %v895 = vld [vmem:[#allocation9 + $0xf8] sm:$0xff]
        %v896 = vld [vmem:[#allocation9 + $0x100] sm:$0xff]
        %v897 = vld [vmem:[#allocation9 + $0x108] sm:$0xff]
        %v898 = vld [vmem:[#allocation9 + $0x110] sm:$0xff]
        %v899 = vld [vmem:[#allocation9 + $0x118] sm:$0xff]
        %v900 = vld [vmem:[#allocation9 + $0x120] sm:$0xff]
        %v901 = vld [vmem:[#allocation9 + $0x128] sm:$0xff]
        %v902 = vld [vmem:[#allocation9 + $0x130] sm:$0xff]
        %v903 = vld [vmem:[#allocation9 + $0x138] sm:$0xff]
        %v904 = vld [vmem:[#allocation9 + $0x140] sm:$0xff]
        %v905 = vld [vmem:[#allocation9 + $0x148] sm:$0xff]
        %v906 = vld [vmem:[#allocation9 + $0x150] sm:$0xff]
        %v907 = vld [vmem:[#allocation9 + $0x158] sm:$0xff]
        %v908 = vld [vmem:[#allocation9 + $0x160] sm:$0xff]
        %v909 = vld [vmem:[#allocation9 + $0x168] sm:$0xff]
        %v910 = vld [vmem:[#allocation9 + $0x170] sm:$0xff]
        %v911 = vld [vmem:[#allocation9 + $0x178] sm:$0xff]
        %v912 = vld [vmem:[#allocation9 + $0x180] sm:$0xff]
        %v913 = vld [vmem:[#allocation9 + $0x188] sm:$0xff]
        %v914 = vld [vmem:[#allocation9 + $0x190] sm:$0xff]
        %v915 = vld [vmem:[#allocation9 + $0x198] sm:$0xff]
        %v916 = vld [vmem:[#allocation9 + $0x1a0] sm:$0xff]
        %v917 = vld [vmem:[#allocation9 + $0x1a8] sm:$0xff]
        %v918 = vld [vmem:[#allocation9 + $0x1b0] sm:$0xff]
        %v919 = vld [vmem:[#allocation9 + $0x1b8] sm:$0xff]
        %v920 = vld [vmem:[#allocation9 + $0x1c0] sm:$0xff]
        %v921 = vld [vmem:[#allocation9 + $0x1c8] sm:$0xff]
        %v922 = vld [vmem:[#allocation9 + $0x1d0] sm:$0xff]
        %v923 = vld [vmem:[#allocation9 + $0x1d8] sm:$0xff]
        %v924 = vld [vmem:[#allocation9 + $0x1e0] sm:$0xff]
        %v925 = vld [vmem:[#allocation9 + $0x1e8] sm:$0xff]
        %v926 = vld [vmem:[#allocation9 + $0x1f0] sm:$0xff]
        %v927 = vld [vmem:[#allocation9 + $0x1f8] sm:$0xff]
        %v928 = vld [vmem:[%s9] sm:$0xff]
        %v930 = vlaneseq
        %v931 = vshrl.u32 %v930, 7
        %v932 = vsub.s32 0, %v931
        %v933 = vrot.slane %v928, %v932
        %v934 = vlaneseq
        %v935 = vshrl.u32 %v934, 7
        %v936 = vsub.s32 1, %v935
        %v937 = vrot.slane %v928, %v936
        %v938 = vlaneseq
        %v939 = vshrl.u32 %v938, 7
        %v940 = vsub.s32 2, %v939
        %v941 = vrot.slane %v928, %v940
        %v942 = vlaneseq
        %v943 = vshrl.u32 %v942, 7
        %v944 = vsub.s32 3, %v943
        %v945 = vrot.slane %v928, %v944
        %v946 = vlaneseq
        %v947 = vshrl.u32 %v946, 7
        %v948 = vsub.s32 4, %v947
        %v949 = vrot.slane %v928, %v948
        %v950 = vlaneseq
        %v951 = vshrl.u32 %v950, 7
        %v952 = vsub.s32 5, %v951
        %v953 = vrot.slane %v928, %v952
        %v954 = vlaneseq
        %v955 = vshrl.u32 %v954, 7
        %v956 = vsub.s32 6, %v955
        %v957 = vrot.slane %v928, %v956
        %v958 = vlaneseq
        %v959 = vshrl.u32 %v958, 7
        %v960 = vsub.s32 7, %v959
        %v961 = vrot.slane %v928, %v960
        %v1034 = vunpack.c.l.b16 %v864
        %v1035 = vunpack.c.h.b16 %v864
        %v1036 = vunpack.c.l.b16 %v865
        %v1037 = vunpack.c.h.b16 %v865
        %v1038 = vunpack.c.l.b16 %v866
        %v1039 = vunpack.c.h.b16 %v866
        %v1040 = vunpack.c.l.b16 %v867
        %v1041 = vunpack.c.h.b16 %v867
        %v1042 = vunpack.c.l.b16 %v868
        %v1043 = vunpack.c.h.b16 %v868
        %v1044 = vunpack.c.l.b16 %v869
        %v1045 = vunpack.c.h.b16 %v869
        %v1046 = vunpack.c.l.b16 %v870
        %v1047 = vunpack.c.h.b16 %v870
        %v1048 = vunpack.c.l.b16 %v871
        %v1049 = vunpack.c.h.b16 %v871
        %v1050 = vunpack.c.l.b16 %v872
        %v1051 = vunpack.c.h.b16 %v872
        %v1052 = vunpack.c.l.b16 %v873
        %v1053 = vunpack.c.h.b16 %v873
        %v1054 = vunpack.c.l.b16 %v874
        %v1055 = vunpack.c.h.b16 %v874
        %v1056 = vunpack.c.l.b16 %v875
        %v1057 = vunpack.c.h.b16 %v875
        %v1058 = vunpack.c.l.b16 %v876
        %v1059 = vunpack.c.h.b16 %v876
        %v1060 = vunpack.c.l.b16 %v877
        %v1061 = vunpack.c.h.b16 %v877
        %v1062 = vunpack.c.l.b16 %v878
        %v1063 = vunpack.c.h.b16 %v878
        %v1064 = vunpack.c.l.b16 %v879
        %v1065 = vunpack.c.h.b16 %v879
        %v1066 = vunpack.c.l.b16 %v880
        %v1067 = vunpack.c.h.b16 %v880
        %v1068 = vunpack.c.l.b16 %v881
        %v1069 = vunpack.c.h.b16 %v881
        %v1070 = vunpack.c.l.b16 %v882
        %v1071 = vunpack.c.h.b16 %v882
        %v1072 = vunpack.c.l.b16 %v883
        %v1073 = vunpack.c.h.b16 %v883
        %v1074 = vunpack.c.l.b16 %v884
        %v1075 = vunpack.c.h.b16 %v884
        %v1076 = vunpack.c.l.b16 %v885
        %v1077 = vunpack.c.h.b16 %v885
        %v1078 = vunpack.c.l.b16 %v886
        %v1079 = vunpack.c.h.b16 %v886
        %v1080 = vunpack.c.l.b16 %v887
        %v1081 = vunpack.c.h.b16 %v887
        %v1082 = vunpack.c.l.b16 %v888
        %v1083 = vunpack.c.h.b16 %v888
        %v1084 = vunpack.c.l.b16 %v889
        %v1085 = vunpack.c.h.b16 %v889
        %v1086 = vunpack.c.l.b16 %v890
        %v1087 = vunpack.c.h.b16 %v890
        %v1088 = vunpack.c.l.b16 %v891
        %v1089 = vunpack.c.h.b16 %v891
        %v1090 = vunpack.c.l.b16 %v892
        %v1091 = vunpack.c.h.b16 %v892
        %v1092 = vunpack.c.l.b16 %v893
        %v1093 = vunpack.c.h.b16 %v893
        %v1094 = vunpack.c.l.b16 %v894
        %v1095 = vunpack.c.h.b16 %v894
        %v1096 = vunpack.c.l.b16 %v895
        %v1097 = vunpack.c.h.b16 %v895
        %v1098 = vunpack.c.l.b16 %v896
        %v1099 = vunpack.c.h.b16 %v896
        %v1100 = vunpack.c.l.b16 %v897
        %v1101 = vunpack.c.h.b16 %v897
        %v1102 = vunpack.c.l.b16 %v898
        %v1103 = vunpack.c.h.b16 %v898
        %v1104 = vunpack.c.l.b16 %v899
        %v1105 = vunpack.c.h.b16 %v899
        %v1106 = vunpack.c.l.b16 %v900
        %v1107 = vunpack.c.h.b16 %v900
        %v1108 = vunpack.c.l.b16 %v901
        %v1109 = vunpack.c.h.b16 %v901
        %v1110 = vunpack.c.l.b16 %v902
        %v1111 = vunpack.c.h.b16 %v902
        %v1112 = vunpack.c.l.b16 %v903
        %v1113 = vunpack.c.h.b16 %v903
        %v1114 = vunpack.c.l.b16 %v904
        %v1115 = vunpack.c.h.b16 %v904
        %v1116 = vunpack.c.l.b16 %v905
        %v1117 = vunpack.c.h.b16 %v905
        %v1118 = vunpack.c.l.b16 %v906
        %v1119 = vunpack.c.h.b16 %v906
        %v1120 = vunpack.c.l.b16 %v907
        %v1121 = vunpack.c.h.b16 %v907
        %v1122 = vunpack.c.l.b16 %v908
        %v1123 = vunpack.c.h.b16 %v908
        %v1124 = vunpack.c.l.b16 %v909
        %v1125 = vunpack.c.h.b16 %v909
        %v1126 = vunpack.c.l.b16 %v910
        %v1127 = vunpack.c.h.b16 %v910
        %v1128 = vunpack.c.l.b16 %v911
        %v1129 = vunpack.c.h.b16 %v911
        %v1130 = vunpack.c.l.b16 %v912
        %v1131 = vunpack.c.h.b16 %v912
        %v1132 = vunpack.c.l.b16 %v913
        %v1133 = vunpack.c.h.b16 %v913
        %v1134 = vunpack.c.l.b16 %v914
        %v1135 = vunpack.c.h.b16 %v914
        %v1136 = vunpack.c.l.b16 %v915
        %v1137 = vunpack.c.h.b16 %v915
        %v1138 = vunpack.c.l.b16 %v916
        %v1139 = vunpack.c.h.b16 %v916
        %v1140 = vunpack.c.l.b16 %v917
        %v1141 = vunpack.c.h.b16 %v917
        %v1142 = vunpack.c.l.b16 %v918
        %v1143 = vunpack.c.h.b16 %v918
        %v1144 = vunpack.c.l.b16 %v919
        %v1145 = vunpack.c.h.b16 %v919
        %v1146 = vunpack.c.l.b16 %v920
        %v1147 = vunpack.c.h.b16 %v920
        %v1148 = vunpack.c.l.b16 %v921
        %v1149 = vunpack.c.h.b16 %v921
        %v1150 = vunpack.c.l.b16 %v922
        %v1151 = vunpack.c.h.b16 %v922
        %v1152 = vunpack.c.l.b16 %v923
        %v1153 = vunpack.c.h.b16 %v923
        %v1154 = vunpack.c.l.b16 %v924
        %v1155 = vunpack.c.h.b16 %v924
        %v1156 = vunpack.c.l.b16 %v925
        %v1157 = vunpack.c.h.b16 %v925
        %v1158 = vunpack.c.l.b16 %v926
        %v1159 = vunpack.c.h.b16 %v926
        %v1160 = vunpack.c.l.b16 %v927
        %v1161 = vunpack.c.h.b16 %v927
        %v1162 = vpack.c.b16 %v1042, %v1034
        %v1163 = vpack.c.b16 %v1043, %v1035
        %v1164 = vpack.c.b16 %v1044, %v1036
        %v1165 = vpack.c.b16 %v1045, %v1037
        %v1166 = vpack.c.b16 %v1046, %v1038
        %v1167 = vpack.c.b16 %v1047, %v1039
        %v1168 = vpack.c.b16 %v1048, %v1040
        %v1169 = vpack.c.b16 %v1049, %v1041
        %v1170 = vpack.c.b16 %v1058, %v1050
        %v1171 = vpack.c.b16 %v1059, %v1051
        %v1172 = vpack.c.b16 %v1060, %v1052
        %v1173 = vpack.c.b16 %v1061, %v1053
        %v1174 = vpack.c.b16 %v1062, %v1054
        %v1175 = vpack.c.b16 %v1063, %v1055
        %v1176 = vpack.c.b16 %v1064, %v1056
        %v1177 = vpack.c.b16 %v1065, %v1057
        %v1178 = vpack.c.b16 %v1074, %v1066
        %v1179 = vpack.c.b16 %v1075, %v1067
        %v1180 = vpack.c.b16 %v1076, %v1068
        %v1181 = vpack.c.b16 %v1077, %v1069
        %v1182 = vpack.c.b16 %v1078, %v1070
        %v1183 = vpack.c.b16 %v1079, %v1071
        %v1184 = vpack.c.b16 %v1080, %v1072
        %v1185 = vpack.c.b16 %v1081, %v1073
        %v1186 = vpack.c.b16 %v1090, %v1082
        %v1187 = vpack.c.b16 %v1091, %v1083
        %v1188 = vpack.c.b16 %v1092, %v1084
        %v1189 = vpack.c.b16 %v1093, %v1085
        %v1190 = vpack.c.b16 %v1094, %v1086
        %v1191 = vpack.c.b16 %v1095, %v1087
        %v1192 = vpack.c.b16 %v1096, %v1088
        %v1193 = vpack.c.b16 %v1097, %v1089
        %v1194 = vpack.c.b16 %v1106, %v1098
        %v1195 = vpack.c.b16 %v1107, %v1099
        %v1196 = vpack.c.b16 %v1108, %v1100
        %v1197 = vpack.c.b16 %v1109, %v1101
        %v1198 = vpack.c.b16 %v1110, %v1102
        %v1199 = vpack.c.b16 %v1111, %v1103
        %v1200 = vpack.c.b16 %v1112, %v1104
        %v1201 = vpack.c.b16 %v1113, %v1105
        %v1202 = vpack.c.b16 %v1122, %v1114
        %v1203 = vpack.c.b16 %v1123, %v1115
        %v1204 = vpack.c.b16 %v1124, %v1116
        %v1205 = vpack.c.b16 %v1125, %v1117
        %v1206 = vpack.c.b16 %v1126, %v1118
        %v1207 = vpack.c.b16 %v1127, %v1119
        %v1208 = vpack.c.b16 %v1128, %v1120
        %v1209 = vpack.c.b16 %v1129, %v1121
        %v1210 = vpack.c.b16 %v1138, %v1130
        %v1211 = vpack.c.b16 %v1139, %v1131
        %v1212 = vpack.c.b16 %v1140, %v1132
        %v1213 = vpack.c.b16 %v1141, %v1133
        %v1214 = vpack.c.b16 %v1142, %v1134
        %v1215 = vpack.c.b16 %v1143, %v1135
        %v1216 = vpack.c.b16 %v1144, %v1136
        %v1217 = vpack.c.b16 %v1145, %v1137
        %v1218 = vpack.c.b16 %v1154, %v1146
        %v1219 = vpack.c.b16 %v1155, %v1147
        %v1220 = vpack.c.b16 %v1156, %v1148
        %v1221 = vpack.c.b16 %v1157, %v1149
        %v1222 = vpack.c.b16 %v1158, %v1150
        %v1223 = vpack.c.b16 %v1159, %v1151
        %v1224 = vpack.c.b16 %v1160, %v1152
        %v1225 = vpack.c.b16 %v1161, %v1153
        %1290 = vmatprep.subr.bf16.mxu0 %v1219
        %1291 = vmatpush1.bf16.msra.mxu0 %v1218
        %1292 = vmatprep.subr.bf16.mxu0 %v1211
        %1293 = vmatpush1.bf16.msra.mxu0 %v1210
        %1294 = vmatprep.subr.bf16.mxu0 %v1203
        %1295 = vmatpush1.bf16.msra.mxu0 %v1202
        %1296 = vmatprep.subr.bf16.mxu0 %v1195
        %1297 = vmatpush1.bf16.msra.mxu0 %v1194
        %1298 = vmatprep.subr.bf16.mxu0 %v1187
        %1299 = vmatpush1.bf16.msra.mxu0 %v1186
        %1300 = vmatprep.subr.bf16.mxu0 %v1179
        %1301 = vmatpush1.bf16.msra.mxu0 %v1178
        %1302 = vmatprep.subr.bf16.mxu0 %v1171
        %1303 = vmatpush1.bf16.msra.mxu0 %v1170
        %1304 = vmatprep.subr.bf16.mxu0 %v1163
        %1305 = vmatpush1.bf16.msra.mxu0 %v1162
        %1306 = vmatprep.subr.bf16.mxu0 0
        %1307 = vmatpush2.bf16.msra.mxu0 0
        %1308 = vmatprep.subr.bf16.mxu0 0
        %1309 = vmatpush2.bf16.msra.mxu0 0
        %1310 = vmatprep.subr.bf16.mxu0 0
        %1311 = vmatpush2.bf16.msra.mxu0 0
        %1312 = vmatprep.subr.bf16.mxu0 0
        %1313 = vmatpush2.bf16.msra.mxu0 0
        %1314 = vmatprep.subr.bf16.mxu0 0
        %1315 = vmatpush2.bf16.msra.mxu0 0
        %1316 = vmatprep.subr.bf16.mxu0 0
        %1317 = vmatpush2.bf16.msra.mxu0 0
        %1318 = vmatprep.subr.bf16.mxu0 0
        %1319 = vmatpush2.bf16.msra.mxu0 0
        %1320 = vmatprep.subr.bf16.mxu0 0
        %1321 = vmatpush2.bf16.msra.mxu0 0
        %1322 = vmatprep.mubr.bf16.mxu0 0
        %1323 = vmatmul.mubr.bf16.gmra.mxu0 %v863
        %v1324 = vpop.f32.mrf.mxu0
        %v1325 = vadd.f32 %v933, %v1324
        %v1326 = vpop.f32.mrf.mxu0
        %v1327 = vadd.f32 %v937, %v1326
        %v1328 = vpop.f32.mrf.mxu0
        %v1329 = vadd.f32 %v933, %v1328
        %v1330 = vpop.f32.mrf.mxu0
        %v1331 = vadd.f32 %v937, %v1330
        %1332 = vdwg.mxu0
        %1333 = vmatprep.subr.bf16.mxu0 %v1221
        %1334 = vmatpush1.bf16.msra.mxu0 %v1220
        %1335 = vmatprep.subr.bf16.mxu0 %v1213
        %1336 = vmatpush1.bf16.msra.mxu0 %v1212
        %1337 = vmatprep.subr.bf16.mxu0 %v1205
        %1338 = vmatpush1.bf16.msra.mxu0 %v1204
        %1339 = vmatprep.subr.bf16.mxu0 %v1197
        %1340 = vmatpush1.bf16.msra.mxu0 %v1196
        %1341 = vmatprep.subr.bf16.mxu0 %v1189
        %1342 = vmatpush1.bf16.msra.mxu0 %v1188
        %1343 = vmatprep.subr.bf16.mxu0 %v1181
        %1344 = vmatpush1.bf16.msra.mxu0 %v1180
        %1345 = vmatprep.subr.bf16.mxu0 %v1173
        %1346 = vmatpush1.bf16.msra.mxu0 %v1172
        %1347 = vmatprep.subr.bf16.mxu0 %v1165
        %1348 = vmatpush1.bf16.msra.mxu0 %v1164
        %1349 = vmatprep.subr.bf16.mxu0 0
        %1350 = vmatpush2.bf16.msra.mxu0 0
        %1351 = vmatprep.subr.bf16.mxu0 0
        %1352 = vmatpush2.bf16.msra.mxu0 0
        %1353 = vmatprep.subr.bf16.mxu0 0
        %1354 = vmatpush2.bf16.msra.mxu0 0
        %1355 = vmatprep.subr.bf16.mxu0 0
        %1356 = vmatpush2.bf16.msra.mxu0 0
        %1357 = vmatprep.subr.bf16.mxu0 0
        %1358 = vmatpush2.bf16.msra.mxu0 0
        %1359 = vmatprep.subr.bf16.mxu0 0
        %1360 = vmatpush2.bf16.msra.mxu0 0
        %1361 = vmatprep.subr.bf16.mxu0 0
        %1362 = vmatpush2.bf16.msra.mxu0 0
        %1363 = vmatprep.subr.bf16.mxu0 0
        %1364 = vmatpush2.bf16.msra.mxu0 0
        %1365 = vmatprep.mubr.bf16.mxu0 0
        %1366 = vmatmul.mubr.bf16.gmra.mxu0 %v863
        %v1367 = vpop.f32.mrf.mxu0
        %v1368 = vadd.f32 %v941, %v1367
        %v1369 = vpop.f32.mrf.mxu0
        %v1370 = vadd.f32 %v945, %v1369
        %v1371 = vpop.f32.mrf.mxu0
        %v1372 = vadd.f32 %v941, %v1371
        %v1373 = vpop.f32.mrf.mxu0
        %v1374 = vadd.f32 %v945, %v1373
        %1375 = vdwg.mxu0
        %1376 = vmatprep.subr.bf16.mxu0 %v1223
        %1377 = vmatpush1.bf16.msra.mxu0 %v1222
        %1378 = vmatprep.subr.bf16.mxu0 %v1215
        %1379 = vmatpush1.bf16.msra.mxu0 %v1214
        %1380 = vmatprep.subr.bf16.mxu0 %v1207
        %1381 = vmatpush1.bf16.msra.mxu0 %v1206
        %1382 = vmatprep.subr.bf16.mxu0 %v1199
        %1383 = vmatpush1.bf16.msra.mxu0 %v1198
        %1384 = vmatprep.subr.bf16.mxu0 %v1191
        %1385 = vmatpush1.bf16.msra.mxu0 %v1190
        %1386 = vmatprep.subr.bf16.mxu0 %v1183
        %1387 = vmatpush1.bf16.msra.mxu0 %v1182
        %1388 = vmatprep.subr.bf16.mxu0 %v1175
        %1389 = vmatpush1.bf16.msra.mxu0 %v1174
        %1390 = vmatprep.subr.bf16.mxu0 %v1167
        %1391 = vmatpush1.bf16.msra.mxu0 %v1166
        %1392 = vmatprep.subr.bf16.mxu0 0
        %1393 = vmatpush2.bf16.msra.mxu0 0
        %1394 = vmatprep.subr.bf16.mxu0 0
        %1395 = vmatpush2.bf16.msra.mxu0 0
        %1396 = vmatprep.subr.bf16.mxu0 0
        %1397 = vmatpush2.bf16.msra.mxu0 0
        %1398 = vmatprep.subr.bf16.mxu0 0
        %1399 = vmatpush2.bf16.msra.mxu0 0
        %1400 = vmatprep.subr.bf16.mxu0 0
        %1401 = vmatpush2.bf16.msra.mxu0 0
        %1402 = vmatprep.subr.bf16.mxu0 0
        %1403 = vmatpush2.bf16.msra.mxu0 0
        %1404 = vmatprep.subr.bf16.mxu0 0
        %1405 = vmatpush2.bf16.msra.mxu0 0
        %1406 = vmatprep.subr.bf16.mxu0 0
        %1407 = vmatpush2.bf16.msra.mxu0 0
        %1408 = vmatprep.mubr.bf16.mxu0 0
        %1409 = vmatmul.mubr.bf16.gmra.mxu0 %v863
        %v1410 = vpop.f32.mrf.mxu0
        %v1411 = vadd.f32 %v949, %v1410
        %v1412 = vpop.f32.mrf.mxu0
        %v1413 = vadd.f32 %v953, %v1412
        %v1414 = vpop.f32.mrf.mxu0
        %v1415 = vadd.f32 %v949, %v1414
        %v1416 = vpop.f32.mrf.mxu0
        %v1417 = vadd.f32 %v953, %v1416
        %1418 = vdwg.mxu0
        %1419 = vmatprep.subr.bf16.mxu0 %v1225
        %1420 = vmatpush1.bf16.msra.mxu0 %v1224
        %1421 = vmatprep.subr.bf16.mxu0 %v1217
        %1422 = vmatpush1.bf16.msra.mxu0 %v1216
        %1423 = vmatprep.subr.bf16.mxu0 %v1209
        %1424 = vmatpush1.bf16.msra.mxu0 %v1208
        %1425 = vmatprep.subr.bf16.mxu0 %v1201
        %1426 = vmatpush1.bf16.msra.mxu0 %v1200
        %1427 = vmatprep.subr.bf16.mxu0 %v1193
        %1428 = vmatpush1.bf16.msra.mxu0 %v1192
        %1429 = vmatprep.subr.bf16.mxu0 %v1185
        %1430 = vmatpush1.bf16.msra.mxu0 %v1184
        %1431 = vmatprep.subr.bf16.mxu0 %v1177
        %1432 = vmatpush1.bf16.msra.mxu0 %v1176
        %1433 = vmatprep.subr.bf16.mxu0 %v1169
        %1434 = vmatpush1.bf16.msra.mxu0 %v1168
        %1435 = vmatprep.subr.bf16.mxu0 0
        %1436 = vmatpush2.bf16.msra.mxu0 0
        %1437 = vmatprep.subr.bf16.mxu0 0
        %1438 = vmatpush2.bf16.msra.mxu0 0
        %1439 = vmatprep.subr.bf16.mxu0 0
        %1440 = vmatpush2.bf16.msra.mxu0 0
        %1441 = vmatprep.subr.bf16.mxu0 0
        %1442 = vmatpush2.bf16.msra.mxu0 0
        %1443 = vmatprep.subr.bf16.mxu0 0
        %1444 = vmatpush2.bf16.msra.mxu0 0
        %1445 = vmatprep.subr.bf16.mxu0 0
        %1446 = vmatpush2.bf16.msra.mxu0 0
        %1447 = vmatprep.subr.bf16.mxu0 0
        %1448 = vmatpush2.bf16.msra.mxu0 0
        %1449 = vmatprep.subr.bf16.mxu0 0
        %1450 = vmatpush2.bf16.msra.mxu0 0
        %1451 = vmatprep.mubr.bf16.mxu0 0
        %1452 = vmatmul.mubr.bf16.gmra.mxu0 %v863
        %v1453 = vpop.f32.mrf.mxu0
        %v1454 = vadd.f32 %v957, %v1453
        %v1455 = vpop.f32.mrf.mxu0
        %v1456 = vadd.f32 %v961, %v1455
        %v1457 = vpop.f32.mrf.mxu0
        %v1458 = vadd.f32 %v957, %v1457
        %v1459 = vpop.f32.mrf.mxu0
        %v1460 = vadd.f32 %v961, %v1459
        %1461 = vdwg.mxu0
        %v1462 = vpack.c.bf16 %v1329, %v1325
        %v1463 = vpack.c.bf16 %v1331, %v1327
        %v1464 = vpack.c.bf16 %v1372, %v1368
        %v1465 = vpack.c.bf16 %v1374, %v1370
        %v1466 = vpack.c.bf16 %v1415, %v1411
        %v1467 = vpack.c.bf16 %v1417, %v1413
        %v1468 = vpack.c.bf16 %v1458, %v1454
        %v1469 = vpack.c.bf16 %v1460, %v1456
        %v1478 = vunpack.c.l.b16 %v1462
        %v1479 = vunpack.c.l.b16 %v1463
        %v1480 = vunpack.c.l.b16 %v1464
        %v1481 = vunpack.c.l.b16 %v1465
        %v1482 = vunpack.c.l.b16 %v1466
        %v1483 = vunpack.c.l.b16 %v1467
        %v1484 = vunpack.c.l.b16 %v1468
        %v1485 = vunpack.c.l.b16 %v1469
        %v1486 = vunpack.c.h.b16 %v1462
        %v1487 = vunpack.c.h.b16 %v1463
        %v1488 = vunpack.c.h.b16 %v1464
        %v1489 = vunpack.c.h.b16 %v1465
        %v1490 = vunpack.c.h.b16 %v1466
        %v1491 = vunpack.c.h.b16 %v1467
        %v1492 = vunpack.c.h.b16 %v1468
        %v1493 = vunpack.c.h.b16 %v1469
        %v1494 = vpack.c.b16 %v1479, %v1478
        %v1495 = vpack.c.b16 %v1481, %v1480
        %v1496 = vpack.c.b16 %v1483, %v1482
        %v1497 = vpack.c.b16 %v1485, %v1484
        %v1498 = vpack.c.b16 %v1487, %v1486
        %v1499 = vpack.c.b16 %v1489, %v1488
        %v1500 = vpack.c.b16 %v1491, %v1490
        %v1501 = vpack.c.b16 %v1493, %v1492
        %1510 = vst [vmem:[#allocation5] sm:$0xff] %v1494
        %1511 = vst [vmem:[#allocation5 + $0x8] sm:$0xff] %v1495
        %1512 = vst [vmem:[#allocation5 + $0x10] sm:$0xff] %v1496
        %1513 = vst [vmem:[#allocation5 + $0x18] sm:$0xff] %v1497
        %1514 = vst [vmem:[#allocation5 + $0x20] sm:$0xff] %v1498
        %1515 = vst [vmem:[#allocation5 + $0x28] sm:$0xff] %v1499
        %1516 = vst [vmem:[#allocation5 + $0x30] sm:$0xff] %v1500
        %1517 = vst [vmem:[#allocation5 + $0x38] sm:$0xff] %v1501
        %v1518 = vld [vmem:[#allocation2] sm:$0xff]
        %v1519 = vpack.c.bf16 %v1518, %v1518
        %vm1520 = vcmask 64512
        %v1522 = vsel %vm1520, %v771, 0
        %vm1524 = vcmask 1043456
        %v1526 = vsel %vm1524, %v1519, 0
        %1528 = vmatprep.subr.bf16.mxu0 0
        %1529 = vmatpush1.bf16.msra.mxu0 0
        %1530 = vmatprep.subr.bf16.mxu0 0
        %1531 = vmatpush1.bf16.msra.mxu0 0
        %1532 = vmatprep.subr.bf16.mxu0 0
        %1533 = vmatpush1.bf16.msra.mxu0 0
        %1534 = vmatprep.subr.bf16.mxu0 0
        %1535 = vmatpush1.bf16.msra.mxu0 0
        %1536 = vmatprep.subr.bf16.mxu0 0
        %1537 = vmatpush1.bf16.msra.mxu0 0
        %1538 = vmatprep.subr.bf16.mxu0 0
        %1539 = vmatpush1.bf16.msra.mxu0 0
        %1540 = vmatprep.subr.bf16.mxu0 0
        %1541 = vmatpush1.bf16.msra.mxu0 0
        %1542 = vmatprep.subr.bf16.mxu0 0
        %1543 = vmatpush1.bf16.msra.mxu0 %v1526
        %1544 = vmatprep.subr.bf16.mxu0 0
        %1545 = vmatpush2.bf16.msra.mxu0 0
        %1546 = vmatprep.subr.bf16.mxu0 0
        %1547 = vmatpush2.bf16.msra.mxu0 0
        %1548 = vmatprep.subr.bf16.mxu0 0
        %1549 = vmatpush2.bf16.msra.mxu0 0
        %1550 = vmatprep.subr.bf16.mxu0 0
        %1551 = vmatpush2.bf16.msra.mxu0 0
        %1552 = vmatprep.subr.bf16.mxu0 0
        %1553 = vmatpush2.bf16.msra.mxu0 0
        %1554 = vmatprep.subr.bf16.mxu0 0
        %1555 = vmatpush2.bf16.msra.mxu0 0
        %1556 = vmatprep.subr.bf16.mxu0 0
        %1557 = vmatpush2.bf16.msra.mxu0 0
        %1558 = vmatprep.subr.bf16.mxu0 0
        %1559 = vmatpush2.bf16.msra.mxu0 0
        %1560 = vmatprep.mubr.bf16.mxu0 0
        %1561 = vmatmul.mubr.bf16.gmra.mxu0 %v1522
        %v1562 = vpop.f32.mrf.mxu0
        %v1563 = vadd.f32 0.0, %v1562
        %v1564 = vpop.f32.mrf.mxu0
        %v1565 = vpop.f32.mrf.mxu0
        %v1566 = vadd.f32 0.0, %v1565
        %v1567 = vpop.f32.mrf.mxu0
        %1568 = vdwg.mxu0
        %vm1569 = vcmask 261120
        %1570 = vst.msk [vmem:[#allocation6] sm:$0xff] %vm1569, %v1563
        %1571 = vst.msk [vmem:[#allocation6 + $0x8] sm:$0xff] %vm1569, %v1566
        %v1572 = vld [vmem:[#allocation6] sm:$0xff]
        %v1573 = vld [vmem:[#allocation6 + $0x8] sm:$0xff]
        %v1574 = vld [vmem:[#allocation5] sm:$0xf]
        %v1575 = vld [vmem:[#allocation5 + $0x20] sm:$0xf]
        %v1576 = vunpack.c.l.bf16 %v1574
        %v1577 = vunpack.c.l.bf16 %v1575
        %1579 = vset.pattern.permute.xlu0 0
        %1580 = vperm.xlu0 %1579, %v1572
        %v1581 = vpop.permute.xlu0 %1580
        %1584 = vset.pattern.permute.xlu0 0
        %1585 = vperm.xlu0 %1584, %v1573
        %v1586 = vpop.permute.xlu0 %1585
        %v1588 = vmul.f32 %v1581, %v1576
        %v1589 = vmul.f32 %v1586, %v1577
        %v1590 = vadd.f32 %v1588, 0.0
        %v1591 = vadd.f32 %v1589, 0.0
        %1592 = vset.pattern.permute.xlu0 1
        %1593 = vperm.xlu0 %1592, %v1572
        %v1594 = vpop.permute.xlu0 %1593
        %1596 = vset.pattern.permute.xlu0 1
        %1597 = vperm.xlu0 %1596, %v1573
        %v1598 = vpop.permute.xlu0 %1597
        %v1600 = vmul.f32 %v1594, %v1576
        %v1601 = vmul.f32 %v1598, %v1577
        %1604 = vrot.lane.b32.xlu0 %v1600, 96
        %v1605 = vpop.permute.xlu0 %1604
        %1606 = vrot.lane.b32.xlu0 %v1601, 96
        %v1607 = vpop.permute.xlu0 %1606
        %v1610 = vadd.f32 %v1590, %v1605
        %v1611 = vadd.f32 %v1591, %v1607
        %1612 = vset.pattern.permute.xlu0 2
        %1613 = vperm.xlu0 %1612, %v1572
        %v1614 = vpop.permute.xlu0 %1613
        %1616 = vset.pattern.permute.xlu0 2
        %1617 = vperm.xlu0 %1616, %v1573
        %v1618 = vpop.permute.xlu0 %1617
        %v1620 = vmul.f32 %v1614, %v1576
        %v1621 = vmul.f32 %v1618, %v1577
        %1624 = vrot.lane.b32.xlu0 %v1620, 64
        %v1625 = vpop.permute.xlu0 %1624
        %1626 = vrot.lane.b32.xlu0 %v1621, 64
        %v1627 = vpop.permute.xlu0 %1626
        %v1630 = vadd.f32 %v1610, %v1625
        %v1631 = vadd.f32 %v1611, %v1627
        %1632 = vset.pattern.permute.xlu0 3
        %1633 = vperm.xlu0 %1632, %v1572
        %v1634 = vpop.permute.xlu0 %1633
        %1636 = vset.pattern.permute.xlu0 3
        %1637 = vperm.xlu0 %1636, %v1573
        %v1638 = vpop.permute.xlu0 %1637
        %v1640 = vmul.f32 %v1634, %v1576
        %v1641 = vmul.f32 %v1638, %v1577
        %1644 = vrot.lane.b32.xlu0 %v1640, 32
        %v1645 = vpop.permute.xlu0 %1644
        %1646 = vrot.lane.b32.xlu0 %v1641, 32
        %v1647 = vpop.permute.xlu0 %1646
        %v1650 = vadd.f32 %v1630, %v1645
        %v1651 = vadd.f32 %v1631, %v1647
        %v1652 = vld [vmem:[#allocation5 + $0x4] sm:$0xf]
        %v1653 = vld [vmem:[#allocation5 + $0x24] sm:$0xf]
        %v1654 = vunpack.c.l.bf16 %v1652
        %v1655 = vunpack.c.l.bf16 %v1653
        %1656 = vset.pattern.permute.xlu0 4
        %1657 = vperm.xlu0 %1656, %v1572
        %v1658 = vpop.permute.xlu0 %1657
        %1660 = vset.pattern.permute.xlu0 4
        %1661 = vperm.xlu0 %1660, %v1573
        %v1662 = vpop.permute.xlu0 %1661
        %v1664 = vmul.f32 %v1658, %v1654
        %v1665 = vmul.f32 %v1662, %v1655
        %v1666 = vadd.f32 %v1650, %v1664
        %v1667 = vadd.f32 %v1651, %v1665
        %1668 = vset.pattern.permute.xlu0 5
        %1669 = vperm.xlu0 %1668, %v1572
        %v1670 = vpop.permute.xlu0 %1669
        %1672 = vset.pattern.permute.xlu0 5
        %1673 = vperm.xlu0 %1672, %v1573
        %v1674 = vpop.permute.xlu0 %1673
        %v1676 = vmul.f32 %v1670, %v1654
        %v1677 = vmul.f32 %v1674, %v1655
        %1680 = vrot.lane.b32.xlu0 %v1676, 96
        %v1681 = vpop.permute.xlu0 %1680
        %1682 = vrot.lane.b32.xlu0 %v1677, 96
        %v1683 = vpop.permute.xlu0 %1682
        %v1686 = vadd.f32 %v1666, %v1681
        %v1687 = vadd.f32 %v1667, %v1683
        %1688 = vset.pattern.permute.xlu0 6
        %1689 = vperm.xlu0 %1688, %v1572
        %v1690 = vpop.permute.xlu0 %1689
        %1692 = vset.pattern.permute.xlu0 6
        %1693 = vperm.xlu0 %1692, %v1573
        %v1694 = vpop.permute.xlu0 %1693
        %v1696 = vmul.f32 %v1690, %v1654
        %v1697 = vmul.f32 %v1694, %v1655
        %1700 = vrot.lane.b32.xlu0 %v1696, 64
        %v1701 = vpop.permute.xlu0 %1700
        %1702 = vrot.lane.b32.xlu0 %v1697, 64
        %v1703 = vpop.permute.xlu0 %1702
        %v1706 = vadd.f32 %v1686, %v1701
        %v1707 = vadd.f32 %v1687, %v1703
        %1708 = vset.pattern.permute.xlu0 7
        %1709 = vperm.xlu0 %1708, %v1572
        %v1710 = vpop.permute.xlu0 %1709
        %1712 = vset.pattern.permute.xlu0 7
        %1713 = vperm.xlu0 %1712, %v1573
        %v1714 = vpop.permute.xlu0 %1713
        %v1716 = vmul.f32 %v1710, %v1654
        %v1717 = vmul.f32 %v1714, %v1655
        %1720 = vrot.lane.b32.xlu0 %v1716, 32
        %v1721 = vpop.permute.xlu0 %1720
        %1722 = vrot.lane.b32.xlu0 %v1717, 32
        %v1723 = vpop.permute.xlu0 %1722
        %v1726 = vadd.f32 %v1706, %v1721
        %v1727 = vadd.f32 %v1707, %v1723
        %v1728 = vld [vmem:[#allocation5 + $0x8] sm:$0xf]
        %v1729 = vld [vmem:[#allocation5 + $0x28] sm:$0xf]
        %v1730 = vunpack.c.l.bf16 %v1728
        %v1731 = vunpack.c.l.bf16 %v1729
        %1732 = vset.pattern.permute.xlu0 8
        %1733 = vperm.xlu0 %1732, %v1572
        %v1734 = vpop.permute.xlu0 %1733
        %1736 = vset.pattern.permute.xlu0 8
        %1737 = vperm.xlu0 %1736, %v1573
        %v1738 = vpop.permute.xlu0 %1737
        %v1740 = vmul.f32 %v1734, %v1730
        %v1741 = vmul.f32 %v1738, %v1731
        %v1742 = vadd.f32 %v1726, %v1740
        %v1743 = vadd.f32 %v1727, %v1741
        %1744 = vset.pattern.permute.xlu0 9
        %1745 = vperm.xlu0 %1744, %v1572
        %v1746 = vpop.permute.xlu0 %1745
        %1748 = vset.pattern.permute.xlu0 9
        %1749 = vperm.xlu0 %1748, %v1573
        %v1750 = vpop.permute.xlu0 %1749
        %v1752 = vmul.f32 %v1746, %v1730
        %v1753 = vmul.f32 %v1750, %v1731
        %1756 = vrot.lane.b32.xlu0 %v1752, 96
        %v1757 = vpop.permute.xlu0 %1756
        %1758 = vrot.lane.b32.xlu0 %v1753, 96
        %v1759 = vpop.permute.xlu0 %1758
        %v1762 = vadd.f32 %v1742, %v1757
        %v1763 = vadd.f32 %v1743, %v1759
        %1764 = vset.pattern.permute.xlu0 10
        %1765 = vperm.xlu0 %1764, %v1572
        %v1766 = vpop.permute.xlu0 %1765
        %1768 = vset.pattern.permute.xlu0 10
        %1769 = vperm.xlu0 %1768, %v1573
        %v1770 = vpop.permute.xlu0 %1769
        %v1772 = vmul.f32 %v1766, %v1730
        %v1773 = vmul.f32 %v1770, %v1731
        %1776 = vrot.lane.b32.xlu0 %v1772, 64
        %v1777 = vpop.permute.xlu0 %1776
        %1778 = vrot.lane.b32.xlu0 %v1773, 64
        %v1779 = vpop.permute.xlu0 %1778
        %v1782 = vadd.f32 %v1762, %v1777
        %v1783 = vadd.f32 %v1763, %v1779
        %1784 = vset.pattern.permute.xlu0 11
        %1785 = vperm.xlu0 %1784, %v1572
        %v1786 = vpop.permute.xlu0 %1785
        %1788 = vset.pattern.permute.xlu0 11
        %1789 = vperm.xlu0 %1788, %v1573
        %v1790 = vpop.permute.xlu0 %1789
        %v1792 = vmul.f32 %v1786, %v1730
        %v1793 = vmul.f32 %v1790, %v1731
        %1796 = vrot.lane.b32.xlu0 %v1792, 32
        %v1797 = vpop.permute.xlu0 %1796
        %1798 = vrot.lane.b32.xlu0 %v1793, 32
        %v1799 = vpop.permute.xlu0 %1798
        %v1802 = vadd.f32 %v1782, %v1797
        %v1803 = vadd.f32 %v1783, %v1799
        %v1804 = vld [vmem:[#allocation5 + $0xc] sm:$0xf]
        %v1805 = vld [vmem:[#allocation5 + $0x2c] sm:$0xf]
        %v1806 = vunpack.c.l.bf16 %v1804
        %v1807 = vunpack.c.l.bf16 %v1805
        %1808 = vset.pattern.permute.xlu0 12
        %1809 = vperm.xlu0 %1808, %v1572
        %v1810 = vpop.permute.xlu0 %1809
        %1812 = vset.pattern.permute.xlu0 12
        %1813 = vperm.xlu0 %1812, %v1573
        %v1814 = vpop.permute.xlu0 %1813
        %v1816 = vmul.f32 %v1810, %v1806
        %v1817 = vmul.f32 %v1814, %v1807
        %v1818 = vadd.f32 %v1802, %v1816
        %v1819 = vadd.f32 %v1803, %v1817
        %1820 = vset.pattern.permute.xlu0 13
        %1821 = vperm.xlu0 %1820, %v1572
        %v1822 = vpop.permute.xlu0 %1821
        %1824 = vset.pattern.permute.xlu0 13
        %1825 = vperm.xlu0 %1824, %v1573
        %v1826 = vpop.permute.xlu0 %1825
        %v1828 = vmul.f32 %v1822, %v1806
        %v1829 = vmul.f32 %v1826, %v1807
        %1832 = vrot.lane.b32.xlu0 %v1828, 96
        %v1833 = vpop.permute.xlu0 %1832
        %1834 = vrot.lane.b32.xlu0 %v1829, 96
        %v1835 = vpop.permute.xlu0 %1834
        %v1838 = vadd.f32 %v1818, %v1833
        %v1839 = vadd.f32 %v1819, %v1835
        %1840 = vset.pattern.permute.xlu0 14
        %1841 = vperm.xlu0 %1840, %v1572
        %v1842 = vpop.permute.xlu0 %1841
        %1844 = vset.pattern.permute.xlu0 14
        %1845 = vperm.xlu0 %1844, %v1573
        %v1846 = vpop.permute.xlu0 %1845
        %v1848 = vmul.f32 %v1842, %v1806
        %v1849 = vmul.f32 %v1846, %v1807
        %1852 = vrot.lane.b32.xlu0 %v1848, 64
        %v1853 = vpop.permute.xlu0 %1852
        %1854 = vrot.lane.b32.xlu0 %v1849, 64
        %v1855 = vpop.permute.xlu0 %1854
        %v1858 = vadd.f32 %v1838, %v1853
        %v1859 = vadd.f32 %v1839, %v1855
        %1860 = vset.pattern.permute.xlu0 15
        %1861 = vperm.xlu0 %1860, %v1572
        %v1862 = vpop.permute.xlu0 %1861
        %1864 = vset.pattern.permute.xlu0 15
        %1865 = vperm.xlu0 %1864, %v1573
        %v1866 = vpop.permute.xlu0 %1865
        %v1868 = vmul.f32 %v1862, %v1806
        %v1869 = vmul.f32 %v1866, %v1807
        %1872 = vrot.lane.b32.xlu0 %v1868, 32
        %v1873 = vpop.permute.xlu0 %1872
        %1874 = vrot.lane.b32.xlu0 %v1869, 32
        %v1875 = vpop.permute.xlu0 %1874
        %v1878 = vadd.f32 %v1858, %v1873
        %v1879 = vadd.f32 %v1859, %v1875
        %v1880 = vld [vmem:[#allocation5 + $0x10] sm:$0xf]
        %v1881 = vld [vmem:[#allocation5 + $0x30] sm:$0xf]
        %v1882 = vunpack.c.l.bf16 %v1880
        %v1883 = vunpack.c.l.bf16 %v1881
        %1884 = vset.pattern.permute.xlu0 16
        %1885 = vperm.xlu0 %1884, %v1572
        %v1886 = vpop.permute.xlu0 %1885
        %1888 = vset.pattern.permute.xlu0 16
        %1889 = vperm.xlu0 %1888, %v1573
        %v1890 = vpop.permute.xlu0 %1889
        %v1892 = vmul.f32 %v1886, %v1882
        %v1893 = vmul.f32 %v1890, %v1883
        %v1894 = vadd.f32 %v1878, %v1892
        %v1895 = vadd.f32 %v1879, %v1893
        %1896 = vset.pattern.permute.xlu0 17
        %1897 = vperm.xlu0 %1896, %v1572
        %v1898 = vpop.permute.xlu0 %1897
        %1900 = vset.pattern.permute.xlu0 17
        %1901 = vperm.xlu0 %1900, %v1573
        %v1902 = vpop.permute.xlu0 %1901
        %v1904 = vmul.f32 %v1898, %v1882
        %v1905 = vmul.f32 %v1902, %v1883
        %1908 = vrot.lane.b32.xlu0 %v1904, 96
        %v1909 = vpop.permute.xlu0 %1908
        %1910 = vrot.lane.b32.xlu0 %v1905, 96
        %v1911 = vpop.permute.xlu0 %1910
        %v1914 = vadd.f32 %v1894, %v1909
        %v1915 = vadd.f32 %v1895, %v1911
        %1916 = vset.pattern.permute.xlu0 18
        %1917 = vperm.xlu0 %1916, %v1572
        %v1918 = vpop.permute.xlu0 %1917
        %1920 = vset.pattern.permute.xlu0 18
        %1921 = vperm.xlu0 %1920, %v1573
        %v1922 = vpop.permute.xlu0 %1921
        %v1924 = vmul.f32 %v1918, %v1882
        %v1925 = vmul.f32 %v1922, %v1883
        %1928 = vrot.lane.b32.xlu0 %v1924, 64
        %v1929 = vpop.permute.xlu0 %1928
        %1930 = vrot.lane.b32.xlu0 %v1925, 64
        %v1931 = vpop.permute.xlu0 %1930
        %v1934 = vadd.f32 %v1914, %v1929
        %v1935 = vadd.f32 %v1915, %v1931
        %1936 = vset.pattern.permute.xlu0 19
        %1937 = vperm.xlu0 %1936, %v1572
        %v1938 = vpop.permute.xlu0 %1937
        %1940 = vset.pattern.permute.xlu0 19
        %1941 = vperm.xlu0 %1940, %v1573
        %v1942 = vpop.permute.xlu0 %1941
        %v1944 = vmul.f32 %v1938, %v1882
        %v1945 = vmul.f32 %v1942, %v1883
        %1948 = vrot.lane.b32.xlu0 %v1944, 32
        %v1949 = vpop.permute.xlu0 %1948
        %1950 = vrot.lane.b32.xlu0 %v1945, 32
        %v1951 = vpop.permute.xlu0 %1950
        %v1954 = vadd.f32 %v1934, %v1949
        %v1955 = vadd.f32 %v1935, %v1951
        %v1956 = vld [vmem:[#allocation5 + $0x14] sm:$0xf]
        %v1957 = vld [vmem:[#allocation5 + $0x34] sm:$0xf]
        %v1958 = vunpack.c.l.bf16 %v1956
        %v1959 = vunpack.c.l.bf16 %v1957
        %1960 = vset.pattern.permute.xlu0 20
        %1961 = vperm.xlu0 %1960, %v1572
        %v1962 = vpop.permute.xlu0 %1961
        %1964 = vset.pattern.permute.xlu0 20
        %1965 = vperm.xlu0 %1964, %v1573
        %v1966 = vpop.permute.xlu0 %1965
        %v1968 = vmul.f32 %v1962, %v1958
        %v1969 = vmul.f32 %v1966, %v1959
        %v1970 = vadd.f32 %v1954, %v1968
        %v1971 = vadd.f32 %v1955, %v1969
        %1972 = vset.pattern.permute.xlu0 21
        %1973 = vperm.xlu0 %1972, %v1572
        %v1974 = vpop.permute.xlu0 %1973
        %1976 = vset.pattern.permute.xlu0 21
        %1977 = vperm.xlu0 %1976, %v1573
        %v1978 = vpop.permute.xlu0 %1977
        %v1980 = vmul.f32 %v1974, %v1958
        %v1981 = vmul.f32 %v1978, %v1959
        %1984 = vrot.lane.b32.xlu0 %v1980, 96
        %v1985 = vpop.permute.xlu0 %1984
        %1986 = vrot.lane.b32.xlu0 %v1981, 96
        %v1987 = vpop.permute.xlu0 %1986
        %v1990 = vadd.f32 %v1970, %v1985
        %v1991 = vadd.f32 %v1971, %v1987
        %1992 = vset.pattern.permute.xlu0 22
        %1993 = vperm.xlu0 %1992, %v1572
        %v1994 = vpop.permute.xlu0 %1993
        %1996 = vset.pattern.permute.xlu0 22
        %1997 = vperm.xlu0 %1996, %v1573
        %v1998 = vpop.permute.xlu0 %1997
        %v2000 = vmul.f32 %v1994, %v1958
        %v2001 = vmul.f32 %v1998, %v1959
        %2004 = vrot.lane.b32.xlu0 %v2000, 64
        %v2005 = vpop.permute.xlu0 %2004
        %2006 = vrot.lane.b32.xlu0 %v2001, 64
        %v2007 = vpop.permute.xlu0 %2006
        %v2010 = vadd.f32 %v1990, %v2005
        %v2011 = vadd.f32 %v1991, %v2007
        %2012 = vset.pattern.permute.xlu0 23
        %2013 = vperm.xlu0 %2012, %v1572
        %v2014 = vpop.permute.xlu0 %2013
        %2016 = vset.pattern.permute.xlu0 23
        %2017 = vperm.xlu0 %2016, %v1573
        %v2018 = vpop.permute.xlu0 %2017
        %v2020 = vmul.f32 %v2014, %v1958
        %v2021 = vmul.f32 %v2018, %v1959
        %2024 = vrot.lane.b32.xlu0 %v2020, 32
        %v2025 = vpop.permute.xlu0 %2024
        %2026 = vrot.lane.b32.xlu0 %v2021, 32
        %v2027 = vpop.permute.xlu0 %2026
        %v2030 = vadd.f32 %v2010, %v2025
        %v2031 = vadd.f32 %v2011, %v2027
        %v2032 = vld [vmem:[#allocation5 + $0x18] sm:$0xf]
        %v2033 = vld [vmem:[#allocation5 + $0x38] sm:$0xf]
        %v2034 = vunpack.c.l.bf16 %v2032
        %v2035 = vunpack.c.l.bf16 %v2033
        %2036 = vset.pattern.permute.xlu0 24
        %2037 = vperm.xlu0 %2036, %v1572
        %v2038 = vpop.permute.xlu0 %2037
        %2040 = vset.pattern.permute.xlu0 24
        %2041 = vperm.xlu0 %2040, %v1573
        %v2042 = vpop.permute.xlu0 %2041
        %v2044 = vmul.f32 %v2038, %v2034
        %v2045 = vmul.f32 %v2042, %v2035
        %v2046 = vadd.f32 %v2030, %v2044
        %v2047 = vadd.f32 %v2031, %v2045
        %2048 = vset.pattern.permute.xlu0 25
        %2049 = vperm.xlu0 %2048, %v1572
        %v2050 = vpop.permute.xlu0 %2049
        %2052 = vset.pattern.permute.xlu0 25
        %2053 = vperm.xlu0 %2052, %v1573
        %v2054 = vpop.permute.xlu0 %2053
        %v2056 = vmul.f32 %v2050, %v2034
        %v2057 = vmul.f32 %v2054, %v2035
        %2060 = vrot.lane.b32.xlu0 %v2056, 96
        %v2061 = vpop.permute.xlu0 %2060
        %2062 = vrot.lane.b32.xlu0 %v2057, 96
        %v2063 = vpop.permute.xlu0 %2062
        %v2066 = vadd.f32 %v2046, %v2061
        %v2067 = vadd.f32 %v2047, %v2063
        %2068 = vset.pattern.permute.xlu0 26
        %2069 = vperm.xlu0 %2068, %v1572
        %v2070 = vpop.permute.xlu0 %2069
        %2072 = vset.pattern.permute.xlu0 26
        %2073 = vperm.xlu0 %2072, %v1573
        %v2074 = vpop.permute.xlu0 %2073
        %v2076 = vmul.f32 %v2070, %v2034
        %v2077 = vmul.f32 %v2074, %v2035
        %2080 = vrot.lane.b32.xlu0 %v2076, 64
        %v2081 = vpop.permute.xlu0 %2080
        %2082 = vrot.lane.b32.xlu0 %v2077, 64
        %v2083 = vpop.permute.xlu0 %2082
        %v2086 = vadd.f32 %v2066, %v2081
        %v2087 = vadd.f32 %v2067, %v2083
        %2088 = vset.pattern.permute.xlu0 27
        %2089 = vperm.xlu0 %2088, %v1572
        %v2090 = vpop.permute.xlu0 %2089
        %2092 = vset.pattern.permute.xlu0 27
        %2093 = vperm.xlu0 %2092, %v1573
        %v2094 = vpop.permute.xlu0 %2093
        %v2096 = vmul.f32 %v2090, %v2034
        %v2097 = vmul.f32 %v2094, %v2035
        %2100 = vrot.lane.b32.xlu0 %v2096, 32
        %v2101 = vpop.permute.xlu0 %2100
        %2102 = vrot.lane.b32.xlu0 %v2097, 32
        %v2103 = vpop.permute.xlu0 %2102
        %v2106 = vadd.f32 %v2086, %v2101
        %v2107 = vadd.f32 %v2087, %v2103
        %v2108 = vld [vmem:[#allocation5 + $0x1c] sm:$0xf]
        %v2109 = vld [vmem:[#allocation5 + $0x3c] sm:$0xf]
        %v2110 = vunpack.c.l.bf16 %v2108
        %v2111 = vunpack.c.l.bf16 %v2109
        %2112 = vset.pattern.permute.xlu0 28
        %2113 = vperm.xlu0 %2112, %v1572
        %v2114 = vpop.permute.xlu0 %2113
        %2116 = vset.pattern.permute.xlu0 28
        %2117 = vperm.xlu0 %2116, %v1573
        %v2118 = vpop.permute.xlu0 %2117
        %v2120 = vmul.f32 %v2114, %v2110
        %v2121 = vmul.f32 %v2118, %v2111
        %v2122 = vadd.f32 %v2106, %v2120
        %v2123 = vadd.f32 %v2107, %v2121
        %2124 = vset.pattern.permute.xlu0 29
        %2125 = vperm.xlu0 %2124, %v1572
        %v2126 = vpop.permute.xlu0 %2125
        %2128 = vset.pattern.permute.xlu0 29
        %2129 = vperm.xlu0 %2128, %v1573
        %v2130 = vpop.permute.xlu0 %2129
        %v2132 = vmul.f32 %v2126, %v2110
        %v2133 = vmul.f32 %v2130, %v2111
        %2136 = vrot.lane.b32.xlu0 %v2132, 96
        %v2137 = vpop.permute.xlu0 %2136
        %2138 = vrot.lane.b32.xlu0 %v2133, 96
        %v2139 = vpop.permute.xlu0 %2138
        %v2142 = vadd.f32 %v2122, %v2137
        %v2143 = vadd.f32 %v2123, %v2139
        %2144 = vset.pattern.permute.xlu0 30
        %2145 = vperm.xlu0 %2144, %v1572
        %v2146 = vpop.permute.xlu0 %2145
        %2148 = vset.pattern.permute.xlu0 30
        %2149 = vperm.xlu0 %2148, %v1573
        %v2150 = vpop.permute.xlu0 %2149
        %v2152 = vmul.f32 %v2146, %v2110
        %v2153 = vmul.f32 %v2150, %v2111
        %2156 = vrot.lane.b32.xlu0 %v2152, 64
        %v2157 = vpop.permute.xlu0 %2156
        %2158 = vrot.lane.b32.xlu0 %v2153, 64
        %v2159 = vpop.permute.xlu0 %2158
        %v2162 = vadd.f32 %v2142, %v2157
        %v2163 = vadd.f32 %v2143, %v2159
        %2164 = vset.pattern.permute.xlu0 31
        %2165 = vperm.xlu0 %2164, %v1572
        %v2166 = vpop.permute.xlu0 %2165
        %2168 = vset.pattern.permute.xlu0 31
        %2169 = vperm.xlu0 %2168, %v1573
        %v2170 = vpop.permute.xlu0 %2169
        %v2172 = vmul.f32 %v2166, %v2110
        %v2173 = vmul.f32 %v2170, %v2111
        %2176 = vrot.lane.b32.xlu0 %v2172, 32
        %v2177 = vpop.permute.xlu0 %2176
        %2178 = vrot.lane.b32.xlu0 %v2173, 32
        %v2179 = vpop.permute.xlu0 %2178
        %v2182 = vadd.f32 %v2162, %v2177
        %v2183 = vadd.f32 %v2163, %v2179
        %v2184 = vld [vmem:[#allocation3] sm:$0xff]
        %v2185 = vpack.c.bf16 %v2183, %v2182
        %vm2186 = vcmask 130048
        %v2188 = vsel %vm2186, %v781, 0
        %2190 = vmatprep.subr.bf16.mxu0 0
        %2191 = vmatpush1.bf16.msra.mxu0 0
        %2192 = vmatprep.subr.bf16.mxu0 0
        %2193 = vmatpush1.bf16.msra.mxu0 0
        %2194 = vmatprep.subr.bf16.mxu0 0
        %2195 = vmatpush1.bf16.msra.mxu0 0
        %2196 = vmatprep.subr.bf16.mxu0 0
        %2197 = vmatpush1.bf16.msra.mxu0 0
        %2198 = vmatprep.subr.bf16.mxu0 0
        %2199 = vmatpush1.bf16.msra.mxu0 0
        %2200 = vmatprep.subr.bf16.mxu0 0
        %2201 = vmatpush1.bf16.msra.mxu0 0
        %2202 = vmatprep.subr.bf16.mxu0 0
        %2203 = vmatpush1.bf16.msra.mxu0 0
        %2204 = vmatprep.subr.bf16.mxu0 0
        %2205 = vmatpush1.bf16.msra.mxu0 %v2185
        %2206 = vmatprep.subr.bf16.mxu0 0
        %2207 = vmatpush2.bf16.msra.mxu0 0
        %2208 = vmatprep.subr.bf16.mxu0 0
        %2209 = vmatpush2.bf16.msra.mxu0 0
        %2210 = vmatprep.subr.bf16.mxu0 0
        %2211 = vmatpush2.bf16.msra.mxu0 0
        %2212 = vmatprep.subr.bf16.mxu0 0
        %2213 = vmatpush2.bf16.msra.mxu0 0
        %2214 = vmatprep.subr.bf16.mxu0 0
        %2215 = vmatpush2.bf16.msra.mxu0 0
        %2216 = vmatprep.subr.bf16.mxu0 0
        %2217 = vmatpush2.bf16.msra.mxu0 0
        %2218 = vmatprep.subr.bf16.mxu0 0
        %2219 = vmatpush2.bf16.msra.mxu0 0
        %2220 = vmatprep.subr.bf16.mxu0 0
        %2221 = vmatpush2.bf16.msra.mxu0 0
        %2222 = vmatprep.mubr.bf16.mxu0 0
        %2223 = vmatmul.mubr.bf16.gmra.mxu0 %v2188
        %v2224 = vpop.f32.mrf.mxu0
        %v2225 = vadd.f32 0.0, %v2224
        %v2226 = vpop.f32.mrf.mxu0
        %v2227 = vpop.f32.mrf.mxu0
        %v2228 = vpop.f32.mrf.mxu0
        %2229 = vdwg.mxu0
        %v2230 = vadd.f32 %v2184, %v2225
        %2231 = vst.msk [vmem:[#allocation3] sm:$0xff] %vm1569, %v2230
        // Predicated region
        $region113: #{nnconv_encoder_forward.1} parent=95 // pred_check
          _
        $region114: #{nnconv_encoder_forward.1} parent=95 // pred_check_branch
          %2233 = sbr.rel (%p683) target = $region116
        $region115: #{nnconv_encoder_forward.1} parent=95 // pred_region
          %v2234 = vld [vmem:[#allocation4] sm:$0xff]
          %vm2235 = vcmp.gt.f32.partialorder %v2234, 0.0
          %v2236 = vmax.f32 %v2234, 1.0
          %v2237 = vrcp.pop %v2236
          %v2238 = vmul.f32 1.0, %v2237
          %v2239 = vsel %vm2235, %v2238, 0.0
          %vm2240 = vcmask 7168
          %2241 = vst.msk [vmem:[#allocation4] sm:$0xff] %vm2240, %v2239
        $region116: #{nnconv_encoder_forward.1} parent=95 // pred_fallthru
          _
        // Predicated region
        $region117: #{nnconv_encoder_forward.1} parent=95 // pred_check
          %p2242 = pneg %p682
        $region118: #{nnconv_encoder_forward.1} parent=95 // pred_check_branch
          %2244 = sbr.rel (%p2242) target = $region120
        $region119: #{nnconv_encoder_forward.1} parent=95 // pred_region
          %v2245 = vld [vmem:[#allocation3] sm:$0xff]
          %v2246 = vld [vmem:[#allocation4] sm:$0xff]
          %2248 = vset.pattern.permute.xlu0 0
          %2249 = vperm.xlu0 %2248, %v2246
          %v2250 = vpop.permute.xlu0 %2249
          %v2252 = vmul.f32 %v2245, %v2250
          %v2253 = vld [vmem:[%s10] sm:$0x1]
          %v2255 = vlaneseq
          %v2256 = vshrl.u32 %v2255, 7
          %v2257 = vsub.s32 0, %v2256
          %v2258 = vrot.slane %v2253, %v2257
          %v2260 = vadd.f32 %v2252, %v2258
          %v2261 = vmax.f32 %v2260, 0.0
          %v2262 = vld [vmem:[#allocation2] sm:$0xff]
          %v2263 = vpack.c.bf16 %v2261, %v2261
          %v2264 = vpack.c.bf16 %v2262, %v2262
          %vm2265 = vcmask 257024
          %2266 = vst.msk [vmem:[#allocation7] sm:$0xf] %vm2265, %v2263
          %v2268 = vunpack.c.l.b16 %v2264
          %v2269 = vpack.c.b16 %v2268, %v2268
          %2270 = vrot.lane.b32.xlu0 %v2269, 32
          %v2271 = vpop.permute.xlu0 %2270
          %vm2273 = vcmask 519424
          %2274 = vst.msk [vmem:[#allocation7] sm:$0xf] %vm2273, %v2271
          %v2275 = vld [vmem:[#allocation7] sm:$0xf]
          %v2276 = vld [vmem:[%s11] sm:$0xf]
          %v2277 = vld [vmem:[%s11 + $0x4] sm:$0xf]
          %v2278 = vld [vmem:[%s11 + $0x8] sm:$0xf]
          %v2279 = vld [vmem:[%s11 + $0xc] sm:$0xf]
          %v2280 = vld [vmem:[%s11 + $0x10] sm:$0xf]
          %v2281 = vld [vmem:[%s11 + $0x14] sm:$0xf]
          %v2282 = vld [vmem:[%s11 + $0x18] sm:$0xf]
          %v2283 = vld [vmem:[%s11 + $0x1c] sm:$0xf]
          %v2284 = vld [vmem:[%s12] sm:$0x1]
          %v2286 = vlaneseq
          %v2287 = vshrl.u32 %v2286, 7
          %v2288 = vsub.s32 0, %v2287
          %v2289 = vrot.slane %v2284, %v2288
          %v2299 = vunpack.c.l.b16 %v2276
          %v2300 = vunpack.c.l.b16 %v2277
          %v2301 = vunpack.c.l.b16 %v2278
          %v2302 = vunpack.c.l.b16 %v2279
          %v2303 = vunpack.c.l.b16 %v2280
          %v2304 = vunpack.c.l.b16 %v2281
          %v2305 = vunpack.c.l.b16 %v2282
          %v2306 = vunpack.c.l.b16 %v2283
          %v2307 = vpack.c.b16 %v2300, %v2299
          %v2308 = vpack.c.b16 %v2302, %v2301
          %v2309 = vpack.c.b16 %v2304, %v2303
          %v2310 = vpack.c.b16 %v2306, %v2305
          %vm2315 = vcmask 523264
          %v2317 = vsel %vm2315, %v2275, 0
          %2319 = vmatprep.subr.bf16.mxu0 0
          %2320 = vmatpush1.bf16.msra.mxu0 0
          %2321 = vmatprep.subr.bf16.mxu0 0
          %2322 = vmatpush1.bf16.msra.mxu0 0
          %2323 = vmatprep.subr.bf16.mxu0 0
          %2324 = vmatpush1.bf16.msra.mxu0 0
          %2325 = vmatprep.subr.bf16.mxu0 0
          %2326 = vmatpush1.bf16.msra.mxu0 0
          %2327 = vmatprep.subr.bf16.mxu0 0
          %2328 = vmatpush1.bf16.msra.mxu0 %v2310
          %2329 = vmatprep.subr.bf16.mxu0 0
          %2330 = vmatpush1.bf16.msra.mxu0 %v2309
          %2331 = vmatprep.subr.bf16.mxu0 0
          %2332 = vmatpush1.bf16.msra.mxu0 %v2308
          %2333 = vmatprep.subr.bf16.mxu0 0
          %2334 = vmatpush1.bf16.msra.mxu0 %v2307
          %2335 = vmatprep.subr.bf16.mxu0 0
          %2336 = vmatpush2.bf16.msra.mxu0 0
          %2337 = vmatprep.subr.bf16.mxu0 0
          %2338 = vmatpush2.bf16.msra.mxu0 0
          %2339 = vmatprep.subr.bf16.mxu0 0
          %2340 = vmatpush2.bf16.msra.mxu0 0
          %2341 = vmatprep.subr.bf16.mxu0 0
          %2342 = vmatpush2.bf16.msra.mxu0 0
          %2343 = vmatprep.subr.bf16.mxu0 0
          %2344 = vmatpush2.bf16.msra.mxu0 0
          %2345 = vmatprep.subr.bf16.mxu0 0
          %2346 = vmatpush2.bf16.msra.mxu0 0
          %2347 = vmatprep.subr.bf16.mxu0 0
          %2348 = vmatpush2.bf16.msra.mxu0 0
          %2349 = vmatprep.subr.bf16.mxu0 0
          %2350 = vmatpush2.bf16.msra.mxu0 0
          %2351 = vmatprep.mubr.bf16.mxu0 0
          %2352 = vmatmul.mubr.bf16.gmra.mxu0 %v2317
          %v2353 = vpop.f32.mrf.mxu0
          %v2354 = vadd.f32 %v2289, %v2353
          %v2355 = vpop.f32.mrf.mxu0
          %v2356 = vpop.f32.mrf.mxu0
          %v2357 = vpop.f32.mrf.mxu0
          %2358 = vdwg.mxu0
          %v2359 = vxor.u32 %v2354, 2147483648
          %v2360 = vmul.f32 %v2359, 1.442695
          %v2361 = vpow.pop %v2360
          %v2362 = vadd.f32 %v2361, 1.0
          %v2363 = vrcp.pop %v2362
          %v2364 = vmul.f32 1.0, %v2363
          %s2365 = scalar_lea.vmem %s11, 32
          %v2366 = vld [vmem:[%s2365] sm:$0xf]
          %v2367 = vld [vmem:[%s2365 + $0x4] sm:$0xf]
          %v2368 = vld [vmem:[%s2365 + $0x8] sm:$0xf]
          %v2369 = vld [vmem:[%s2365 + $0xc] sm:$0xf]
          %v2370 = vld [vmem:[%s2365 + $0x10] sm:$0xf]
          %v2371 = vld [vmem:[%s2365 + $0x14] sm:$0xf]
          %v2372 = vld [vmem:[%s2365 + $0x18] sm:$0xf]
          %v2373 = vld [vmem:[%s2365 + $0x1c] sm:$0xf]
          %s2374 = scalar_lea.vmem %s12, 1
          %v2375 = vld [vmem:[%s2374] sm:$0x1]
          %v2377 = vlaneseq
          %v2378 = vshrl.u32 %v2377, 7
          %v2379 = vsub.s32 0, %v2378
          %v2380 = vrot.slane %v2375, %v2379
          %v2390 = vunpack.c.l.b16 %v2366
          %v2391 = vunpack.c.l.b16 %v2367
          %v2392 = vunpack.c.l.b16 %v2368
          %v2393 = vunpack.c.l.b16 %v2369
          %v2394 = vunpack.c.l.b16 %v2370
          %v2395 = vunpack.c.l.b16 %v2371
          %v2396 = vunpack.c.l.b16 %v2372
          %v2397 = vunpack.c.l.b16 %v2373
          %v2398 = vpack.c.b16 %v2391, %v2390
          %v2399 = vpack.c.b16 %v2393, %v2392
          %v2400 = vpack.c.b16 %v2395, %v2394
          %v2401 = vpack.c.b16 %v2397, %v2396
          %2406 = vmatprep.subr.bf16.mxu0 0
          %2407 = vmatpush1.bf16.msra.mxu0 0
          %2408 = vmatprep.subr.bf16.mxu0 0
          %2409 = vmatpush1.bf16.msra.mxu0 0
          %2410 = vmatprep.subr.bf16.mxu0 0
          %2411 = vmatpush1.bf16.msra.mxu0 0
          %2412 = vmatprep.subr.bf16.mxu0 0
          %2413 = vmatpush1.bf16.msra.mxu0 0
          %2414 = vmatprep.subr.bf16.mxu0 0
          %2415 = vmatpush1.bf16.msra.mxu0 %v2401
          %2416 = vmatprep.subr.bf16.mxu0 0
          %2417 = vmatpush1.bf16.msra.mxu0 %v2400
          %2418 = vmatprep.subr.bf16.mxu0 0
          %2419 = vmatpush1.bf16.msra.mxu0 %v2399
          %2420 = vmatprep.subr.bf16.mxu0 0
          %2421 = vmatpush1.bf16.msra.mxu0 %v2398
          %2422 = vmatprep.subr.bf16.mxu0 0
          %2423 = vmatpush2.bf16.msra.mxu0 0
          %2424 = vmatprep.subr.bf16.mxu0 0
          %2425 = vmatpush2.bf16.msra.mxu0 0
          %2426 = vmatprep.subr.bf16.mxu0 0
          %2427 = vmatpush2.bf16.msra.mxu0 0
          %2428 = vmatprep.subr.bf16.mxu0 0
          %2429 = vmatpush2.bf16.msra.mxu0 0
          %2430 = vmatprep.subr.bf16.mxu0 0
          %2431 = vmatpush2.bf16.msra.mxu0 0
          %2432 = vmatprep.subr.bf16.mxu0 0
          %2433 = vmatpush2.bf16.msra.mxu0 0
          %2434 = vmatprep.subr.bf16.mxu0 0
          %2435 = vmatpush2.bf16.msra.mxu0 0
          %2436 = vmatprep.subr.bf16.mxu0 0
          %2437 = vmatpush2.bf16.msra.mxu0 0
          %2438 = vmatprep.mubr.bf16.mxu0 0
          %2439 = vmatmul.mubr.bf16.gmra.mxu0 %v2317
          %v2440 = vpop.f32.mrf.mxu0
          %v2441 = vadd.f32 %v2380, %v2440
          %v2442 = vpop.f32.mrf.mxu0
          %v2443 = vpop.f32.mrf.mxu0
          %v2444 = vpop.f32.mrf.mxu0
          %2445 = vdwg.mxu0
          %v2446 = vxor.u32 %v2441, 2147483648
          %v2447 = vmul.f32 %v2446, 1.442695
          %v2448 = vpow.pop %v2447
          %v2449 = vadd.f32 %v2448, 1.0
          %v2450 = vrcp.pop %v2449
          %v2451 = vmul.f32 1.0, %v2450
          %v2452 = vld [vmem:[%s13] sm:$0xf]
          %v2453 = vld [vmem:[%s13 + $0x4] sm:$0xf]
          %v2454 = vld [vmem:[%s13 + $0x8] sm:$0xf]
          %v2455 = vld [vmem:[%s13 + $0xc] sm:$0xf]
          %v2456 = vld [vmem:[%s15] sm:$0x1]
          %v2458 = vlaneseq
          %v2459 = vshrl.u32 %v2458, 7
          %v2460 = vsub.s32 0, %v2459
          %v2461 = vrot.slane %v2456, %v2460
          %v2467 = vunpack.c.l.b16 %v2452
          %v2468 = vunpack.c.l.b16 %v2453
          %v2469 = vunpack.c.l.b16 %v2454
          %v2470 = vunpack.c.l.b16 %v2455
          %v2471 = vpack.c.b16 %v2468, %v2467
          %v2472 = vpack.c.b16 %v2470, %v2469
          %v2476 = vsel %vm1569, %v2263, 0
          %2478 = vmatprep.subr.bf16.mxu0 0
          %2479 = vmatpush1.bf16.msra.mxu0 0
          %2480 = vmatprep.subr.bf16.mxu0 0
          %2481 = vmatpush1.bf16.msra.mxu0 0
          %2482 = vmatprep.subr.bf16.mxu0 0
          %2483 = vmatpush1.bf16.msra.mxu0 0
          %2484 = vmatprep.subr.bf16.mxu0 0
          %2485 = vmatpush1.bf16.msra.mxu0 0
          %2486 = vmatprep.subr.bf16.mxu0 0
          %2487 = vmatpush1.bf16.msra.mxu0 0
          %2488 = vmatprep.subr.bf16.mxu0 0
          %2489 = vmatpush1.bf16.msra.mxu0 0
          %2490 = vmatprep.subr.bf16.mxu0 0
          %2491 = vmatpush1.bf16.msra.mxu0 %v2472
          %2492 = vmatprep.subr.bf16.mxu0 0
          %2493 = vmatpush1.bf16.msra.mxu0 %v2471
          %2494 = vmatprep.subr.bf16.mxu0 0
          %2495 = vmatpush2.bf16.msra.mxu0 0
          %2496 = vmatprep.subr.bf16.mxu0 0
          %2497 = vmatpush2.bf16.msra.mxu0 0
          %2498 = vmatprep.subr.bf16.mxu0 0
          %2499 = vmatpush2.bf16.msra.mxu0 0
          %2500 = vmatprep.subr.bf16.mxu0 0
          %2501 = vmatpush2.bf16.msra.mxu0 0
          %2502 = vmatprep.subr.bf16.mxu0 0
          %2503 = vmatpush2.bf16.msra.mxu0 0
          %2504 = vmatprep.subr.bf16.mxu0 0
          %2505 = vmatpush2.bf16.msra.mxu0 0
          %2506 = vmatprep.subr.bf16.mxu0 0
          %2507 = vmatpush2.bf16.msra.mxu0 0
          %2508 = vmatprep.subr.bf16.mxu0 0
          %2509 = vmatpush2.bf16.msra.mxu0 0
          %2510 = vmatprep.mubr.bf16.mxu0 0
          %2511 = vmatmul.mubr.bf16.gmra.mxu0 %v2476
          %v2512 = vpop.f32.mrf.mxu0
          %v2513 = vadd.f32 %v2461, %v2512
          %v2514 = vpop.f32.mrf.mxu0
          %v2515 = vpop.f32.mrf.mxu0
          %v2516 = vpop.f32.mrf.mxu0
          %2517 = vdwg.mxu0
          %v2518 = vld [vmem:[%s14] sm:$0xf]
          %v2519 = vld [vmem:[%s14 + $0x4] sm:$0xf]
          %v2520 = vld [vmem:[%s14 + $0x8] sm:$0xf]
          %v2521 = vld [vmem:[%s14 + $0xc] sm:$0xf]
          %v2522 = vld [vmem:[%s16] sm:$0x1]
          %v2524 = vlaneseq
          %v2525 = vshrl.u32 %v2524, 7
          %v2526 = vsub.s32 0, %v2525
          %v2527 = vrot.slane %v2522, %v2526
          %v2533 = vunpack.c.l.b16 %v2518
          %v2534 = vunpack.c.l.b16 %v2519
          %v2535 = vunpack.c.l.b16 %v2520
          %v2536 = vunpack.c.l.b16 %v2521
          %v2537 = vpack.c.b16 %v2534, %v2533
          %v2538 = vpack.c.b16 %v2536, %v2535
          %v2542 = vsel %vm1569, %v2264, 0
          %2544 = vmatprep.subr.bf16.mxu0 0
          %2545 = vmatpush1.bf16.msra.mxu0 0
          %2546 = vmatprep.subr.bf16.mxu0 0
          %2547 = vmatpush1.bf16.msra.mxu0 0
          %2548 = vmatprep.subr.bf16.mxu0 0
          %2549 = vmatpush1.bf16.msra.mxu0 0
          %2550 = vmatprep.subr.bf16.mxu0 0
          %2551 = vmatpush1.bf16.msra.mxu0 0
          %2552 = vmatprep.subr.bf16.mxu0 0
          %2553 = vmatpush1.bf16.msra.mxu0 0
          %2554 = vmatprep.subr.bf16.mxu0 0
          %2555 = vmatpush1.bf16.msra.mxu0 0
          %2556 = vmatprep.subr.bf16.mxu0 0
          %2557 = vmatpush1.bf16.msra.mxu0 %v2538
          %2558 = vmatprep.subr.bf16.mxu0 0
          %2559 = vmatpush1.bf16.msra.mxu0 %v2537
          %2560 = vmatprep.subr.bf16.mxu0 0
          %2561 = vmatpush2.bf16.msra.mxu0 0
          %2562 = vmatprep.subr.bf16.mxu0 0
          %2563 = vmatpush2.bf16.msra.mxu0 0
          %2564 = vmatprep.subr.bf16.mxu0 0
          %2565 = vmatpush2.bf16.msra.mxu0 0
          %2566 = vmatprep.subr.bf16.mxu0 0
          %2567 = vmatpush2.bf16.msra.mxu0 0
          %2568 = vmatprep.subr.bf16.mxu0 0
          %2569 = vmatpush2.bf16.msra.mxu0 0
          %2570 = vmatprep.subr.bf16.mxu0 0
          %2571 = vmatpush2.bf16.msra.mxu0 0
          %2572 = vmatprep.subr.bf16.mxu0 0
          %2573 = vmatpush2.bf16.msra.mxu0 0
          %2574 = vmatprep.subr.bf16.mxu0 0
          %2575 = vmatpush2.bf16.msra.mxu0 0
          %2576 = vmatprep.mubr.bf16.mxu0 0
          %2577 = vmatmul.mubr.bf16.gmra.mxu0 %v2542
          %v2578 = vpop.f32.mrf.mxu0
          %v2579 = vadd.f32 %v2527, %v2578
          %v2580 = vpop.f32.mrf.mxu0
          %v2581 = vpop.f32.mrf.mxu0
          %v2582 = vpop.f32.mrf.mxu0
          %2583 = vdwg.mxu0
          %v2584 = vmul.f32 %v2364, %v2579
          %v2585 = vadd.f32 %v2513, %v2584
          %v2586 = vtanh.pop %v2585
          %v2587 = vsub.f32 1.0, %v2451
          %v2588 = vmul.f32 %v2587, %v2586
          %v2589 = vmul.f32 %v2451, %v2262
          %v2590 = vadd.f32 %v2588, %v2589
          %2591 = vst.msk [vmem:[#allocation2] sm:$0xff] %vm1569, %v2590
        $region120: #{nnconv_encoder_forward.1} parent=95 // pred_fallthru
          _
        %p2592 = scmp.eq.s32.totalorder %s39, 2
        %p2593 = pnand %p2592, %p682
        %p2594 = pneg %p2593
        // Predicated region
        $region121: #{nnconv_encoder_forward.1} parent=95 // pred_check
          _
        $region122: #{nnconv_encoder_forward.1} parent=95 // pred_check_branch
          %2596 = sbr.rel (%p2593) target = $region124
        $region123: #{nnconv_encoder_forward.1} parent=95 // pred_region
          %v2597 = vld [vmem:[#allocation2] sm:$0xff]
          %2598 = vst.msk [vmem:[#allocation13] sm:$0xff] %vm1569, %v2597
          %vm2599 = vcmp.lt.s32.totalorder %v773, 8
          %vm2600 = vcmask 253952
          %vm2601 = vsmask.f32 256
          %vm2602 = vmand %vm2600, %vm2601
          %v2603 = vld [vmem:[#allocation8] sm:$0x1]
          %v2604 = vsel %vm2602, 0, %v2603
          %2605 = vst [vmem:[#allocation8] sm:$0x1] %v2604
          %vm2606 = vcmask 516352
          %vm2607 = vmand %vm2606, %vm2601
          %v2608 = vld [vmem:[#allocation8] sm:$0x1]
          %v2609 = vsel %vm2607, 0, %v2608
          %2610 = vst [vmem:[#allocation8] sm:$0x1] %v2609
          %vm2611 = vcmask 778752
          %vm2612 = vmand %vm2611, %vm2601
          %v2613 = vld [vmem:[#allocation8] sm:$0x1]
          %v2614 = vsel %vm2612, 0, %v2613
          %2615 = vst [vmem:[#allocation8] sm:$0x1] %v2614
          %v2616 = vld [vmem:[#allocation8] sm:$0x1]
          %v2617 = vld [vmem:[%s17] sm:$0xf]
          %v2618 = vld [vmem:[%s17 + $0x4] sm:$0xf]
          %v2619 = vld [vmem:[%s17 + $0x8] sm:$0xf]
          %v2620 = vld [vmem:[%s17 + $0xc] sm:$0xf]
          %v2621 = vld [vmem:[%s17 + $0x10] sm:$0xf]
          %v2622 = vld [vmem:[%s17 + $0x14] sm:$0xf]
          %v2623 = vld [vmem:[%s17 + $0x18] sm:$0xf]
          %v2624 = vld [vmem:[%s17 + $0x1c] sm:$0xf]
          %v2625 = vld [vmem:[%s17 + $0x20] sm:$0xf]
          %v2626 = vld [vmem:[%s17 + $0x24] sm:$0xf]
          %v2627 = vld [vmem:[%s17 + $0x28] sm:$0xf]
          %v2628 = vld [vmem:[%s17 + $0x2c] sm:$0xf]
          %v2629 = vld [vmem:[%s18] sm:$0x1]
          %v2642 = vunpack.c.l.b16 %v2617
          %v2643 = vunpack.c.l.b16 %v2618
          %v2644 = vunpack.c.l.b16 %v2619
          %v2645 = vunpack.c.l.b16 %v2620
          %v2646 = vunpack.c.l.b16 %v2621
          %v2647 = vunpack.c.l.b16 %v2622
          %v2648 = vunpack.c.l.b16 %v2623
          %v2649 = vunpack.c.l.b16 %v2624
          %v2650 = vunpack.c.l.b16 %v2625
          %v2651 = vunpack.c.l.b16 %v2626
          %v2652 = vunpack.c.l.b16 %v2627
          %v2653 = vunpack.c.l.b16 %v2628
          %v2654 = vpack.c.b16 %v2643, %v2642
          %v2655 = vpack.c.b16 %v2645, %v2644
          %v2656 = vpack.c.b16 %v2647, %v2646
          %v2657 = vpack.c.b16 %v2649, %v2648
          %v2658 = vpack.c.b16 %v2651, %v2650
          %v2659 = vpack.c.b16 %v2653, %v2652
          %vm2666 = vcmask 785408
          %v2668 = vsel %vm2666, %v2616, 0
          %2670 = vmatprep.subr.bf16.mxu0 0
          %2671 = vmatpush1.bf16.msra.mxu0 0
          %2672 = vmatprep.subr.bf16.mxu0 0
          %2673 = vmatpush1.bf16.msra.mxu0 0
          %2674 = vmatprep.subr.bf16.mxu0 0
          %2675 = vmatpush1.bf16.msra.mxu0 %v2659
          %2676 = vmatprep.subr.bf16.mxu0 0
          %2677 = vmatpush1.bf16.msra.mxu0 %v2658
          %2678 = vmatprep.subr.bf16.mxu0 0
          %2679 = vmatpush1.bf16.msra.mxu0 %v2657
          %2680 = vmatprep.subr.bf16.mxu0 0
          %2681 = vmatpush1.bf16.msra.mxu0 %v2656
          %2682 = vmatprep.subr.bf16.mxu0 0
          %2683 = vmatpush1.bf16.msra.mxu0 %v2655
          %2684 = vmatprep.subr.bf16.mxu0 0
          %2685 = vmatpush1.bf16.msra.mxu0 %v2654
          %2686 = vmatprep.subr.bf16.mxu0 0
          %2687 = vmatpush2.bf16.msra.mxu0 0
          %2688 = vmatprep.subr.bf16.mxu0 0
          %2689 = vmatpush2.bf16.msra.mxu0 0
          %2690 = vmatprep.subr.bf16.mxu0 0
          %2691 = vmatpush2.bf16.msra.mxu0 0
          %2692 = vmatprep.subr.bf16.mxu0 0
          %2693 = vmatpush2.bf16.msra.mxu0 0
          %2694 = vmatprep.subr.bf16.mxu0 0
          %2695 = vmatpush2.bf16.msra.mxu0 0
          %2696 = vmatprep.subr.bf16.mxu0 0
          %2697 = vmatpush2.bf16.msra.mxu0 0
          %2698 = vmatprep.subr.bf16.mxu0 0
          %2699 = vmatpush2.bf16.msra.mxu0 0
          %2700 = vmatprep.subr.bf16.mxu0 0
          %2701 = vmatpush2.bf16.msra.mxu0 0
          %2702 = vmatprep.mubr.bf16.mxu0 0
          %2703 = vmatmul.mubr.bf16.gmra.mxu0 %v2668
          %v2704 = vpop.f32.mrf.mxu0
          %v2705 = vadd.f32 %v2629, %v2704
          %v2706 = vpop.f32.mrf.mxu0
          %v2707 = vpop.f32.mrf.mxu0
          %v2708 = vpop.f32.mrf.mxu0
          %2709 = vdwg.mxu0
          %v2710 = vxor.u32 %v2705, 2147483648
          %v2711 = vmul.f32 %v2710, 1.442695
          %v2712 = vpow.pop %v2711
          %v2713 = vadd.f32 %v2712, 1.0
          %v2714 = vrcp.pop %v2713
          %v2715 = vmul.f32 1.0, %v2714
          %s2716 = scalar_lea.vmem %s17, 48
          %v2717 = vld [vmem:[%s2716] sm:$0xf]
          %v2718 = vld [vmem:[%s2716 + $0x4] sm:$0xf]
          %v2719 = vld [vmem:[%s2716 + $0x8] sm:$0xf]
          %v2720 = vld [vmem:[%s2716 + $0xc] sm:$0xf]
          %v2721 = vld [vmem:[%s2716 + $0x10] sm:$0xf]
          %v2722 = vld [vmem:[%s2716 + $0x14] sm:$0xf]
          %v2723 = vld [vmem:[%s2716 + $0x18] sm:$0xf]
          %v2724 = vld [vmem:[%s2716 + $0x1c] sm:$0xf]
          %v2725 = vld [vmem:[%s2716 + $0x20] sm:$0xf]
          %v2726 = vld [vmem:[%s2716 + $0x24] sm:$0xf]
          %v2727 = vld [vmem:[%s2716 + $0x28] sm:$0xf]
          %v2728 = vld [vmem:[%s2716 + $0x2c] sm:$0xf]
          %s2729 = scalar_lea.vmem %s18, 1
          %v2730 = vld [vmem:[%s2729] sm:$0x1]
          %v2743 = vunpack.c.l.b16 %v2717
          %v2744 = vunpack.c.l.b16 %v2718
          %v2745 = vunpack.c.l.b16 %v2719
          %v2746 = vunpack.c.l.b16 %v2720
          %v2747 = vunpack.c.l.b16 %v2721
          %v2748 = vunpack.c.l.b16 %v2722
          %v2749 = vunpack.c.l.b16 %v2723
          %v2750 = vunpack.c.l.b16 %v2724
          %v2751 = vunpack.c.l.b16 %v2725
          %v2752 = vunpack.c.l.b16 %v2726
          %v2753 = vunpack.c.l.b16 %v2727
          %v2754 = vunpack.c.l.b16 %v2728
          %v2755 = vpack.c.b16 %v2744, %v2743
          %v2756 = vpack.c.b16 %v2746, %v2745
          %v2757 = vpack.c.b16 %v2748, %v2747
          %v2758 = vpack.c.b16 %v2750, %v2749
          %v2759 = vpack.c.b16 %v2752, %v2751
          %v2760 = vpack.c.b16 %v2754, %v2753
          %2767 = vmatprep.subr.bf16.mxu0 0
          %2768 = vmatpush1.bf16.msra.mxu0 0
          %2769 = vmatprep.subr.bf16.mxu0 0
          %2770 = vmatpush1.bf16.msra.mxu0 0
          %2771 = vmatprep.subr.bf16.mxu0 0
          %2772 = vmatpush1.bf16.msra.mxu0 %v2760
          %2773 = vmatprep.subr.bf16.mxu0 0
          %2774 = vmatpush1.bf16.msra.mxu0 %v2759
          %2775 = vmatprep.subr.bf16.mxu0 0
          %2776 = vmatpush1.bf16.msra.mxu0 %v2758
          %2777 = vmatprep.subr.bf16.mxu0 0
          %2778 = vmatpush1.bf16.msra.mxu0 %v2757
          %2779 = vmatprep.subr.bf16.mxu0 0
          %2780 = vmatpush1.bf16.msra.mxu0 %v2756
          %2781 = vmatprep.subr.bf16.mxu0 0
          %2782 = vmatpush1.bf16.msra.mxu0 %v2755
          %2783 = vmatprep.subr.bf16.mxu0 0
          %2784 = vmatpush2.bf16.msra.mxu0 0
          %2785 = vmatprep.subr.bf16.mxu0 0
          %2786 = vmatpush2.bf16.msra.mxu0 0
          %2787 = vmatprep.subr.bf16.mxu0 0
          %2788 = vmatpush2.bf16.msra.mxu0 0
          %2789 = vmatprep.subr.bf16.mxu0 0
          %2790 = vmatpush2.bf16.msra.mxu0 0
          %2791 = vmatprep.subr.bf16.mxu0 0
          %2792 = vmatpush2.bf16.msra.mxu0 0
          %2793 = vmatprep.subr.bf16.mxu0 0
          %2794 = vmatpush2.bf16.msra.mxu0 0
          %2795 = vmatprep.subr.bf16.mxu0 0
          %2796 = vmatpush2.bf16.msra.mxu0 0
          %2797 = vmatprep.subr.bf16.mxu0 0
          %2798 = vmatpush2.bf16.msra.mxu0 0
          %2799 = vmatprep.mubr.bf16.mxu0 0
          %2800 = vmatmul.mubr.bf16.gmra.mxu0 %v2668
          %v2801 = vpop.f32.mrf.mxu0
          %v2802 = vadd.f32 %v2730, %v2801
          %v2803 = vpop.f32.mrf.mxu0
          %v2804 = vpop.f32.mrf.mxu0
          %v2805 = vpop.f32.mrf.mxu0
          %2806 = vdwg.mxu0
          %v2807 = vxor.u32 %v2802, 2147483648
          %v2808 = vmul.f32 %v2807, 1.442695
          %v2809 = vpow.pop %v2808
          %v2810 = vadd.f32 %v2809, 1.0
          %v2811 = vrcp.pop %v2810
          %v2812 = vmul.f32 1.0, %v2811
          %s2813 = scalar_lea.vmem %s17, 96
          %v2814 = vld [vmem:[%s2813] sm:$0xf]
          %v2815 = vld [vmem:[%s2813 + $0x4] sm:$0xf]
          %v2816 = vld [vmem:[%s2813 + $0x8] sm:$0xf]
          %v2817 = vld [vmem:[%s2813 + $0xc] sm:$0xf]
          %v2818 = vld [vmem:[%s2813 + $0x10] sm:$0xf]
          %v2819 = vld [vmem:[%s2813 + $0x14] sm:$0xf]
          %v2820 = vld [vmem:[%s2813 + $0x18] sm:$0xf]
          %v2821 = vld [vmem:[%s2813 + $0x1c] sm:$0xf]
          %v2822 = vld [vmem:[%s2813 + $0x20] sm:$0xf]
          %v2823 = vld [vmem:[%s2813 + $0x24] sm:$0xf]
          %v2824 = vld [vmem:[%s2813 + $0x28] sm:$0xf]
          %v2825 = vld [vmem:[%s2813 + $0x2c] sm:$0xf]
          %s2826 = scalar_lea.vmem %s18, 2
          %v2827 = vld [vmem:[%s2826] sm:$0x1]
          %v2840 = vunpack.c.l.b16 %v2814
          %v2841 = vunpack.c.l.b16 %v2815
          %v2842 = vunpack.c.l.b16 %v2816
          %v2843 = vunpack.c.l.b16 %v2817
          %v2844 = vunpack.c.l.b16 %v2818
          %v2845 = vunpack.c.l.b16 %v2819
          %v2846 = vunpack.c.l.b16 %v2820
          %v2847 = vunpack.c.l.b16 %v2821
          %v2848 = vunpack.c.l.b16 %v2822
          %v2849 = vunpack.c.l.b16 %v2823
          %v2850 = vunpack.c.l.b16 %v2824
          %v2851 = vunpack.c.l.b16 %v2825
          %v2852 = vpack.c.b16 %v2841, %v2840
          %v2853 = vpack.c.b16 %v2843, %v2842
          %v2854 = vpack.c.b16 %v2845, %v2844
          %v2855 = vpack.c.b16 %v2847, %v2846
          %v2856 = vpack.c.b16 %v2849, %v2848
          %v2857 = vpack.c.b16 %v2851, %v2850
          %2864 = vmatprep.subr.bf16.mxu0 0
          %2865 = vmatpush1.bf16.msra.mxu0 0
          %2866 = vmatprep.subr.bf16.mxu0 0
          %2867 = vmatpush1.bf16.msra.mxu0 0
          %2868 = vmatprep.subr.bf16.mxu0 0
          %2869 = vmatpush1.bf16.msra.mxu0 %v2857
          %2870 = vmatprep.subr.bf16.mxu0 0
          %2871 = vmatpush1.bf16.msra.mxu0 %v2856
          %2872 = vmatprep.subr.bf16.mxu0 0
          %2873 = vmatpush1.bf16.msra.mxu0 %v2855
          %2874 = vmatprep.subr.bf16.mxu0 0
          %2875 = vmatpush1.bf16.msra.mxu0 %v2854
          %2876 = vmatprep.subr.bf16.mxu0 0
          %2877 = vmatpush1.bf16.msra.mxu0 %v2853
          %2878 = vmatprep.subr.bf16.mxu0 0
          %2879 = vmatpush1.bf16.msra.mxu0 %v2852
          %2880 = vmatprep.subr.bf16.mxu0 0
          %2881 = vmatpush2.bf16.msra.mxu0 0
          %2882 = vmatprep.subr.bf16.mxu0 0
          %2883 = vmatpush2.bf16.msra.mxu0 0
          %2884 = vmatprep.subr.bf16.mxu0 0
          %2885 = vmatpush2.bf16.msra.mxu0 0
          %2886 = vmatprep.subr.bf16.mxu0 0
          %2887 = vmatpush2.bf16.msra.mxu0 0
          %2888 = vmatprep.subr.bf16.mxu0 0
          %2889 = vmatpush2.bf16.msra.mxu0 0
          %2890 = vmatprep.subr.bf16.mxu0 0
          %2891 = vmatpush2.bf16.msra.mxu0 0
          %2892 = vmatprep.subr.bf16.mxu0 0
          %2893 = vmatpush2.bf16.msra.mxu0 0
          %2894 = vmatprep.subr.bf16.mxu0 0
          %2895 = vmatpush2.bf16.msra.mxu0 0
          %2896 = vmatprep.mubr.bf16.mxu0 0
          %2897 = vmatmul.mubr.bf16.gmra.mxu0 %v2668
          %v2898 = vpop.f32.mrf.mxu0
          %v2899 = vadd.f32 %v2827, %v2898
          %v2900 = vpop.f32.mrf.mxu0
          %v2901 = vpop.f32.mrf.mxu0
          %v2902 = vpop.f32.mrf.mxu0
          %2903 = vdwg.mxu0
          %v2904 = vtanh.pop %v2899
          %s2905 = scalar_lea.vmem %s17, 144
          %v2906 = vld [vmem:[%s2905] sm:$0xf]
          %v2907 = vld [vmem:[%s2905 + $0x4] sm:$0xf]
          %v2908 = vld [vmem:[%s2905 + $0x8] sm:$0xf]
          %v2909 = vld [vmem:[%s2905 + $0xc] sm:$0xf]
          %v2910 = vld [vmem:[%s2905 + $0x10] sm:$0xf]
          %v2911 = vld [vmem:[%s2905 + $0x14] sm:$0xf]
          %v2912 = vld [vmem:[%s2905 + $0x18] sm:$0xf]
          %v2913 = vld [vmem:[%s2905 + $0x1c] sm:$0xf]
          %v2914 = vld [vmem:[%s2905 + $0x20] sm:$0xf]
          %v2915 = vld [vmem:[%s2905 + $0x24] sm:$0xf]
          %v2916 = vld [vmem:[%s2905 + $0x28] sm:$0xf]
          %v2917 = vld [vmem:[%s2905 + $0x2c] sm:$0xf]
          %s2918 = scalar_lea.vmem %s18, 3
          %v2919 = vld [vmem:[%s2918] sm:$0x1]
          %v2932 = vunpack.c.l.b16 %v2906
          %v2933 = vunpack.c.l.b16 %v2907
          %v2934 = vunpack.c.l.b16 %v2908
          %v2935 = vunpack.c.l.b16 %v2909
          %v2936 = vunpack.c.l.b16 %v2910
          %v2937 = vunpack.c.l.b16 %v2911
          %v2938 = vunpack.c.l.b16 %v2912
          %v2939 = vunpack.c.l.b16 %v2913
          %v2940 = vunpack.c.l.b16 %v2914
          %v2941 = vunpack.c.l.b16 %v2915
          %v2942 = vunpack.c.l.b16 %v2916
          %v2943 = vunpack.c.l.b16 %v2917
          %v2944 = vpack.c.b16 %v2933, %v2932
          %v2945 = vpack.c.b16 %v2935, %v2934
          %v2946 = vpack.c.b16 %v2937, %v2936
          %v2947 = vpack.c.b16 %v2939, %v2938
          %v2948 = vpack.c.b16 %v2941, %v2940
          %v2949 = vpack.c.b16 %v2943, %v2942
          %2956 = vmatprep.subr.bf16.mxu0 0
          %2957 = vmatpush1.bf16.msra.mxu0 0
          %2958 = vmatprep.subr.bf16.mxu0 0
          %2959 = vmatpush1.bf16.msra.mxu0 0
          %2960 = vmatprep.subr.bf16.mxu0 0
          %2961 = vmatpush1.bf16.msra.mxu0 %v2949
          %2962 = vmatprep.subr.bf16.mxu0 0
          %2963 = vmatpush1.bf16.msra.mxu0 %v2948
          %2964 = vmatprep.subr.bf16.mxu0 0
          %2965 = vmatpush1.bf16.msra.mxu0 %v2947
          %2966 = vmatprep.subr.bf16.mxu0 0
          %2967 = vmatpush1.bf16.msra.mxu0 %v2946
          %2968 = vmatprep.subr.bf16.mxu0 0
          %2969 = vmatpush1.bf16.msra.mxu0 %v2945
          %2970 = vmatprep.subr.bf16.mxu0 0
          %2971 = vmatpush1.bf16.msra.mxu0 %v2944
          %2972 = vmatprep.subr.bf16.mxu0 0
          %2973 = vmatpush2.bf16.msra.mxu0 0
          %2974 = vmatprep.subr.bf16.mxu0 0
          %2975 = vmatpush2.bf16.msra.mxu0 0
          %2976 = vmatprep.subr.bf16.mxu0 0
          %2977 = vmatpush2.bf16.msra.mxu0 0
          %2978 = vmatprep.subr.bf16.mxu0 0
          %2979 = vmatpush2.bf16.msra.mxu0 0
          %2980 = vmatprep.subr.bf16.mxu0 0
          %2981 = vmatpush2.bf16.msra.mxu0 0
          %2982 = vmatprep.subr.bf16.mxu0 0
          %2983 = vmatpush2.bf16.msra.mxu0 0
          %2984 = vmatprep.subr.bf16.mxu0 0
          %2985 = vmatpush2.bf16.msra.mxu0 0
          %2986 = vmatprep.subr.bf16.mxu0 0
          %2987 = vmatpush2.bf16.msra.mxu0 0
          %2988 = vmatprep.mubr.bf16.mxu0 0
          %2989 = vmatmul.mubr.bf16.gmra.mxu0 %v2668
          %v2990 = vpop.f32.mrf.mxu0
          %v2991 = vadd.f32 %v2919, %v2990
          %v2992 = vpop.f32.mrf.mxu0
          %v2993 = vpop.f32.mrf.mxu0
          %v2994 = vpop.f32.mrf.mxu0
          %2995 = vdwg.mxu0
          %v2996 = vxor.u32 %v2991, 2147483648
          %v2997 = vmul.f32 %v2996, 1.442695
          %v2998 = vpow.pop %v2997
          %v2999 = vadd.f32 %v2998, 1.0
          %v3000 = vrcp.pop %v2999
          %v3001 = vmul.f32 1.0, %v3000
          %v3002 = vmul.f32 %v2812, 0.0
          %v3003 = vmul.f32 %v2715, %v2904
          %v3004 = vadd.f32 %v3002, %v3003
          %v3005 = vtanh.pop %v3004
          %v3006 = vmul.f32 %v3001, %v3005
          %v3007 = vlaneseq
          %v3008 = vshrl.u32 %v3007, 7
          %v3009 = vsub.s32 0, %v3008
          %v3010 = vrot.slane %v3006, %v3009
          %v3011 = vmul.f32 %v2597, %v3010
          %v3012 = vsel %vm1569, %v3011, 0.0
          %3013 = vadd.xlane.f32.xlu0 %v3012
          %v3014 = vpop.xlane.xlu0 %3013
          %v3015 = vsel %vm2599, %v3014, -1e+30
          %v3016 = vrot.slane %v3015, 4
          %v3017 = vmax.f32 %v3015, %v3016
          %v3018 = vrot.slane %v3017, 2
          %v3019 = vmax.f32 %v3017, %v3018
          %v3020 = vrot.slane %v3019, 1
          %v3021 = vmax.f32 %v3019, %v3020
          %v3022 = vsub.f32 %v3015, %v3021
          %v3023 = vmul.f32 %v3022, 1.442695
          %v3024 = vpow.pop %v3023
          %v3025 = vrot.slane %v3024, 4
          %v3026 = vadd.f32 %v3024, %v3025
          %v3027 = vrot.slane %v3026, 2
          %v3028 = vadd.f32 %v3026, %v3027
          %v3029 = vrot.slane %v3028, 1
          %v3030 = vadd.f32 %v3028, %v3029
          %v3031 = vrcp.pop %v3030
          %v3032 = vmul.f32 %v3024, %v3031
          %v3033 = vmul.f32 %v2597, %v3032
          %v3034 = vsel %vm1569, %v3033, 0.0
          %v3035 = vrot.slane %v3034, 4
          %v3036 = vadd.f32 %v3034, %v3035
          %v3037 = vrot.slane %v3036, 2
          %v3038 = vadd.f32 %v3036, %v3037
          %v3039 = vrot.slane %v3038, 1
          %v3040 = vadd.f32 %v3038, %v3039
          %v3041 = vpack.c.bf16 %v3006, %v3006
          %v3042 = vsel %vm2602, %v3041, %v2616
          %3043 = vst [vmem:[#allocation8] sm:$0x1] %v3042
          %v3044 = vpack.c.bf16 %v3040, %v3040
          %v3047 = vunpack.c.l.s4 1966171168
          %v3048 = vunpack.c.0.s8 %v3047
          %v3049 = vlaneseq
          %v3050 = vshrl.u32 %v3049, 7
          %v3051 = vsub.s32 %v3048, %v3050
          %v3052 = vrot.slane %v3044, %v3051
          %v3054 = vunpack.c.l.s4 1966171168
          %v3055 = vunpack.c.0.s8 %v3054
          %v3056 = vlaneseq
          %v3057 = vshrl.u32 %v3056, 7
          %v3058 = vsub.s32 %v3055, %v3057
          %v3059 = vrot.slane %v3052, %v3058
          %3060 = vrot.lane.b32.xlu0 %v3059, 32
          %v3061 = vpop.permute.xlu0 %3060
          %v3063 = vld [vmem:[#allocation8] sm:$0x1]
          %v3064 = vsel %vm2607, %v3061, %v3063
          %3065 = vst [vmem:[#allocation8] sm:$0x1] %v3064
          %v3068 = vunpack.c.l.s4 1966171168
          %v3069 = vunpack.c.0.s8 %v3068
          %v3070 = vlaneseq
          %v3071 = vshrl.u32 %v3070, 7
          %v3072 = vsub.s32 %v3069, %v3071
          %v3073 = vrot.slane %v3041, %v3072
          %v3075 = vunpack.c.l.s4 1966171168
          %v3076 = vunpack.c.0.s8 %v3075
          %v3077 = vlaneseq
          %v3078 = vshrl.u32 %v3077, 7
          %v3079 = vsub.s32 %v3076, %v3078
          %v3080 = vrot.slane %v3073, %v3079
          %3081 = vrot.lane.b32.xlu0 %v3080, 64
          %v3082 = vpop.permute.xlu0 %3081
          %v3084 = vld [vmem:[#allocation8] sm:$0x1]
          %v3085 = vsel %vm2612, %v3082, %v3084
          %3086 = vst [vmem:[#allocation8] sm:$0x1] %v3085
          %v3087 = vld [vmem:[#allocation8] sm:$0x1]
          %v3088 = vld [vmem:[%s17] sm:$0xf]
          %v3089 = vld [vmem:[%s17 + $0x4] sm:$0xf]
          %v3090 = vld [vmem:[%s17 + $0x8] sm:$0xf]
          %v3091 = vld [vmem:[%s17 + $0xc] sm:$0xf]
          %v3092 = vld [vmem:[%s17 + $0x10] sm:$0xf]
          %v3093 = vld [vmem:[%s17 + $0x14] sm:$0xf]
          %v3094 = vld [vmem:[%s17 + $0x18] sm:$0xf]
          %v3095 = vld [vmem:[%s17 + $0x1c] sm:$0xf]
          %v3096 = vld [vmem:[%s17 + $0x20] sm:$0xf]
          %v3097 = vld [vmem:[%s17 + $0x24] sm:$0xf]
          %v3098 = vld [vmem:[%s17 + $0x28] sm:$0xf]
          %v3099 = vld [vmem:[%s17 + $0x2c] sm:$0xf]
          %v3100 = vld [vmem:[%s18] sm:$0x1]
          %v3113 = vunpack.c.l.b16 %v3088
          %v3114 = vunpack.c.l.b16 %v3089
          %v3115 = vunpack.c.l.b16 %v3090
          %v3116 = vunpack.c.l.b16 %v3091
          %v3117 = vunpack.c.l.b16 %v3092
          %v3118 = vunpack.c.l.b16 %v3093
          %v3119 = vunpack.c.l.b16 %v3094
          %v3120 = vunpack.c.l.b16 %v3095
          %v3121 = vunpack.c.l.b16 %v3096
          %v3122 = vunpack.c.l.b16 %v3097
          %v3123 = vunpack.c.l.b16 %v3098
          %v3124 = vunpack.c.l.b16 %v3099
          %v3125 = vpack.c.b16 %v3114, %v3113
          %v3126 = vpack.c.b16 %v3116, %v3115
          %v3127 = vpack.c.b16 %v3118, %v3117
          %v3128 = vpack.c.b16 %v3120, %v3119
          %v3129 = vpack.c.b16 %v3122, %v3121
          %v3130 = vpack.c.b16 %v3124, %v3123
          %v3138 = vsel %vm2666, %v3087, 0
          %3140 = vmatprep.subr.bf16.mxu0 0
          %3141 = vmatpush1.bf16.msra.mxu0 0
          %3142 = vmatprep.subr.bf16.mxu0 0
          %3143 = vmatpush1.bf16.msra.mxu0 0
          %3144 = vmatprep.subr.bf16.mxu0 0
          %3145 = vmatpush1.bf16.msra.mxu0 %v3130
          %3146 = vmatprep.subr.bf16.mxu0 0
          %3147 = vmatpush1.bf16.msra.mxu0 %v3129
          %3148 = vmatprep.subr.bf16.mxu0 0
          %3149 = vmatpush1.bf16.msra.mxu0 %v3128
          %3150 = vmatprep.subr.bf16.mxu0 0
          %3151 = vmatpush1.bf16.msra.mxu0 %v3127
          %3152 = vmatprep.subr.bf16.mxu0 0
          %3153 = vmatpush1.bf16.msra.mxu0 %v3126
          %3154 = vmatprep.subr.bf16.mxu0 0
          %3155 = vmatpush1.bf16.msra.mxu0 %v3125
          %3156 = vmatprep.subr.bf16.mxu0 0
          %3157 = vmatpush2.bf16.msra.mxu0 0
          %3158 = vmatprep.subr.bf16.mxu0 0
          %3159 = vmatpush2.bf16.msra.mxu0 0
          %3160 = vmatprep.subr.bf16.mxu0 0
          %3161 = vmatpush2.bf16.msra.mxu0 0
          %3162 = vmatprep.subr.bf16.mxu0 0
          %3163 = vmatpush2.bf16.msra.mxu0 0
          %3164 = vmatprep.subr.bf16.mxu0 0
          %3165 = vmatpush2.bf16.msra.mxu0 0
          %3166 = vmatprep.subr.bf16.mxu0 0
          %3167 = vmatpush2.bf16.msra.mxu0 0
          %3168 = vmatprep.subr.bf16.mxu0 0
          %3169 = vmatpush2.bf16.msra.mxu0 0
          %3170 = vmatprep.subr.bf16.mxu0 0
          %3171 = vmatpush2.bf16.msra.mxu0 0
          %3172 = vmatprep.mubr.bf16.mxu0 0
          %3173 = vmatmul.mubr.bf16.gmra.mxu0 %v3138
          %v3174 = vpop.f32.mrf.mxu0
          %v3175 = vadd.f32 %v3100, %v3174
          %v3176 = vpop.f32.mrf.mxu0
          %v3177 = vpop.f32.mrf.mxu0
          %v3178 = vpop.f32.mrf.mxu0
          %3179 = vdwg.mxu0
          %v3180 = vxor.u32 %v3175, 2147483648
          %v3181 = vmul.f32 %v3180, 1.442695
          %v3182 = vpow.pop %v3181
          %v3183 = vadd.f32 %v3182, 1.0
          %v3184 = vrcp.pop %v3183
          %v3185 = vmul.f32 1.0, %v3184
          %v3186 = vld [vmem:[%s2716] sm:$0xf]
          %v3187 = vld [vmem:[%s2716 + $0x4] sm:$0xf]
          %v3188 = vld [vmem:[%s2716 + $0x8] sm:$0xf]
          %v3189 = vld [vmem:[%s2716 + $0xc] sm:$0xf]
          %v3190 = vld [vmem:[%s2716 + $0x10] sm:$0xf]
          %v3191 = vld [vmem:[%s2716 + $0x14] sm:$0xf]
          %v3192 = vld [vmem:[%s2716 + $0x18] sm:$0xf]
          %v3193 = vld [vmem:[%s2716 + $0x1c] sm:$0xf]
          %v3194 = vld [vmem:[%s2716 + $0x20] sm:$0xf]
          %v3195 = vld [vmem:[%s2716 + $0x24] sm:$0xf]
          %v3196 = vld [vmem:[%s2716 + $0x28] sm:$0xf]
          %v3197 = vld [vmem:[%s2716 + $0x2c] sm:$0xf]
          %v3198 = vld [vmem:[%s2729] sm:$0x1]
          %v3211 = vunpack.c.l.b16 %v3186
          %v3212 = vunpack.c.l.b16 %v3187
          %v3213 = vunpack.c.l.b16 %v3188
          %v3214 = vunpack.c.l.b16 %v3189
          %v3215 = vunpack.c.l.b16 %v3190
          %v3216 = vunpack.c.l.b16 %v3191
          %v3217 = vunpack.c.l.b16 %v3192
          %v3218 = vunpack.c.l.b16 %v3193
          %v3219 = vunpack.c.l.b16 %v3194
          %v3220 = vunpack.c.l.b16 %v3195
          %v3221 = vunpack.c.l.b16 %v3196
          %v3222 = vunpack.c.l.b16 %v3197
          %v3223 = vpack.c.b16 %v3212, %v3211
          %v3224 = vpack.c.b16 %v3214, %v3213
          %v3225 = vpack.c.b16 %v3216, %v3215
          %v3226 = vpack.c.b16 %v3218, %v3217
          %v3227 = vpack.c.b16 %v3220, %v3219
          %v3228 = vpack.c.b16 %v3222, %v3221
          %3235 = vmatprep.subr.bf16.mxu0 0
          %3236 = vmatpush1.bf16.msra.mxu0 0
          %3237 = vmatprep.subr.bf16.mxu0 0
          %3238 = vmatpush1.bf16.msra.mxu0 0
          %3239 = vmatprep.subr.bf16.mxu0 0
          %3240 = vmatpush1.bf16.msra.mxu0 %v3228
          %3241 = vmatprep.subr.bf16.mxu0 0
          %3242 = vmatpush1.bf16.msra.mxu0 %v3227
          %3243 = vmatprep.subr.bf16.mxu0 0
          %3244 = vmatpush1.bf16.msra.mxu0 %v3226
          %3245 = vmatprep.subr.bf16.mxu0 0
          %3246 = vmatpush1.bf16.msra.mxu0 %v3225
          %3247 = vmatprep.subr.bf16.mxu0 0
          %3248 = vmatpush1.bf16.msra.mxu0 %v3224
          %3249 = vmatprep.subr.bf16.mxu0 0
          %3250 = vmatpush1.bf16.msra.mxu0 %v3223
          %3251 = vmatprep.subr.bf16.mxu0 0
          %3252 = vmatpush2.bf16.msra.mxu0 0
          %3253 = vmatprep.subr.bf16.mxu0 0
          %3254 = vmatpush2.bf16.msra.mxu0 0
          %3255 = vmatprep.subr.bf16.mxu0 0
          %3256 = vmatpush2.bf16.msra.mxu0 0
          %3257 = vmatprep.subr.bf16.mxu0 0
          %3258 = vmatpush2.bf16.msra.mxu0 0
          %3259 = vmatprep.subr.bf16.mxu0 0
          %3260 = vmatpush2.bf16.msra.mxu0 0
          %3261 = vmatprep.subr.bf16.mxu0 0
          %3262 = vmatpush2.bf16.msra.mxu0 0
          %3263 = vmatprep.subr.bf16.mxu0 0
          %3264 = vmatpush2.bf16.msra.mxu0 0
          %3265 = vmatprep.subr.bf16.mxu0 0
          %3266 = vmatpush2.bf16.msra.mxu0 0
          %3267 = vmatprep.mubr.bf16.mxu0 0
          %3268 = vmatmul.mubr.bf16.gmra.mxu0 %v3138
          %v3269 = vpop.f32.mrf.mxu0
          %v3270 = vadd.f32 %v3198, %v3269
          %v3271 = vpop.f32.mrf.mxu0
          %v3272 = vpop.f32.mrf.mxu0
          %v3273 = vpop.f32.mrf.mxu0
          %3274 = vdwg.mxu0
          %v3275 = vxor.u32 %v3270, 2147483648
          %v3276 = vmul.f32 %v3275, 1.442695
          %v3277 = vpow.pop %v3276
          %v3278 = vadd.f32 %v3277, 1.0
          %v3279 = vrcp.pop %v3278
          %v3280 = vmul.f32 1.0, %v3279
          %v3281 = vld [vmem:[%s2813] sm:$0xf]
          %v3282 = vld [vmem:[%s2813 + $0x4] sm:$0xf]
          %v3283 = vld [vmem:[%s2813 + $0x8] sm:$0xf]
          %v3284 = vld [vmem:[%s2813 + $0xc] sm:$0xf]
          %v3285 = vld [vmem:[%s2813 + $0x10] sm:$0xf]
          %v3286 = vld [vmem:[%s2813 + $0x14] sm:$0xf]
          %v3287 = vld [vmem:[%s2813 + $0x18] sm:$0xf]
          %v3288 = vld [vmem:[%s2813 + $0x1c] sm:$0xf]
          %v3289 = vld [vmem:[%s2813 + $0x20] sm:$0xf]
          %v3290 = vld [vmem:[%s2813 + $0x24] sm:$0xf]
          %v3291 = vld [vmem:[%s2813 + $0x28] sm:$0xf]
          %v3292 = vld [vmem:[%s2813 + $0x2c] sm:$0xf]
          %v3293 = vld [vmem:[%s2826] sm:$0x1]
          %v3306 = vunpack.c.l.b16 %v3281
          %v3307 = vunpack.c.l.b16 %v3282
          %v3308 = vunpack.c.l.b16 %v3283
          %v3309 = vunpack.c.l.b16 %v3284
          %v3310 = vunpack.c.l.b16 %v3285
          %v3311 = vunpack.c.l.b16 %v3286
          %v3312 = vunpack.c.l.b16 %v3287
          %v3313 = vunpack.c.l.b16 %v3288
          %v3314 = vunpack.c.l.b16 %v3289
          %v3315 = vunpack.c.l.b16 %v3290
          %v3316 = vunpack.c.l.b16 %v3291
          %v3317 = vunpack.c.l.b16 %v3292
          %v3318 = vpack.c.b16 %v3307, %v3306
          %v3319 = vpack.c.b16 %v3309, %v3308
          %v3320 = vpack.c.b16 %v3311, %v3310
          %v3321 = vpack.c.b16 %v3313, %v3312
          %v3322 = vpack.c.b16 %v3315, %v3314
          %v3323 = vpack.c.b16 %v3317, %v3316
          %3330 = vmatprep.subr.bf16.mxu0 0
          %3331 = vmatpush1.bf16.msra.mxu0 0
          %3332 = vmatprep.subr.bf16.mxu0 0
          %3333 = vmatpush1.bf16.msra.mxu0 0
          %3334 = vmatprep.subr.bf16.mxu0 0
          %3335 = vmatpush1.bf16.msra.mxu0 %v3323
          %3336 = vmatprep.subr.bf16.mxu0 0
          %3337 = vmatpush1.bf16.msra.mxu0 %v3322
          %3338 = vmatprep.subr.bf16.mxu0 0
          %3339 = vmatpush1.bf16.msra.mxu0 %v3321
          %3340 = vmatprep.subr.bf16.mxu0 0
          %3341 = vmatpush1.bf16.msra.mxu0 %v3320
          %3342 = vmatprep.subr.bf16.mxu0 0
          %3343 = vmatpush1.bf16.msra.mxu0 %v3319
          %3344 = vmatprep.subr.bf16.mxu0 0
          %3345 = vmatpush1.bf16.msra.mxu0 %v3318
          %3346 = vmatprep.subr.bf16.mxu0 0
          %3347 = vmatpush2.bf16.msra.mxu0 0
          %3348 = vmatprep.subr.bf16.mxu0 0
          %3349 = vmatpush2.bf16.msra.mxu0 0
          %3350 = vmatprep.subr.bf16.mxu0 0
          %3351 = vmatpush2.bf16.msra.mxu0 0
          %3352 = vmatprep.subr.bf16.mxu0 0
          %3353 = vmatpush2.bf16.msra.mxu0 0
          %3354 = vmatprep.subr.bf16.mxu0 0
          %3355 = vmatpush2.bf16.msra.mxu0 0
          %3356 = vmatprep.subr.bf16.mxu0 0
          %3357 = vmatpush2.bf16.msra.mxu0 0
          %3358 = vmatprep.subr.bf16.mxu0 0
          %3359 = vmatpush2.bf16.msra.mxu0 0
          %3360 = vmatprep.subr.bf16.mxu0 0
          %3361 = vmatpush2.bf16.msra.mxu0 0
          %3362 = vmatprep.mubr.bf16.mxu0 0
          %3363 = vmatmul.mubr.bf16.gmra.mxu0 %v3138
          %v3364 = vpop.f32.mrf.mxu0
          %v3365 = vadd.f32 %v3293, %v3364
          %v3366 = vpop.f32.mrf.mxu0
          %v3367 = vpop.f32.mrf.mxu0
          %v3368 = vpop.f32.mrf.mxu0
          %3369 = vdwg.mxu0
          %v3370 = vtanh.pop %v3365
          %v3371 = vld [vmem:[%s2905] sm:$0xf]
          %v3372 = vld [vmem:[%s2905 + $0x4] sm:$0xf]
          %v3373 = vld [vmem:[%s2905 + $0x8] sm:$0xf]
          %v3374 = vld [vmem:[%s2905 + $0xc] sm:$0xf]
          %v3375 = vld [vmem:[%s2905 + $0x10] sm:$0xf]
          %v3376 = vld [vmem:[%s2905 + $0x14] sm:$0xf]
          %v3377 = vld [vmem:[%s2905 + $0x18] sm:$0xf]
          %v3378 = vld [vmem:[%s2905 + $0x1c] sm:$0xf]
          %v3379 = vld [vmem:[%s2905 + $0x20] sm:$0xf]
          %v3380 = vld [vmem:[%s2905 + $0x24] sm:$0xf]
          %v3381 = vld [vmem:[%s2905 + $0x28] sm:$0xf]
          %v3382 = vld [vmem:[%s2905 + $0x2c] sm:$0xf]
          %v3383 = vld [vmem:[%s2918] sm:$0x1]
          %v3396 = vunpack.c.l.b16 %v3371
          %v3397 = vunpack.c.l.b16 %v3372
          %v3398 = vunpack.c.l.b16 %v3373
          %v3399 = vunpack.c.l.b16 %v3374
          %v3400 = vunpack.c.l.b16 %v3375
          %v3401 = vunpack.c.l.b16 %v3376
          %v3402 = vunpack.c.l.b16 %v3377
          %v3403 = vunpack.c.l.b16 %v3378
          %v3404 = vunpack.c.l.b16 %v3379
          %v3405 = vunpack.c.l.b16 %v3380
          %v3406 = vunpack.c.l.b16 %v3381
          %v3407 = vunpack.c.l.b16 %v3382
          %v3408 = vpack.c.b16 %v3397, %v3396
          %v3409 = vpack.c.b16 %v3399, %v3398
          %v3410 = vpack.c.b16 %v3401, %v3400
          %v3411 = vpack.c.b16 %v3403, %v3402
          %v3412 = vpack.c.b16 %v3405, %v3404
          %v3413 = vpack.c.b16 %v3407, %v3406
          %3420 = vmatprep.subr.bf16.mxu0 0
          %3421 = vmatpush1.bf16.msra.mxu0 0
          %3422 = vmatprep.subr.bf16.mxu0 0
          %3423 = vmatpush1.bf16.msra.mxu0 0
          %3424 = vmatprep.subr.bf16.mxu0 0
          %3425 = vmatpush1.bf16.msra.mxu0 %v3413
          %3426 = vmatprep.subr.bf16.mxu0 0
          %3427 = vmatpush1.bf16.msra.mxu0 %v3412
          %3428 = vmatprep.subr.bf16.mxu0 0
          %3429 = vmatpush1.bf16.msra.mxu0 %v3411
          %3430 = vmatprep.subr.bf16.mxu0 0
          %3431 = vmatpush1.bf16.msra.mxu0 %v3410
          %3432 = vmatprep.subr.bf16.mxu0 0
          %3433 = vmatpush1.bf16.msra.mxu0 %v3409
          %3434 = vmatprep.subr.bf16.mxu0 0
          %3435 = vmatpush1.bf16.msra.mxu0 %v3408
          %3436 = vmatprep.subr.bf16.mxu0 0
          %3437 = vmatpush2.bf16.msra.mxu0 0
          %3438 = vmatprep.subr.bf16.mxu0 0
          %3439 = vmatpush2.bf16.msra.mxu0 0
          %3440 = vmatprep.subr.bf16.mxu0 0
          %3441 = vmatpush2.bf16.msra.mxu0 0
          %3442 = vmatprep.subr.bf16.mxu0 0
          %3443 = vmatpush2.bf16.msra.mxu0 0
          %3444 = vmatprep.subr.bf16.mxu0 0
          %3445 = vmatpush2.bf16.msra.mxu0 0
          %3446 = vmatprep.subr.bf16.mxu0 0
          %3447 = vmatpush2.bf16.msra.mxu0 0
          %3448 = vmatprep.subr.bf16.mxu0 0
          %3449 = vmatpush2.bf16.msra.mxu0 0
          %3450 = vmatprep.subr.bf16.mxu0 0
          %3451 = vmatpush2.bf16.msra.mxu0 0
          %3452 = vmatprep.mubr.bf16.mxu0 0
          %3453 = vmatmul.mubr.bf16.gmra.mxu0 %v3138
          %v3454 = vpop.f32.mrf.mxu0
          %v3455 = vadd.f32 %v3383, %v3454
          %v3456 = vpop.f32.mrf.mxu0
          %v3457 = vpop.f32.mrf.mxu0
          %v3458 = vpop.f32.mrf.mxu0
          %3459 = vdwg.mxu0
          %v3460 = vxor.u32 %v3455, 2147483648
          %v3461 = vmul.f32 %v3460, 1.442695
          %v3462 = vpow.pop %v3461
          %v3463 = vadd.f32 %v3462, 1.0
          %v3464 = vrcp.pop %v3463
          %v3465 = vmul.f32 1.0, %v3464
          %v3466 = vmul.f32 %v3280, %v3004
          %v3467 = vmul.f32 %v3185, %v3370
          %v3468 = vadd.f32 %v3466, %v3467
          %v3469 = vtanh.pop %v3468
          %v3470 = vmul.f32 %v3465, %v3469
          %v3471 = vlaneseq
          %v3472 = vshrl.u32 %v3471, 7
          %v3473 = vsub.s32 0, %v3472
          %v3474 = vrot.slane %v3470, %v3473
          %v3475 = vmul.f32 %v2597, %v3474
          %v3476 = vsel %vm1569, %v3475, 0.0
          %3477 = vadd.xlane.f32.xlu0 %v3476
          %v3478 = vpop.xlane.xlu0 %3477
          %v3479 = vsel %vm2599, %v3478, -1e+30
          %v3480 = vrot.slane %v3479, 4
          %v3481 = vmax.f32 %v3479, %v3480
          %v3482 = vrot.slane %v3481, 2
          %v3483 = vmax.f32 %v3481, %v3482
          %v3484 = vrot.slane %v3483, 1
          %v3485 = vmax.f32 %v3483, %v3484
          %v3486 = vsub.f32 %v3479, %v3485
          %v3487 = vmul.f32 %v3486, 1.442695
          %v3488 = vpow.pop %v3487
          %v3489 = vrot.slane %v3488, 4
          %v3490 = vadd.f32 %v3488, %v3489
          %v3491 = vrot.slane %v3490, 2
          %v3492 = vadd.f32 %v3490, %v3491
          %v3493 = vrot.slane %v3492, 1
          %v3494 = vadd.f32 %v3492, %v3493
          %v3495 = vrcp.pop %v3494
          %v3496 = vmul.f32 %v3488, %v3495
          %v3497 = vmul.f32 %v2597, %v3496
          %v3498 = vsel %vm1569, %v3497, 0.0
          %v3499 = vrot.slane %v3498, 4
          %v3500 = vadd.f32 %v3498, %v3499
          %v3501 = vrot.slane %v3500, 2
          %v3502 = vadd.f32 %v3500, %v3501
          %v3503 = vrot.slane %v3502, 1
          %v3504 = vadd.f32 %v3502, %v3503
          %v3505 = vpack.c.bf16 %v3470, %v3470
          %v3506 = vsel %vm2602, %v3505, %v3087
          %3507 = vst [vmem:[#allocation8] sm:$0x1] %v3506
          %v3508 = vpack.c.bf16 %v3504, %v3504
          %v3511 = vunpack.c.l.s4 1966171168
          %v3512 = vunpack.c.0.s8 %v3511
          %v3513 = vlaneseq
          %v3514 = vshrl.u32 %v3513, 7
          %v3515 = vsub.s32 %v3512, %v3514
          %v3516 = vrot.slane %v3508, %v3515
          %v3518 = vunpack.c.l.s4 1966171168
          %v3519 = vunpack.c.0.s8 %v3518
          %v3520 = vlaneseq
          %v3521 = vshrl.u32 %v3520, 7
          %v3522 = vsub.s32 %v3519, %v3521
          %v3523 = vrot.slane %v3516, %v3522
          %3524 = vrot.lane.b32.xlu0 %v3523, 32
          %v3525 = vpop.permute.xlu0 %3524
          %v3527 = vld [vmem:[#allocation8] sm:$0x1]
          %v3528 = vsel %vm2607, %v3525, %v3527
          %3529 = vst [vmem:[#allocation8] sm:$0x1] %v3528
          %v3532 = vunpack.c.l.s4 1966171168
          %v3533 = vunpack.c.0.s8 %v3532
          %v3534 = vlaneseq
          %v3535 = vshrl.u32 %v3534, 7
          %v3536 = vsub.s32 %v3533, %v3535
          %v3537 = vrot.slane %v3505, %v3536
          %v3539 = vunpack.c.l.s4 1966171168
          %v3540 = vunpack.c.0.s8 %v3539
          %v3541 = vlaneseq
          %v3542 = vshrl.u32 %v3541, 7
          %v3543 = vsub.s32 %v3540, %v3542
          %v3544 = vrot.slane %v3537, %v3543
          %3545 = vrot.lane.b32.xlu0 %v3544, 64
          %v3546 = vpop.permute.xlu0 %3545
          %v3548 = vld [vmem:[#allocation8] sm:$0x1]
          %v3549 = vsel %vm2612, %v3546, %v3548
          %3550 = vst [vmem:[#allocation8] sm:$0x1] %v3549
          %v3551 = vld [vmem:[#allocation8] sm:$0x1]
          %v3552 = vld [vmem:[%s17] sm:$0xf]
          %v3553 = vld [vmem:[%s17 + $0x4] sm:$0xf]
          %v3554 = vld [vmem:[%s17 + $0x8] sm:$0xf]
          %v3555 = vld [vmem:[%s17 + $0xc] sm:$0xf]
          %v3556 = vld [vmem:[%s17 + $0x10] sm:$0xf]
          %v3557 = vld [vmem:[%s17 + $0x14] sm:$0xf]
          %v3558 = vld [vmem:[%s17 + $0x18] sm:$0xf]
          %v3559 = vld [vmem:[%s17 + $0x1c] sm:$0xf]
          %v3560 = vld [vmem:[%s17 + $0x20] sm:$0xf]
          %v3561 = vld [vmem:[%s17 + $0x24] sm:$0xf]
          %v3562 = vld [vmem:[%s17 + $0x28] sm:$0xf]
          %v3563 = vld [vmem:[%s17 + $0x2c] sm:$0xf]
          %v3564 = vld [vmem:[%s18] sm:$0x1]
          %v3577 = vunpack.c.l.b16 %v3552
          %v3578 = vunpack.c.l.b16 %v3553
          %v3579 = vunpack.c.l.b16 %v3554
          %v3580 = vunpack.c.l.b16 %v3555
          %v3581 = vunpack.c.l.b16 %v3556
          %v3582 = vunpack.c.l.b16 %v3557
          %v3583 = vunpack.c.l.b16 %v3558
          %v3584 = vunpack.c.l.b16 %v3559
          %v3585 = vunpack.c.l.b16 %v3560
          %v3586 = vunpack.c.l.b16 %v3561
          %v3587 = vunpack.c.l.b16 %v3562
          %v3588 = vunpack.c.l.b16 %v3563
          %v3589 = vpack.c.b16 %v3578, %v3577
          %v3590 = vpack.c.b16 %v3580, %v3579
          %v3591 = vpack.c.b16 %v3582, %v3581
          %v3592 = vpack.c.b16 %v3584, %v3583
          %v3593 = vpack.c.b16 %v3586, %v3585
          %v3594 = vpack.c.b16 %v3588, %v3587
          %v3602 = vsel %vm2666, %v3551, 0
          %3604 = vmatprep.subr.bf16.mxu0 0
          %3605 = vmatpush1.bf16.msra.mxu0 0
          %3606 = vmatprep.subr.bf16.mxu0 0
          %3607 = vmatpush1.bf16.msra.mxu0 0
          %3608 = vmatprep.subr.bf16.mxu0 0
          %3609 = vmatpush1.bf16.msra.mxu0 %v3594
          %3610 = vmatprep.subr.bf16.mxu0 0
          %3611 = vmatpush1.bf16.msra.mxu0 %v3593
          %3612 = vmatprep.subr.bf16.mxu0 0
          %3613 = vmatpush1.bf16.msra.mxu0 %v3592
          %3614 = vmatprep.subr.bf16.mxu0 0
          %3615 = vmatpush1.bf16.msra.mxu0 %v3591
          %3616 = vmatprep.subr.bf16.mxu0 0
          %3617 = vmatpush1.bf16.msra.mxu0 %v3590
          %3618 = vmatprep.subr.bf16.mxu0 0
          %3619 = vmatpush1.bf16.msra.mxu0 %v3589
          %3620 = vmatprep.subr.bf16.mxu0 0
          %3621 = vmatpush2.bf16.msra.mxu0 0
          %3622 = vmatprep.subr.bf16.mxu0 0
          %3623 = vmatpush2.bf16.msra.mxu0 0
          %3624 = vmatprep.subr.bf16.mxu0 0
          %3625 = vmatpush2.bf16.msra.mxu0 0
          %3626 = vmatprep.subr.bf16.mxu0 0
          %3627 = vmatpush2.bf16.msra.mxu0 0
          %3628 = vmatprep.subr.bf16.mxu0 0
          %3629 = vmatpush2.bf16.msra.mxu0 0
          %3630 = vmatprep.subr.bf16.mxu0 0
          %3631 = vmatpush2.bf16.msra.mxu0 0
          %3632 = vmatprep.subr.bf16.mxu0 0
          %3633 = vmatpush2.bf16.msra.mxu0 0
          %3634 = vmatprep.subr.bf16.mxu0 0
          %3635 = vmatpush2.bf16.msra.mxu0 0
          %3636 = vmatprep.mubr.bf16.mxu0 0
          %3637 = vmatmul.mubr.bf16.gmra.mxu0 %v3602
          %v3638 = vpop.f32.mrf.mxu0
          %v3639 = vadd.f32 %v3564, %v3638
          %v3640 = vpop.f32.mrf.mxu0
          %v3641 = vpop.f32.mrf.mxu0
          %v3642 = vpop.f32.mrf.mxu0
          %3643 = vdwg.mxu0
          %v3644 = vxor.u32 %v3639, 2147483648
          %v3645 = vmul.f32 %v3644, 1.442695
          %v3646 = vpow.pop %v3645
          %v3647 = vadd.f32 %v3646, 1.0
          %v3648 = vrcp.pop %v3647
          %v3649 = vmul.f32 1.0, %v3648
          %v3650 = vld [vmem:[%s2716] sm:$0xf]
          %v3651 = vld [vmem:[%s2716 + $0x4] sm:$0xf]
          %v3652 = vld [vmem:[%s2716 + $0x8] sm:$0xf]
          %v3653 = vld [vmem:[%s2716 + $0xc] sm:$0xf]
          %v3654 = vld [vmem:[%s2716 + $0x10] sm:$0xf]
          %v3655 = vld [vmem:[%s2716 + $0x14] sm:$0xf]
          %v3656 = vld [vmem:[%s2716 + $0x18] sm:$0xf]
          %v3657 = vld [vmem:[%s2716 + $0x1c] sm:$0xf]
          %v3658 = vld [vmem:[%s2716 + $0x20] sm:$0xf]
          %v3659 = vld [vmem:[%s2716 + $0x24] sm:$0xf]
          %v3660 = vld [vmem:[%s2716 + $0x28] sm:$0xf]
          %v3661 = vld [vmem:[%s2716 + $0x2c] sm:$0xf]
          %v3662 = vld [vmem:[%s2729] sm:$0x1]
          %v3675 = vunpack.c.l.b16 %v3650
          %v3676 = vunpack.c.l.b16 %v3651
          %v3677 = vunpack.c.l.b16 %v3652
          %v3678 = vunpack.c.l.b16 %v3653
          %v3679 = vunpack.c.l.b16 %v3654
          %v3680 = vunpack.c.l.b16 %v3655
          %v3681 = vunpack.c.l.b16 %v3656
          %v3682 = vunpack.c.l.b16 %v3657
          %v3683 = vunpack.c.l.b16 %v3658
          %v3684 = vunpack.c.l.b16 %v3659
          %v3685 = vunpack.c.l.b16 %v3660
          %v3686 = vunpack.c.l.b16 %v3661
          %v3687 = vpack.c.b16 %v3676, %v3675
          %v3688 = vpack.c.b16 %v3678, %v3677
          %v3689 = vpack.c.b16 %v3680, %v3679
          %v3690 = vpack.c.b16 %v3682, %v3681
          %v3691 = vpack.c.b16 %v3684, %v3683
          %v3692 = vpack.c.b16 %v3686, %v3685
          %3699 = vmatprep.subr.bf16.mxu0 0
          %3700 = vmatpush1.bf16.msra.mxu0 0
          %3701 = vmatprep.subr.bf16.mxu0 0
          %3702 = vmatpush1.bf16.msra.mxu0 0
          %3703 = vmatprep.subr.bf16.mxu0 0
          %3704 = vmatpush1.bf16.msra.mxu0 %v3692
          %3705 = vmatprep.subr.bf16.mxu0 0
          %3706 = vmatpush1.bf16.msra.mxu0 %v3691
          %3707 = vmatprep.subr.bf16.mxu0 0
          %3708 = vmatpush1.bf16.msra.mxu0 %v3690
          %3709 = vmatprep.subr.bf16.mxu0 0
          %3710 = vmatpush1.bf16.msra.mxu0 %v3689
          %3711 = vmatprep.subr.bf16.mxu0 0
          %3712 = vmatpush1.bf16.msra.mxu0 %v3688
          %3713 = vmatprep.subr.bf16.mxu0 0
          %3714 = vmatpush1.bf16.msra.mxu0 %v3687
          %3715 = vmatprep.subr.bf16.mxu0 0
          %3716 = vmatpush2.bf16.msra.mxu0 0
          %3717 = vmatprep.subr.bf16.mxu0 0
          %3718 = vmatpush2.bf16.msra.mxu0 0
          %3719 = vmatprep.subr.bf16.mxu0 0
          %3720 = vmatpush2.bf16.msra.mxu0 0
          %3721 = vmatprep.subr.bf16.mxu0 0
          %3722 = vmatpush2.bf16.msra.mxu0 0
          %3723 = vmatprep.subr.bf16.mxu0 0
          %3724 = vmatpush2.bf16.msra.mxu0 0
          %3725 = vmatprep.subr.bf16.mxu0 0
          %3726 = vmatpush2.bf16.msra.mxu0 0
          %3727 = vmatprep.subr.bf16.mxu0 0
          %3728 = vmatpush2.bf16.msra.mxu0 0
          %3729 = vmatprep.subr.bf16.mxu0 0
          %3730 = vmatpush2.bf16.msra.mxu0 0
          %3731 = vmatprep.mubr.bf16.mxu0 0
          %3732 = vmatmul.mubr.bf16.gmra.mxu0 %v3602
          %v3733 = vpop.f32.mrf.mxu0
          %v3734 = vadd.f32 %v3662, %v3733
          %v3735 = vpop.f32.mrf.mxu0
          %v3736 = vpop.f32.mrf.mxu0
          %v3737 = vpop.f32.mrf.mxu0
          %3738 = vdwg.mxu0
          %v3739 = vxor.u32 %v3734, 2147483648
          %v3740 = vmul.f32 %v3739, 1.442695
          %v3741 = vpow.pop %v3740
          %v3742 = vadd.f32 %v3741, 1.0
          %v3743 = vrcp.pop %v3742
          %v3744 = vmul.f32 1.0, %v3743
          %v3745 = vld [vmem:[%s2813] sm:$0xf]
          %v3746 = vld [vmem:[%s2813 + $0x4] sm:$0xf]
          %v3747 = vld [vmem:[%s2813 + $0x8] sm:$0xf]
          %v3748 = vld [vmem:[%s2813 + $0xc] sm:$0xf]
          %v3749 = vld [vmem:[%s2813 + $0x10] sm:$0xf]
          %v3750 = vld [vmem:[%s2813 + $0x14] sm:$0xf]
          %v3751 = vld [vmem:[%s2813 + $0x18] sm:$0xf]
          %v3752 = vld [vmem:[%s2813 + $0x1c] sm:$0xf]
          %v3753 = vld [vmem:[%s2813 + $0x20] sm:$0xf]
          %v3754 = vld [vmem:[%s2813 + $0x24] sm:$0xf]
          %v3755 = vld [vmem:[%s2813 + $0x28] sm:$0xf]
          %v3756 = vld [vmem:[%s2813 + $0x2c] sm:$0xf]
          %v3757 = vld [vmem:[%s2826] sm:$0x1]
          %v3770 = vunpack.c.l.b16 %v3745
          %v3771 = vunpack.c.l.b16 %v3746
          %v3772 = vunpack.c.l.b16 %v3747
          %v3773 = vunpack.c.l.b16 %v3748
          %v3774 = vunpack.c.l.b16 %v3749
          %v3775 = vunpack.c.l.b16 %v3750
          %v3776 = vunpack.c.l.b16 %v3751
          %v3777 = vunpack.c.l.b16 %v3752
          %v3778 = vunpack.c.l.b16 %v3753
          %v3779 = vunpack.c.l.b16 %v3754
          %v3780 = vunpack.c.l.b16 %v3755
          %v3781 = vunpack.c.l.b16 %v3756
          %v3782 = vpack.c.b16 %v3771, %v3770
          %v3783 = vpack.c.b16 %v3773, %v3772
          %v3784 = vpack.c.b16 %v3775, %v3774
          %v3785 = vpack.c.b16 %v3777, %v3776
          %v3786 = vpack.c.b16 %v3779, %v3778
          %v3787 = vpack.c.b16 %v3781, %v3780
          %3794 = vmatprep.subr.bf16.mxu0 0
          %3795 = vmatpush1.bf16.msra.mxu0 0
          %3796 = vmatprep.subr.bf16.mxu0 0
          %3797 = vmatpush1.bf16.msra.mxu0 0
          %3798 = vmatprep.subr.bf16.mxu0 0
          %3799 = vmatpush1.bf16.msra.mxu0 %v3787
          %3800 = vmatprep.subr.bf16.mxu0 0
          %3801 = vmatpush1.bf16.msra.mxu0 %v3786
          %3802 = vmatprep.subr.bf16.mxu0 0
          %3803 = vmatpush1.bf16.msra.mxu0 %v3785
          %3804 = vmatprep.subr.bf16.mxu0 0
          %3805 = vmatpush1.bf16.msra.mxu0 %v3784
          %3806 = vmatprep.subr.bf16.mxu0 0
          %3807 = vmatpush1.bf16.msra.mxu0 %v3783
          %3808 = vmatprep.subr.bf16.mxu0 0
          %3809 = vmatpush1.bf16.msra.mxu0 %v3782
          %3810 = vmatprep.subr.bf16.mxu0 0
          %3811 = vmatpush2.bf16.msra.mxu0 0
          %3812 = vmatprep.subr.bf16.mxu0 0
          %3813 = vmatpush2.bf16.msra.mxu0 0
          %3814 = vmatprep.subr.bf16.mxu0 0
          %3815 = vmatpush2.bf16.msra.mxu0 0
          %3816 = vmatprep.subr.bf16.mxu0 0
          %3817 = vmatpush2.bf16.msra.mxu0 0
          %3818 = vmatprep.subr.bf16.mxu0 0
          %3819 = vmatpush2.bf16.msra.mxu0 0
          %3820 = vmatprep.subr.bf16.mxu0 0
          %3821 = vmatpush2.bf16.msra.mxu0 0
          %3822 = vmatprep.subr.bf16.mxu0 0
          %3823 = vmatpush2.bf16.msra.mxu0 0
          %3824 = vmatprep.subr.bf16.mxu0 0
          %3825 = vmatpush2.bf16.msra.mxu0 0
          %3826 = vmatprep.mubr.bf16.mxu0 0
          %3827 = vmatmul.mubr.bf16.gmra.mxu0 %v3602
          %v3828 = vpop.f32.mrf.mxu0
          %v3829 = vadd.f32 %v3757, %v3828
          %v3830 = vpop.f32.mrf.mxu0
          %v3831 = vpop.f32.mrf.mxu0
          %v3832 = vpop.f32.mrf.mxu0
          %3833 = vdwg.mxu0
          %v3834 = vtanh.pop %v3829
          %v3835 = vld [vmem:[%s2905] sm:$0xf]
          %v3836 = vld [vmem:[%s2905 + $0x4] sm:$0xf]
          %v3837 = vld [vmem:[%s2905 + $0x8] sm:$0xf]
          %v3838 = vld [vmem:[%s2905 + $0xc] sm:$0xf]
          %v3839 = vld [vmem:[%s2905 + $0x10] sm:$0xf]
          %v3840 = vld [vmem:[%s2905 + $0x14] sm:$0xf]
          %v3841 = vld [vmem:[%s2905 + $0x18] sm:$0xf]
          %v3842 = vld [vmem:[%s2905 + $0x1c] sm:$0xf]
          %v3843 = vld [vmem:[%s2905 + $0x20] sm:$0xf]
          %v3844 = vld [vmem:[%s2905 + $0x24] sm:$0xf]
          %v3845 = vld [vmem:[%s2905 + $0x28] sm:$0xf]
          %v3846 = vld [vmem:[%s2905 + $0x2c] sm:$0xf]
          %v3847 = vld [vmem:[%s2918] sm:$0x1]
          %v3860 = vunpack.c.l.b16 %v3835
          %v3861 = vunpack.c.l.b16 %v3836
          %v3862 = vunpack.c.l.b16 %v3837
          %v3863 = vunpack.c.l.b16 %v3838
          %v3864 = vunpack.c.l.b16 %v3839
          %v3865 = vunpack.c.l.b16 %v3840
          %v3866 = vunpack.c.l.b16 %v3841
          %v3867 = vunpack.c.l.b16 %v3842
          %v3868 = vunpack.c.l.b16 %v3843
          %v3869 = vunpack.c.l.b16 %v3844
          %v3870 = vunpack.c.l.b16 %v3845
          %v3871 = vunpack.c.l.b16 %v3846
          %v3872 = vpack.c.b16 %v3861, %v3860
          %v3873 = vpack.c.b16 %v3863, %v3862
          %v3874 = vpack.c.b16 %v3865, %v3864
          %v3875 = vpack.c.b16 %v3867, %v3866
          %v3876 = vpack.c.b16 %v3869, %v3868
          %v3877 = vpack.c.b16 %v3871, %v3870
          %3884 = vmatprep.subr.bf16.mxu0 0
          %3885 = vmatpush1.bf16.msra.mxu0 0
          %3886 = vmatprep.subr.bf16.mxu0 0
          %3887 = vmatpush1.bf16.msra.mxu0 0
          %3888 = vmatprep.subr.bf16.mxu0 0
          %3889 = vmatpush1.bf16.msra.mxu0 %v3877
          %3890 = vmatprep.subr.bf16.mxu0 0
          %3891 = vmatpush1.bf16.msra.mxu0 %v3876
          %3892 = vmatprep.subr.bf16.mxu0 0
          %3893 = vmatpush1.bf16.msra.mxu0 %v3875
          %3894 = vmatprep.subr.bf16.mxu0 0
          %3895 = vmatpush1.bf16.msra.mxu0 %v3874
          %3896 = vmatprep.subr.bf16.mxu0 0
          %3897 = vmatpush1.bf16.msra.mxu0 %v3873
          %3898 = vmatprep.subr.bf16.mxu0 0
          %3899 = vmatpush1.bf16.msra.mxu0 %v3872
          %3900 = vmatprep.subr.bf16.mxu0 0
          %3901 = vmatpush2.bf16.msra.mxu0 0
          %3902 = vmatprep.subr.bf16.mxu0 0
          %3903 = vmatpush2.bf16.msra.mxu0 0
          %3904 = vmatprep.subr.bf16.mxu0 0
          %3905 = vmatpush2.bf16.msra.mxu0 0
          %3906 = vmatprep.subr.bf16.mxu0 0
          %3907 = vmatpush2.bf16.msra.mxu0 0
          %3908 = vmatprep.subr.bf16.mxu0 0
          %3909 = vmatpush2.bf16.msra.mxu0 0
          %3910 = vmatprep.subr.bf16.mxu0 0
          %3911 = vmatpush2.bf16.msra.mxu0 0
          %3912 = vmatprep.subr.bf16.mxu0 0
          %3913 = vmatpush2.bf16.msra.mxu0 0
          %3914 = vmatprep.subr.bf16.mxu0 0
          %3915 = vmatpush2.bf16.msra.mxu0 0
          %3916 = vmatprep.mubr.bf16.mxu0 0
          %3917 = vmatmul.mubr.bf16.gmra.mxu0 %v3602
          %v3918 = vpop.f32.mrf.mxu0
          %v3919 = vadd.f32 %v3847, %v3918
          %v3920 = vpop.f32.mrf.mxu0
          %v3921 = vpop.f32.mrf.mxu0
          %v3922 = vpop.f32.mrf.mxu0
          %3923 = vdwg.mxu0
          %v3924 = vxor.u32 %v3919, 2147483648
          %v3925 = vmul.f32 %v3924, 1.442695
          %v3926 = vpow.pop %v3925
          %v3927 = vadd.f32 %v3926, 1.0
          %v3928 = vrcp.pop %v3927
          %v3929 = vmul.f32 1.0, %v3928
          %v3930 = vmul.f32 %v3744, %v3468
          %v3931 = vmul.f32 %v3649, %v3834
          %v3932 = vadd.f32 %v3930, %v3931
          %v3933 = vtanh.pop %v3932
          %v3934 = vmul.f32 %v3929, %v3933
          %v3935 = vlaneseq
          %v3936 = vshrl.u32 %v3935, 7
          %v3937 = vsub.s32 0, %v3936
          %v3938 = vrot.slane %v3934, %v3937
          %v3939 = vmul.f32 %v2597, %v3938
          %v3940 = vsel %vm1569, %v3939, 0.0
          %3941 = vadd.xlane.f32.xlu0 %v3940
          %v3942 = vpop.xlane.xlu0 %3941
          %v3943 = vsel %vm2599, %v3942, -1e+30
          %v3944 = vrot.slane %v3943, 4
          %v3945 = vmax.f32 %v3943, %v3944
          %v3946 = vrot.slane %v3945, 2
          %v3947 = vmax.f32 %v3945, %v3946
          %v3948 = vrot.slane %v3947, 1
          %v3949 = vmax.f32 %v3947, %v3948
          %v3950 = vsub.f32 %v3943, %v3949
          %v3951 = vmul.f32 %v3950, 1.442695
          %v3952 = vpow.pop %v3951
          %v3953 = vrot.slane %v3952, 4
          %v3954 = vadd.f32 %v3952, %v3953
          %v3955 = vrot.slane %v3954, 2
          %v3956 = vadd.f32 %v3954, %v3955
          %v3957 = vrot.slane %v3956, 1
          %v3958 = vadd.f32 %v3956, %v3957
          %v3959 = vrcp.pop %v3958
          %v3960 = vmul.f32 %v3952, %v3959
          %v3961 = vmul.f32 %v2597, %v3960
          %v3962 = vsel %vm1569, %v3961, 0.0
          %v3963 = vrot.slane %v3962, 4
          %v3964 = vadd.f32 %v3962, %v3963
          %v3965 = vrot.slane %v3964, 2
          %v3966 = vadd.f32 %v3964, %v3965
          %v3967 = vrot.slane %v3966, 1
          %v3968 = vadd.f32 %v3966, %v3967
          %vm3969 = vcmask 253952
          %3970 = vst.msk [vmem:[#allocation12] sm:$0x1] %vm3969, %v3934
          %3972 = vrot.lane.b32.xlu0 %v3968, 32
          %v3973 = vpop.permute.xlu0 %3972
          %vm3975 = vcmask 516352
          %3976 = vst.msk [vmem:[#allocation12] sm:$0x1] %vm3975, %v3973
        $region124: #{nnconv_encoder_forward.1} parent=95 // pred_fallthru
          _
        // Predicated region
        $region125: #{nnconv_encoder_forward.1} parent=95 // pred_check
          %p3977 = pneg %p474
        $region126: #{nnconv_encoder_forward.1} parent=95 // pred_check_branch
          %3979 = sbr.rel (%p3977) target = $region128
        $region127: #{nnconv_encoder_forward.1} parent=95 // pred_region
          %s3981 = ssub.s32 16, 16
          %3982 = vsyncadd [#allocation11], %s3981
          %s3984 = sshll.u32 [#allocation12], 4
          %s3985 = int_to_ptr.vmem [resolvable:$true] %s3984
          %3987 = dma.vmem_to_hbm [thread:$0]  %s3985, 16, %s19, [#allocation11]
        $region128: #{nnconv_encoder_forward.1} parent=95 // pred_fallthru
          _
        // Predicated region
        $region129: #{nnconv_encoder_forward.1} parent=95 // pred_check
          %p3988 = pneg %p495
        $region130: #{nnconv_encoder_forward.1} parent=95 // pred_check_branch
          %3990 = sbr.rel (%p3988) target = $region132
        $region131: #{nnconv_encoder_forward.1} parent=95 // pred_region
          %s3992 = ssub.s32 128, 128
          %3993 = vsyncadd [#allocation14], %s3992
          %s3995 = sshll.u32 [#allocation13], 4
          %s3996 = int_to_ptr.vmem [resolvable:$true] %s3995
          %3998 = dma.vmem_to_hbm [thread:$0]  %s3996, 128, %s20, [#allocation14]
        $region132: #{nnconv_encoder_forward.1} parent=95 // pred_fallthru
          _
        // Predicated region
        $region133: #{nnconv_encoder_forward.1} parent=95 // pred_check
          %p3999 = pneg %p474
        $region134: #{nnconv_encoder_forward.1} parent=95 // pred_check_branch
          %4001 = sbr.rel (%p3999) target = $region136
        $region135: #{nnconv_encoder_forward.1} parent=95 // pred_region
          %4002 = dma.done [#allocation11], 16
        $region136: #{nnconv_encoder_forward.1} parent=95 // pred_fallthru
          _
        // Predicated region
        $region137: #{nnconv_encoder_forward.1} parent=95 // pred_check
          %p4003 = pneg %p495
        $region138: #{nnconv_encoder_forward.1} parent=95 // pred_check_branch
          %4005 = sbr.rel (%p4003) target = $region140
        $region139: #{nnconv_encoder_forward.1} parent=95 // pred_region
          %4006 = dma.done [#allocation14], 128
        $region140: #{nnconv_encoder_forward.1} parent=95 // pred_fallthru
          _
      $region96: #{nnconv_encoder_forward.1} parent=5 // pred_fallthru
        _
      %p4007 = scmp.le.s32.totalorder 2, %s30
      // Predicated region
      $region141: #{nnconv_encoder_forward.1} parent=5 // pred_check
        %p4008 = pneg %p4007
      $region142: #{nnconv_encoder_forward.1} parent=5 // pred_check_branch
        %4010 = sbr.rel (%p4008) target = $region144
      $region143: #{nnconv_encoder_forward.1} parent=5 // pred_region
        %s4011 = ssub.s32 %s30, 2
      $region144: #{nnconv_encoder_forward.1} parent=5 // pred_fallthru
        _
    $region6: #{nnconv_encoder_forward.1} parent=1 // loop_footer
      %s34 = sadd.s32 1, %s30
    $region7: #{nnconv_encoder_forward.1} parent=1 // loop_footer_branch
      %29 = sbr.rel target = $region3
    $region8: #{nnconv_encoder_forward.1} parent=1 // loop_exit
      _
    %4012 = vsyncpa [#allocation10], 1
    %s4013 = scalar_lea.sflag [#allocation10], 1
    %4014 = vsyncpa %s4013, 1
    %4015 = vsyncpa [#allocation11], 1
    %s4016 = scalar_lea.sflag [#allocation11], 1
    %4017 = vsyncpa %s4016, 1
    %4018 = vsyncpa [#allocation14], 1

</llo_original>
